<compile_context>
chip_gen: v6e
topology: v6e:2x2x1
jax: 0.10.0
libtpu: 0.0.40
codegen_flags: <defaults>
</compile_context>

<pallas_src>
import math
import numpy as np
import jax
import jax.numpy as jnp
from jax.experimental import pallas as pl
from jax.experimental.pallas import tpu as pltpu


# ----------------------------------------------------------------------------
# Kernel: one grid step == one scatter direction.
#   idx_ref : (1, 2, L) int32   row 0 = scatter index ("dst"), row 1 = gather index ("src");
#                               -1 marks padded edges.
#   vals_ref: (1, Pe, L) f32    edge value rows (features then ts), zeros in padding.
#   col_ref : (1, L, 2+Pe) f32  column-oriented copy: [dst, src, v_0 .. v_{Pe-1}]
#                               (needed because the pairwise entropy counts and max/min need
#                                edge data on the sublane axis).
#   out_ref : (1, Rpad, Npad) f32  lane-dense stats.  Row 0 = degree, then 6 slabs of P rows
#                                  each: add, mean, max, min, std, entropy.
# ----------------------------------------------------------------------------
def agg_kernel(idx_ref, vals_ref, col_ref, out_ref):
    f32 = jnp.float32
    idx = idx_ref[0]                               # (2, L) int32
    vals = vals_ref[0]                             # (Pe, L) f32
    cold = col_ref[0]                              # (L, 2+Pe) f32

    Pe, L = vals.shape
    Npad = out_ref.shape[2]
    P = Pe + 1                                     # + structural (degree-gather) column

    dst_row = idx[0:1, :]                          # (1, L) int32
    src_row = idx[1:2, :]                          # (1, L) int32
    dst_col = cold[:, 0:1].astype(jnp.int32)       # (L, 1) int32
    src_col = cold[:, 1:2].astype(jnp.int32)       # (L, 1) int32

    # One-hot scatter/gather matrices; padded edges (index -1) never match a node id.
    ids_ln = jax.lax.broadcasted_iota(jnp.int32, (L, Npad), 1)
    ids_nl = jax.lax.broadcasted_iota(jnp.int32, (Npad, L), 0)
    DfT_b = ids_ln == dst_col                      # (L, N) bool  (dst one-hot, edge x node)
    DfT_f = DfT_b.astype(f32)
    SfT_f = (ids_ln == src_col).astype(f32)        # (L, N)       (src one-hot, edge x node)
    Sf_f = (ids_nl == src_row).astype(f32)         # (N, L)       (src one-hot, node x edge)

    # Mosaic's dot lowering has no per-operand precision; HIGHEST only where the LHS
    # carries real f32 data.
    hi = jax.lax.Precision.HIGHEST

    # Per-node incident-edge count for this direction == the degree output row.
    count_row = jnp.sum(DfT_f, axis=0, keepdims=True)            # (1, N) exact integers
    has = count_row > 0.0
    cnt = jnp.maximum(count_row, 1.0)
    inv_std_den = 1.0 / (jnp.maximum(count_row - 1.0, 1.0) + 1e-6)   # exact divide

    # Structural value column: this direction's degree gathered at the "source" endpoint.
    # Both orientations are exact integer selections -> bitwise consistent, so the
    # equality-based entropy grouping below is reliable.
    struct_row = jnp.dot(count_row, Sf_f, preferred_element_type=f32, precision=hi)  # (1, L)
    struct_col = jnp.sum(SfT_f * count_row, axis=1, keepdims=True)                    # (L, 1)

    # Value rows (struct first, then edge features / ts) assembled in registers.
    V = jnp.concatenate([struct_row, vals], axis=0)               # (P, L)
    valid = (dst_row >= 0).astype(f32)                            # (1, L)
    n_valid = jnp.maximum(jnp.sum(valid, axis=1, keepdims=True), 1.0)   # (1, 1)
    m = jnp.sum(V, axis=1, keepdims=True) / n_valid               # (P, 1) per-column shift
    Vc2 = jnp.square(V - m)                                       # centered squares

    # Per-column pieces that genuinely need edge data on the sublane axis: pairwise
    # value-group counts (entropy) and max/min.  dst_eq is built once, shared by all columns.
    dst_eq = dst_col == dst_row                                   # (L, L) bool
    ones_row = jnp.ones((1, L), f32)
    inv_ln2 = f32(1.4426950408889634)
    neg_inf = f32(-jnp.inf)
    pos_inf = f32(jnp.inf)

    ent_rows, mx_rows, mn_rows = [], [], []
    # TODO(synk): convert to lax.fori_loop + VMEM scratch for large P/L so only one column's
    #             (L,L) temporaries are live at a time.
    for c in range(P):
        v_col = struct_col if c == 0 else cold[:, 1 + c:2 + c]    # (L, 1)
        v_row = V[c:c + 1, :]                                     # (1, L)
        same = jnp.logical_and(dst_eq, v_col == v_row).astype(f32)    # (L, L)
        # counts are sums of exact 0/1 -> default-precision MXU reduce is exact
        c_same = jnp.dot(ones_row, same, preferred_element_type=f32)  # (1, L), always >= 1
        ent_rows.append(-(jnp.log(c_same) * inv_ln2))                 # per-edge -log2(c_e)
        mx_rows.append(jnp.max(jnp.where(DfT_b, v_col, neg_inf), axis=0, keepdims=True))
        mn_rows.append(jnp.min(jnp.where(DfT_b, v_col, pos_inf), axis=0, keepdims=True))

    # ONE fused MXU matmul: scatter_add, centered sum-of-squares and entropy log-sums
    # for all P columns at once:  (3P, L) @ (L, N).
    lhs = jnp.concatenate([V, Vc2] + ent_rows, axis=0)            # (3P, L)
    big = jnp.dot(lhs, DfT_f, preferred_element_type=f32, precision=hi)   # (3P, N)
    S = big[0:P]                                                  # scatter_add
    SQc = big[P:2 * P]                                            # sum (v - m)^2
    ENTs = big[2 * P:3 * P]                                       # sum -log2(c_e)

    MEAN = S / cnt                                                # exact divide
    VAR_sum = jnp.maximum(SQc - cnt * jnp.square(MEAN - m), 0.0)  # = sum (v - mean_n)^2
    STD = jnp.sqrt(VAR_sum * inv_std_den)
    MX = jnp.where(has, jnp.concatenate(mx_rows, axis=0), 0.0)    # (P, N)
    MN = jnp.where(has, jnp.concatenate(mn_rows, axis=0), 0.0)
    # entropy(n) = (sum_e -log2(c_e)) / T + log2(T),  T = count(n)
    ENT = jnp.where(has, ENTs / cnt + jnp.log(cnt) * inv_ln2, 0.0)

    # Lane-dense slab stores (stat-major rows; host reassembles with reshape + transpose).
    out_ref[0, 0:1, :] = count_row
    out_ref[0, 1:1 + P, :] = S
    out_ref[0, 1 + P:1 + 2 * P, :] = MEAN
    out_ref[0, 1 + 2 * P:1 + 3 * P, :] = MX
    out_ref[0, 1 + 3 * P:1 + 4 * P, :] = MN
    out_ref[0, 1 + 4 * P:1 + 5 * P, :] = STD
    out_ref[0, 1 + 5 * P:1 + 6 * P, :] = ENT
    R = 1 + 6 * P
    Rpad = out_ref.shape[1]
    if Rpad > R:
        out_ref[0, R:Rpad, :] = jnp.zeros((Rpad - R, Npad), f32)


# ----------------------------------------------------------------------------
# TGBase.forward wrapper: builds the three direction groups (padded to lane-aligned L),
# launches ONE pallas_call, and reshapes the lane-dense output into the reference order.
# ----------------------------------------------------------------------------
def tgbase_forward(ei, ts=None, feats=None, num_nodes=None):
    ei = jnp.asarray(ei).astype(jnp.int32)
    E = int(ei.shape[1])
    if num_nodes is None:
        # TODO(synk): this path blocks dispatch (host sync); pass num_nodes explicitly.
        num_nodes = int(jax.device_get(jnp.max(ei))) + 1
    N = int(num_nodes)
    L = 2 * E
    L_pad = max(128, ((L + 127) // 128) * 128)
    N_pad = max(128, ((N + 127) // 128) * 128)

    src = ei[0]
    dst = ei[1]

    def pad_i(a):
        a = a.astype(jnp.int32)
        return jnp.concatenate([a, jnp.full((L_pad - a.shape[0],), -1, jnp.int32)])

    def pad_f(a):
        a = a.astype(jnp.float32)
        return jnp.concatenate([a, jnp.zeros((L_pad - a.shape[0],), jnp.float32)])

    # Three distinct scatter directions (deduplicated across every pass of the reference):
    #   A: scatter by dst, gather degree at src
    #   B: scatter by src, gather degree at dst
    #   C: scatter by concat(src,dst), gather at concat(dst,src)
    idx_rows = jnp.stack([
        jnp.stack([pad_i(dst), pad_i(src)]),
        jnp.stack([pad_i(src), pad_i(dst)]),
        jnp.stack([pad_i(jnp.concatenate([src, dst])),
                   pad_i(jnp.concatenate([dst, src]))]),
    ])                                                             # (3, 2, L_pad) int32

    vcols = []
    if feats is not None:
        feats = jnp.asarray(feats, jnp.float32)
        if feats.ndim == 1:
            feats = feats[:, None]
        for i in range(feats.shape[1]):
            vcols.append(feats[:, i])
    if ts is not None:
        vcols.append(jnp.asarray(ts, jnp.float32))
    n_edge_cols = len(vcols)
    if n_edge_cols == 0:
        vcols = [jnp.zeros((E,), jnp.float32)]     # dummy column; its stats are dropped below
    Pe = len(vcols)

    vals_ab = jnp.stack([pad_f(v) for v in vcols])                             # (Pe, L_pad)
    vals_c = jnp.stack([pad_f(jnp.concatenate([v, v])) for v in vcols])        # (Pe, L_pad)
    vals_rows = jnp.stack([vals_ab, vals_ab, vals_c])                          # (3, Pe, L_pad)

    col_all = jnp.concatenate(
        [idx_rows.astype(jnp.float32).transpose(0, 2, 1),                      # (3, L_pad, 2)
         vals_rows.transpose(0, 2, 1)],                                        # (3, L_pad, Pe)
        axis=2)                                                                # (3, L_pad, 2+Pe)

    P = Pe + 1
    R = 1 + 6 * P
    R_pad = ((R + 7) // 8) * 8

    out = pl.pallas_call(
        agg_kernel,
        out_shape=jax.ShapeDtypeStruct((3, R_pad, N_pad), jnp.float32),
        grid=(3,),
        in_specs=[
            pl.BlockSpec((1, 2, L_pad), lambda g: (g, 0, 0)),
            pl.BlockSpec((1, Pe, L_pad), lambda g: (g, 0, 0)),
            pl.BlockSpec((1, L_pad, 2 + Pe), lambda g: (g, 0, 0)),
        ],
        out_specs=pl.BlockSpec((1, R_pad, N_pad), lambda g: (g, 0, 0)),
        compiler_params=pltpu.CompilerParams(dimension_semantics=("parallel",)),
    )(idx_rows, vals_rows, col_all)

    # (direction, stat-row, node) -> reference column order with one reshape + transpose.
    deg = out[:, 0, :N]                                            # (3, N): in, out, tot
    stats = out[:, 1:1 + 6 * P, :N].reshape(3, 6, P, N)            # (g, s, p, n)
    P_used = 1 + n_edge_cols                                       # struct + real edge cols
    stats = stats[:, :, :P_used, :]
    feat_cols = jnp.transpose(stats, (3, 2, 0, 1)).reshape(N, P_used * 18)   # (n, p, g, s)
    return jnp.concatenate([deg.T, feat_cols], axis=1)


# ----------------------------------------------------------------------------
# Independent numpy reference (mirrors torch_scatter / TGBase semantics).
# ----------------------------------------------------------------------------
def _ref_pass(dst, vals, N):
    out = np.zeros((N, 6), dtype=np.float64)
    dst = np.asarray(dst)
    vals = np.asarray(vals, dtype=np.float64)
    for n in range(N):
        v = vals[dst == n]
        c = v.size
        s = v.sum() if c else 0.0
        mean = s / max(c, 1)
        mx = v.max() if c else 0.0
        mn = v.min() if c else 0.0
        var_sum = ((v - mean) ** 2).sum() if c else 0.0
        std = math.sqrt(var_sum / (max(c - 1, 1) + 1e-6))
        if c:
            _, counts = np.unique(v, return_counts=True)
            p = counts / counts.sum()
            ent = float(-(p * np.log2(p)).sum())
        else:
            ent = 0.0
        out[n] = [s, mean, mx, mn, std, ent]
    return out


def _ref_forward(ei, ts, feats, N):
    ei = np.asarray(ei)
    src, dst = ei[0], ei[1]
    in_deg = np.bincount(dst, minlength=N).astype(np.float64)
    out_deg = np.bincount(src, minlength=N).astype(np.float64)
    tot = in_deg + out_deg
    cols = [in_deg[:, None], out_deg[:, None], tot[:, None]]
    cols.append(_ref_pass(dst, in_deg[src], N))
    cols.append(_ref_pass(src, out_deg[dst], N))
    cols.append(_ref_pass(np.concatenate([src, dst]),
                          tot[np.concatenate([dst, src])], N))

    def edge_block(v):
        v = np.asarray(v, dtype=np.float64)
        return [_ref_pass(dst, v, N), _ref_pass(src, v, N),
                _ref_pass(np.concatenate([src, dst]), np.concatenate([v, v]), N)]

    if feats is not None:
        f = np.asarray(feats)
        if f.ndim == 1:
            f = f[:, None]
        for i in range(f.shape[1]):
            cols += edge_block(f[:, i])
    if ts is not None:
        cols += edge_block(np.asarray(ts))
    return np.concatenate(cols, axis=1)


if __name__ == "__main__":
    key = jax.random.PRNGKey(0)
    k1, k2, k3 = jax.random.split(key, 3)
    N, E, F = 8, 12, 2
    ei = jax.random.randint(k1, (2, E), 0, N, dtype=jnp.int32)
    ts = jax.random.uniform(k2, (E,), dtype=jnp.float32)
    feats = jax.random.randint(k3, (E, F), 0, 3).astype(jnp.float32)  # repeats -> nontrivial entropy

    out = tgbase_forward(ei, ts=ts, feats=feats, num_nodes=N)
    out = jax.block_until_ready(out)

    expected_cols = 21 + 18 * F + 18
    assert out.shape == (N, expected_cols), out.shape

    ref = _ref_forward(np.asarray(ei), np.asarray(ts), np.asarray(feats), N)
    max_err = float(np.abs(np.asarray(out) - ref).max())
    assert np.allclose(np.asarray(out), ref, atol=2e-3, rtol=2e-3), max_err

    print("KERNEL_OK")
</pallas_src>

<mosaic_0001>
module attributes {stable_mosaic.version = 11 : i64} {
  func.func @agg_kernel(%arg0: i32, %arg1: memref<1x2x128xi32, #tpu.memory_space<vmem>>, %arg2: memref<1x3x128xf32, #tpu.memory_space<vmem>>, %arg3: memref<1x128x5xf32, #tpu.memory_space<vmem>>, %arg4: memref<1x32x128xf32, #tpu.memory_space<vmem>>) attributes {dimension_semantics = [#tpu.dimension_semantics<parallel>], iteration_bounds = array<i64: 3>, scalar_prefetch = 0 : i64, scratch_operands = 0 : i64, tpu.core_type = #tpu.core_type<tc>, window_params = [{transform_indices = @transform_0, window_bounds = array<i64: 1, 2, 128>}, {transform_indices = @transform_1, window_bounds = array<i64: 1, 3, 128>}, {transform_indices = @transform_2, window_bounds = array<i64: 1, 128, 5>}, {transform_indices = @transform_3, window_bounds = array<i64: 1, 32, 128>}]} {
    %c0 = arith.constant 0 : index
    %c0_0 = arith.constant 0 : index
    %c0_1 = arith.constant 0 : index
    %0 = vector.load %arg1[%c0, %c0_0, %c0_1] : memref<1x2x128xi32, #tpu.memory_space<vmem>>, vector<1x2x128xi32>
    %1 = vector.shape_cast %0 : vector<1x2x128xi32> to vector<2x128xi32>
    %c0_2 = arith.constant 0 : index
    %c0_3 = arith.constant 0 : index
    %c0_4 = arith.constant 0 : index
    %2 = vector.load %arg2[%c0_2, %c0_3, %c0_4] : memref<1x3x128xf32, #tpu.memory_space<vmem>>, vector<1x3x128xf32>
    %3 = vector.shape_cast %2 : vector<1x3x128xf32> to vector<3x128xf32>
    %c0_5 = arith.constant 0 : index
    %c0_6 = arith.constant 0 : index
    %c0_7 = arith.constant 0 : index
    %4 = vector.load %arg3[%c0_5, %c0_6, %c0_7] : memref<1x128x5xf32, #tpu.memory_space<vmem>>, vector<1x128x5xf32>
    %5 = vector.shape_cast %4 : vector<1x128x5xf32> to vector<128x5xf32>
    %6 = vector.extract_strided_slice %1 {offsets = [0, 0], sizes = [1, 128], strides = [1, 1]} : vector<2x128xi32> to vector<1x128xi32>
    %7 = vector.extract_strided_slice %1 {offsets = [1, 0], sizes = [1, 128], strides = [1, 1]} : vector<2x128xi32> to vector<1x128xi32>
    %8 = vector.extract_strided_slice %5 {offsets = [0, 0], sizes = [128, 1], strides = [1, 1]} : vector<128x5xf32> to vector<128x1xf32>
    %9 = arith.fptosi %8 : vector<128x1xf32> to vector<128x1xi32>
    %10 = vector.extract_strided_slice %5 {offsets = [0, 1], sizes = [128, 1], strides = [1, 1]} : vector<128x5xf32> to vector<128x1xf32>
    %11 = arith.fptosi %10 : vector<128x1xf32> to vector<128x1xi32>
    %12 = tpu.iota {dimensions = array<i32: 1>} : vector<128x128xi32>
    %13 = tpu.iota {dimensions = array<i32: 0>} : vector<128x128xi32>
    %14 = vector.broadcast %9 : vector<128x1xi32> to vector<128x128xi32>
    %15 = arith.cmpi eq, %12, %14 : vector<128x128xi32>
    %16 = arith.extui %15 : vector<128x128xi1> to vector<128x128xi32>
    %17 = arith.sitofp %16 : vector<128x128xi32> to vector<128x128xf32>
    %18 = vector.broadcast %11 : vector<128x1xi32> to vector<128x128xi32>
    %19 = arith.cmpi eq, %12, %18 : vector<128x128xi32>
    %20 = arith.extui %19 : vector<128x128xi1> to vector<128x128xi32>
    %21 = arith.sitofp %20 : vector<128x128xi32> to vector<128x128xf32>
    %22 = vector.broadcast %7 : vector<1x128xi32> to vector<128x128xi32>
    %23 = arith.cmpi eq, %13, %22 : vector<128x128xi32>
    %24 = arith.extui %23 : vector<128x128xi1> to vector<128x128xi32>
    %25 = arith.sitofp %24 : vector<128x128xi32> to vector<128x128xf32>
    %cst = arith.constant dense<0.000000e+00> : vector<128xf32>
    %26 = vector.multi_reduction <add>, %17, %cst [0] : vector<128x128xf32> to vector<128xf32>
    %27 = vector.shape_cast %26 : vector<128xf32> to vector<1x128xf32>
    %cst_8 = arith.constant 0.000000e+00 : f32
    %28 = vector.broadcast %cst_8 : f32 to vector<1x128xf32>
    %29 = arith.cmpf ogt, %27, %28 : vector<1x128xf32>
    %cst_9 = arith.constant 1.000000e+00 : f32
    %30 = vector.broadcast %cst_9 : f32 to vector<1x128xf32>
    %31 = arith.maximumf %27, %30 : vector<1x128xf32>
    %cst_10 = arith.constant 1.000000e+00 : f32
    %32 = vector.broadcast %cst_10 : f32 to vector<1x128xf32>
    %33 = arith.subf %27, %32 : vector<1x128xf32>
    %cst_11 = arith.constant 1.000000e+00 : f32
    %34 = vector.broadcast %cst_11 : f32 to vector<1x128xf32>
    %35 = arith.maximumf %33, %34 : vector<1x128xf32>
    %cst_12 = arith.constant 9.99999997E-7 : f32
    %36 = vector.broadcast %cst_12 : f32 to vector<1x128xf32>
    %37 = arith.addf %35, %36 : vector<1x128xf32>
    %cst_13 = arith.constant 1.000000e+00 : f32
    %38 = vector.broadcast %cst_13 : f32 to vector<1x128xf32>
    %39 = arith.divf %38, %37 : vector<1x128xf32>
    %cst_14 = arith.constant dense<0.000000e+00> : vector<1x128xf32>
    %40 = tpu.matmul %27, %25, %cst_14 {dimension_numbers = #tpu.dot_dimension_numbers<[1], [0], [0], [1], [0, 0, 1, 1], [], []>, precision = #tpu.contract_precision<fp32>} : vector<1x128xf32>, vector<128x128xf32>, vector<1x128xf32> -> vector<1x128xf32>
    %41 = vector.broadcast %27 : vector<1x128xf32> to vector<128x128xf32>
    %42 = arith.mulf %21, %41 : vector<128x128xf32>
    %cst_15 = arith.constant dense<0.000000e+00> : vector<128xf32>
    %43 = vector.multi_reduction <add>, %42, %cst_15 [1] : vector<128x128xf32> to vector<128xf32>
    %44 = vector.shape_cast %43 : vector<128xf32> to vector<128x1xf32>
    %45 = tpu.concatenate %40, %3 in 0 : vector<1x128xf32>, vector<3x128xf32> -> vector<4x128xf32>
    %c0_i32 = arith.constant 0 : i32
    %46 = vector.broadcast %c0_i32 : i32 to vector<1x128xi32>
    %47 = arith.cmpi sge, %6, %46 : vector<1x128xi32>
    %48 = arith.extui %47 : vector<1x128xi1> to vector<1x128xi32>
    %49 = arith.sitofp %48 : vector<1x128xi32> to vector<1x128xf32>
    %cst_16 = arith.constant dense<0.000000e+00> : vector<1xf32>
    %50 = vector.multi_reduction <add>, %49, %cst_16 [1] : vector<1x128xf32> to vector<1xf32>
    %51 = vector.shape_cast %50 : vector<1xf32> to vector<1x1xf32>
    %cst_17 = arith.constant 1.000000e+00 : f32
    %52 = vector.broadcast %cst_17 : f32 to vector<1x1xf32>
    %53 = arith.maximumf %51, %52 : vector<1x1xf32>
    %cst_18 = arith.constant dense<0.000000e+00> : vector<4xf32>
    %54 = vector.multi_reduction <add>, %45, %cst_18 [1] : vector<4x128xf32> to vector<4xf32>
    %55 = vector.shape_cast %54 : vector<4xf32> to vector<4x1xf32>
    %56 = vector.broadcast %53 : vector<1x1xf32> to vector<4x1xf32>
    %57 = arith.divf %55, %56 : vector<4x1xf32>
    %58 = vector.broadcast %57 : vector<4x1xf32> to vector<4x128xf32>
    %59 = arith.subf %45, %58 : vector<4x128xf32>
    %60 = arith.mulf %59, %59 : vector<4x128xf32>
    %61 = vector.broadcast %9 : vector<128x1xi32> to vector<128x128xi32>
    %62 = vector.broadcast %6 : vector<1x128xi32> to vector<128x128xi32>
    %63 = arith.cmpi eq, %61, %62 : vector<128x128xi32>
    %cst_19 = arith.constant 1.000000e+00 : f32
    %64 = vector.broadcast %cst_19 : f32 to vector<1x128xf32>
    %65 = vector.extract_strided_slice %45 {offsets = [0, 0], sizes = [1, 128], strides = [1, 1]} : vector<4x128xf32> to vector<1x128xf32>
    %66 = vector.broadcast %44 : vector<128x1xf32> to vector<128x128xf32>
    %67 = vector.broadcast %65 : vector<1x128xf32> to vector<128x128xf32>
    %68 = arith.cmpf oeq, %66, %67 : vector<128x128xf32>
    %69 = arith.andi %63, %68 : vector<128x128xi1>
    %70 = arith.extui %69 : vector<128x128xi1> to vector<128x128xi32>
    %71 = arith.sitofp %70 : vector<128x128xi32> to vector<128x128xf32>
    %cst_20 = arith.constant dense<0.000000e+00> : vector<1x128xf32>
    %72 = tpu.matmul %64, %71, %cst_20 {dimension_numbers = #tpu.dot_dimension_numbers<[1], [0], [0], [1], [0, 0, 1, 1], [], []>} : vector<1x128xf32>, vector<128x128xf32>, vector<1x128xf32> -> vector<1x128xf32>
    %73 = math.log %72 : vector<1x128xf32>
    %cst_21 = arith.constant 1.44269502 : f32
    %74 = vector.broadcast %cst_21 : f32 to vector<1x128xf32>
    %75 = arith.mulf %73, %74 : vector<1x128xf32>
    %cst_22 = arith.constant 0.000000e+00 : f32
    %76 = vector.broadcast %cst_22 : f32 to vector<1x128xf32>
    %77 = arith.subf %76, %75 : vector<1x128xf32>
    %cst_23 = arith.constant 0xFF800000 : f32
    %78 = vector.shape_cast %44 : vector<128x1xf32> to vector<128x1xf32>
    %79 = vector.broadcast %78 : vector<128x1xf32> to vector<128x128xf32>
    %80 = vector.broadcast %cst_23 : f32 to vector<128x128xf32>
    %81 = arith.select %15, %79, %80 : vector<128x128xi1>, vector<128x128xf32>
    %cst_24 = arith.constant dense<0xFF800000> : vector<128xf32>
    %82 = vector.multi_reduction <maximumf>, %81, %cst_24 [0] : vector<128x128xf32> to vector<128xf32>
    %83 = vector.shape_cast %82 : vector<128xf32> to vector<1x128xf32>
    %cst_25 = arith.constant 0x7F800000 : f32
    %84 = vector.shape_cast %44 : vector<128x1xf32> to vector<128x1xf32>
    %85 = vector.broadcast %84 : vector<128x1xf32> to vector<128x128xf32>
    %86 = vector.broadcast %cst_25 : f32 to vector<128x128xf32>
    %87 = arith.select %15, %85, %86 : vector<128x128xi1>, vector<128x128xf32>
    %cst_26 = arith.constant dense<0x7F800000> : vector<128xf32>
    %88 = vector.multi_reduction <minimumf>, %87, %cst_26 [0] : vector<128x128xf32> to vector<128xf32>
    %89 = vector.shape_cast %88 : vector<128xf32> to vector<1x128xf32>
    %90 = vector.extract_strided_slice %5 {offsets = [0, 2], sizes = [128, 1], strides = [1, 1]} : vector<128x5xf32> to vector<128x1xf32>
    %91 = vector.extract_strided_slice %45 {offsets = [1, 0], sizes = [1, 128], strides = [1, 1]} : vector<4x128xf32> to vector<1x128xf32>
    %92 = vector.broadcast %90 : vector<128x1xf32> to vector<128x128xf32>
    %93 = vector.broadcast %91 : vector<1x128xf32> to vector<128x128xf32>
    %94 = arith.cmpf oeq, %92, %93 : vector<128x128xf32>
    %95 = arith.andi %63, %94 : vector<128x128xi1>
    %96 = arith.extui %95 : vector<128x128xi1> to vector<128x128xi32>
    %97 = arith.sitofp %96 : vector<128x128xi32> to vector<128x128xf32>
    %cst_27 = arith.constant dense<0.000000e+00> : vector<1x128xf32>
    %98 = tpu.matmul %64, %97, %cst_27 {dimension_numbers = #tpu.dot_dimension_numbers<[1], [0], [0], [1], [0, 0, 1, 1], [], []>} : vector<1x128xf32>, vector<128x128xf32>, vector<1x128xf32> -> vector<1x128xf32>
    %99 = math.log %98 : vector<1x128xf32>
    %cst_28 = arith.constant 1.44269502 : f32
    %100 = vector.broadcast %cst_28 : f32 to vector<1x128xf32>
    %101 = arith.mulf %99, %100 : vector<1x128xf32>
    %cst_29 = arith.constant 0.000000e+00 : f32
    %102 = vector.broadcast %cst_29 : f32 to vector<1x128xf32>
    %103 = arith.subf %102, %101 : vector<1x128xf32>
    %cst_30 = arith.constant 0xFF800000 : f32
    %104 = vector.shape_cast %90 : vector<128x1xf32> to vector<128x1xf32>
    %105 = vector.broadcast %104 : vector<128x1xf32> to vector<128x128xf32>
    %106 = vector.broadcast %cst_30 : f32 to vector<128x128xf32>
    %107 = arith.select %15, %105, %106 : vector<128x128xi1>, vector<128x128xf32>
    %cst_31 = arith.constant dense<0xFF800000> : vector<128xf32>
    %108 = vector.multi_reduction <maximumf>, %107, %cst_31 [0] : vector<128x128xf32> to vector<128xf32>
    %109 = vector.shape_cast %108 : vector<128xf32> to vector<1x128xf32>
    %cst_32 = arith.constant 0x7F800000 : f32
    %110 = vector.shape_cast %90 : vector<128x1xf32> to vector<128x1xf32>
    %111 = vector.broadcast %110 : vector<128x1xf32> to vector<128x128xf32>
    %112 = vector.broadcast %cst_32 : f32 to vector<128x128xf32>
    %113 = arith.select %15, %111, %112 : vector<128x128xi1>, vector<128x128xf32>
    %cst_33 = arith.constant dense<0x7F800000> : vector<128xf32>
    %114 = vector.multi_reduction <minimumf>, %113, %cst_33 [0] : vector<128x128xf32> to vector<128xf32>
    %115 = vector.shape_cast %114 : vector<128xf32> to vector<1x128xf32>
    %116 = vector.extract_strided_slice %5 {offsets = [0, 3], sizes = [128, 1], strides = [1, 1]} : vector<128x5xf32> to vector<128x1xf32>
    %117 = vector.extract_strided_slice %45 {offsets = [2, 0], sizes = [1, 128], strides = [1, 1]} : vector<4x128xf32> to vector<1x128xf32>
    %118 = vector.broadcast %116 : vector<128x1xf32> to vector<128x128xf32>
    %119 = vector.broadcast %117 : vector<1x128xf32> to vector<128x128xf32>
    %120 = arith.cmpf oeq, %118, %119 : vector<128x128xf32>
    %121 = arith.andi %63, %120 : vector<128x128xi1>
    %122 = arith.extui %121 : vector<128x128xi1> to vector<128x128xi32>
    %123 = arith.sitofp %122 : vector<128x128xi32> to vector<128x128xf32>
    %cst_34 = arith.constant dense<0.000000e+00> : vector<1x128xf32>
    %124 = tpu.matmul %64, %123, %cst_34 {dimension_numbers = #tpu.dot_dimension_numbers<[1], [0], [0], [1], [0, 0, 1, 1], [], []>} : vector<1x128xf32>, vector<128x128xf32>, vector<1x128xf32> -> vector<1x128xf32>
    %125 = math.log %124 : vector<1x128xf32>
    %cst_35 = arith.constant 1.44269502 : f32
    %126 = vector.broadcast %cst_35 : f32 to vector<1x128xf32>
    %127 = arith.mulf %125, %126 : vector<1x128xf32>
    %cst_36 = arith.constant 0.000000e+00 : f32
    %128 = vector.broadcast %cst_36 : f32 to vector<1x128xf32>
    %129 = arith.subf %128, %127 : vector<1x128xf32>
    %cst_37 = arith.constant 0xFF800000 : f32
    %130 = vector.shape_cast %116 : vector<128x1xf32> to vector<128x1xf32>
    %131 = vector.broadcast %130 : vector<128x1xf32> to vector<128x128xf32>
    %132 = vector.broadcast %cst_37 : f32 to vector<128x128xf32>
    %133 = arith.select %15, %131, %132 : vector<128x128xi1>, vector<128x128xf32>
    %cst_38 = arith.constant dense<0xFF800000> : vector<128xf32>
    %134 = vector.multi_reduction <maximumf>, %133, %cst_38 [0] : vector<128x128xf32> to vector<128xf32>
    %135 = vector.shape_cast %134 : vector<128xf32> to vector<1x128xf32>
    %cst_39 = arith.constant 0x7F800000 : f32
    %136 = vector.shape_cast %116 : vector<128x1xf32> to vector<128x1xf32>
    %137 = vector.broadcast %136 : vector<128x1xf32> to vector<128x128xf32>
    %138 = vector.broadcast %cst_39 : f32 to vector<128x128xf32>
    %139 = arith.select %15, %137, %138 : vector<128x128xi1>, vector<128x128xf32>
    %cst_40 = arith.constant dense<0x7F800000> : vector<128xf32>
    %140 = vector.multi_reduction <minimumf>, %139, %cst_40 [0] : vector<128x128xf32> to vector<128xf32>
    %141 = vector.shape_cast %140 : vector<128xf32> to vector<1x128xf32>
    %142 = vector.extract_strided_slice %5 {offsets = [0, 4], sizes = [128, 1], strides = [1, 1]} : vector<128x5xf32> to vector<128x1xf32>
    %143 = vector.extract_strided_slice %45 {offsets = [3, 0], sizes = [1, 128], strides = [1, 1]} : vector<4x128xf32> to vector<1x128xf32>
    %144 = vector.broadcast %142 : vector<128x1xf32> to vector<128x128xf32>
    %145 = vector.broadcast %143 : vector<1x128xf32> to vector<128x128xf32>
    %146 = arith.cmpf oeq, %144, %145 : vector<128x128xf32>
    %147 = arith.andi %63, %146 : vector<128x128xi1>
    %148 = arith.extui %147 : vector<128x128xi1> to vector<128x128xi32>
    %149 = arith.sitofp %148 : vector<128x128xi32> to vector<128x128xf32>
    %cst_41 = arith.constant dense<0.000000e+00> : vector<1x128xf32>
    %150 = tpu.matmul %64, %149, %cst_41 {dimension_numbers = #tpu.dot_dimension_numbers<[1], [0], [0], [1], [0, 0, 1, 1], [], []>} : vector<1x128xf32>, vector<128x128xf32>, vector<1x128xf32> -> vector<1x128xf32>
    %151 = math.log %150 : vector<1x128xf32>
    %cst_42 = arith.constant 1.44269502 : f32
    %152 = vector.broadcast %cst_42 : f32 to vector<1x128xf32>
    %153 = arith.mulf %151, %152 : vector<1x128xf32>
    %cst_43 = arith.constant 0.000000e+00 : f32
    %154 = vector.broadcast %cst_43 : f32 to vector<1x128xf32>
    %155 = arith.subf %154, %153 : vector<1x128xf32>
    %cst_44 = arith.constant 0xFF800000 : f32
    %156 = vector.shape_cast %142 : vector<128x1xf32> to vector<128x1xf32>
    %157 = vector.broadcast %156 : vector<128x1xf32> to vector<128x128xf32>
    %158 = vector.broadcast %cst_44 : f32 to vector<128x128xf32>
    %159 = arith.select %15, %157, %158 : vector<128x128xi1>, vector<128x128xf32>
    %cst_45 = arith.constant dense<0xFF800000> : vector<128xf32>
    %160 = vector.multi_reduction <maximumf>, %159, %cst_45 [0] : vector<128x128xf32> to vector<128xf32>
    %161 = vector.shape_cast %160 : vector<128xf32> to vector<1x128xf32>
    %cst_46 = arith.constant 0x7F800000 : f32
    %162 = vector.shape_cast %142 : vector<128x1xf32> to vector<128x1xf32>
    %163 = vector.broadcast %162 : vector<128x1xf32> to vector<128x128xf32>
    %164 = vector.broadcast %cst_46 : f32 to vector<128x128xf32>
    %165 = arith.select %15, %163, %164 : vector<128x128xi1>, vector<128x128xf32>
    %cst_47 = arith.constant dense<0x7F800000> : vector<128xf32>
    %166 = vector.multi_reduction <minimumf>, %165, %cst_47 [0] : vector<128x128xf32> to vector<128xf32>
    %167 = vector.shape_cast %166 : vector<128xf32> to vector<1x128xf32>
    %168 = tpu.concatenate %45, %60, %77, %103, %129, %155 in 0 : vector<4x128xf32>, vector<4x128xf32>, vector<1x128xf32>, vector<1x128xf32>, vector<1x128xf32>, vector<1x128xf32> -> vector<12x128xf32>
    %cst_48 = arith.constant dense<0.000000e+00> : vector<12x128xf32>
    %169 = tpu.matmul %168, %17, %cst_48 {dimension_numbers = #tpu.dot_dimension_numbers<[1], [0], [0], [1], [0, 0, 1, 1], [], []>, precision = #tpu.contract_precision<fp32>} : vector<12x128xf32>, vector<128x128xf32>, vector<12x128xf32> -> vector<12x128xf32>
    %170 = vector.extract_strided_slice %169 {offsets = [0, 0], sizes = [4, 128], strides = [1, 1]} : vector<12x128xf32> to vector<4x128xf32>
    %171 = vector.extract_strided_slice %169 {offsets = [4, 0], sizes = [4, 128], strides = [1, 1]} : vector<12x128xf32> to vector<4x128xf32>
    %172 = vector.extract_strided_slice %169 {offsets = [8, 0], sizes = [4, 128], strides = [1, 1]} : vector<12x128xf32> to vector<4x128xf32>
    %173 = vector.broadcast %31 : vector<1x128xf32> to vector<4x128xf32>
    %174 = arith.divf %170, %173 : vector<4x128xf32>
    %175 = vector.broadcast %57 : vector<4x1xf32> to vector<4x128xf32>
    %176 = arith.subf %174, %175 : vector<4x128xf32>
    %177 = arith.mulf %176, %176 : vector<4x128xf32>
    %178 = vector.broadcast %31 : vector<1x128xf32> to vector<4x128xf32>
    %179 = arith.mulf %178, %177 : vector<4x128xf32>
    %180 = arith.subf %171, %179 : vector<4x128xf32>
    %cst_49 = arith.constant 0.000000e+00 : f32
    %181 = vector.broadcast %cst_49 : f32 to vector<4x128xf32>
    %182 = arith.maximumf %180, %181 : vector<4x128xf32>
    %183 = vector.broadcast %39 : vector<1x128xf32> to vector<4x128xf32>
    %184 = arith.mulf %182, %183 : vector<4x128xf32>
    %185 = math.sqrt %184 : vector<4x128xf32>
    %186 = tpu.concatenate %83, %109, %135, %161 in 0 : vector<1x128xf32>, vector<1x128xf32>, vector<1x128xf32>, vector<1x128xf32> -> vector<4x128xf32>
    %cst_50 = arith.constant 0.000000e+00 : f32
    %187 = vector.shape_cast %29 : vector<1x128xi1> to vector<1x128xi1>
    %188 = vector.broadcast %187 : vector<1x128xi1> to vector<4x128xi1>
    %189 = vector.broadcast %cst_50 : f32 to vector<4x128xf32>
    %190 = arith.select %188, %186, %189 : vector<4x128xi1>, vector<4x128xf32>
    %191 = tpu.concatenate %89, %115, %141, %167 in 0 : vector<1x128xf32>, vector<1x128xf32>, vector<1x128xf32>, vector<1x128xf32> -> vector<4x128xf32>
    %cst_51 = arith.constant 0.000000e+00 : f32
    %192 = vector.shape_cast %29 : vector<1x128xi1> to vector<1x128xi1>
    %193 = vector.broadcast %192 : vector<1x128xi1> to vector<4x128xi1>
    %194 = vector.broadcast %cst_51 : f32 to vector<4x128xf32>
    %195 = arith.select %193, %191, %194 : vector<4x128xi1>, vector<4x128xf32>
    %196 = vector.broadcast %31 : vector<1x128xf32> to vector<4x128xf32>
    %197 = arith.divf %172, %196 : vector<4x128xf32>
    %198 = math.log %31 : vector<1x128xf32>
    %cst_52 = arith.constant 1.44269502 : f32
    %199 = vector.broadcast %cst_52 : f32 to vector<1x128xf32>
    %200 = arith.mulf %198, %199 : vector<1x128xf32>
    %201 = vector.broadcast %200 : vector<1x128xf32> to vector<4x128xf32>
    %202 = arith.addf %197, %201 : vector<4x128xf32>
    %cst_53 = arith.constant 0.000000e+00 : f32
    %203 = vector.shape_cast %29 : vector<1x128xi1> to vector<1x128xi1>
    %204 = vector.broadcast %203 : vector<1x128xi1> to vector<4x128xi1>
    %205 = vector.broadcast %cst_53 : f32 to vector<4x128xf32>
    %206 = arith.select %204, %202, %205 : vector<4x128xi1>, vector<4x128xf32>
    %c0_54 = arith.constant 0 : index
    %c0_55 = arith.constant 0 : index
    %c0_56 = arith.constant 0 : index
    %207 = vector.load %arg4[%c0_54, %c0_55, %c0_56] : memref<1x32x128xf32, #tpu.memory_space<vmem>>, vector<1x1x128xf32>
    %208 = vector.shape_cast %207 : vector<1x1x128xf32> to vector<1x128xf32>
    %209 = vector.shape_cast %27 : vector<1x128xf32> to vector<1x1x128xf32>
    tpu.vector_store %arg4[%c0_54, %c0_55, %c0_56], %209 {strides = array<i32>} : memref<1x32x128xf32, #tpu.memory_space<vmem>>, vector<1x1x128xf32>,
    %c0_57 = arith.constant 0 : index
    %c1 = arith.constant 1 : index
    %c0_58 = arith.constant 0 : index
    %210 = vector.load %arg4[%c0_57, %c1, %c0_58] : memref<1x32x128xf32, #tpu.memory_space<vmem>>, vector<1x4x128xf32>
    %211 = vector.shape_cast %210 : vector<1x4x128xf32> to vector<4x128xf32>
    %212 = vector.shape_cast %170 : vector<4x128xf32> to vector<1x4x128xf32>
    tpu.vector_store %arg4[%c0_57, %c1, %c0_58], %212 {strides = array<i32>} : memref<1x32x128xf32, #tpu.memory_space<vmem>>, vector<1x4x128xf32>,
    %c0_59 = arith.constant 0 : index
    %c5 = arith.constant 5 : index
    %c0_60 = arith.constant 0 : index
    %213 = vector.load %arg4[%c0_59, %c5, %c0_60] : memref<1x32x128xf32, #tpu.memory_space<vmem>>, vector<1x4x128xf32>
    %214 = vector.shape_cast %213 : vector<1x4x128xf32> to vector<4x128xf32>
    %215 = vector.shape_cast %174 : vector<4x128xf32> to vector<1x4x128xf32>
    tpu.vector_store %arg4[%c0_59, %c5, %c0_60], %215 {strides = array<i32>} : memref<1x32x128xf32, #tpu.memory_space<vmem>>, vector<1x4x128xf32>,
    %c0_61 = arith.constant 0 : index
    %c9 = arith.constant 9 : index
    %c0_62 = arith.constant 0 : index
    %216 = vector.load %arg4[%c0_61, %c9, %c0_62] : memref<1x32x128xf32, #tpu.memory_space<vmem>>, vector<1x4x128xf32>
    %217 = vector.shape_cast %216 : vector<1x4x128xf32> to vector<4x128xf32>
    %218 = vector.shape_cast %190 : vector<4x128xf32> to vector<1x4x128xf32>
    tpu.vector_store %arg4[%c0_61, %c9, %c0_62], %218 {strides = array<i32>} : memref<1x32x128xf32, #tpu.memory_space<vmem>>, vector<1x4x128xf32>,
    %c0_63 = arith.constant 0 : index
    %c13 = arith.constant 13 : index
    %c0_64 = arith.constant 0 : index
    %219 = vector.load %arg4[%c0_63, %c13, %c0_64] : memref<1x32x128xf32, #tpu.memory_space<vmem>>, vector<1x4x128xf32>
    %220 = vector.shape_cast %219 : vector<1x4x128xf32> to vector<4x128xf32>
    %221 = vector.shape_cast %195 : vector<4x128xf32> to vector<1x4x128xf32>
    tpu.vector_store %arg4[%c0_63, %c13, %c0_64], %221 {strides = array<i32>} : memref<1x32x128xf32, #tpu.memory_space<vmem>>, vector<1x4x128xf32>,
    %c0_65 = arith.constant 0 : index
    %c17 = arith.constant 17 : index
    %c0_66 = arith.constant 0 : index
    %222 = vector.load %arg4[%c0_65, %c17, %c0_66] : memref<1x32x128xf32, #tpu.memory_space<vmem>>, vector<1x4x128xf32>
    %223 = vector.shape_cast %222 : vector<1x4x128xf32> to vector<4x128xf32>
    %224 = vector.shape_cast %185 : vector<4x128xf32> to vector<1x4x128xf32>
    tpu.vector_store %arg4[%c0_65, %c17, %c0_66], %224 {strides = array<i32>} : memref<1x32x128xf32, #tpu.memory_space<vmem>>, vector<1x4x128xf32>,
    %c0_67 = arith.constant 0 : index
    %c21 = arith.constant 21 : index
    %c0_68 = arith.constant 0 : index
    %225 = vector.load %arg4[%c0_67, %c21, %c0_68] : memref<1x32x128xf32, #tpu.memory_space<vmem>>, vector<1x4x128xf32>
    %226 = vector.shape_cast %225 : vector<1x4x128xf32> to vector<4x128xf32>
    %227 = vector.shape_cast %206 : vector<4x128xf32> to vector<1x4x128xf32>
    tpu.vector_store %arg4[%c0_67, %c21, %c0_68], %227 {strides = array<i32>} : memref<1x32x128xf32, #tpu.memory_space<vmem>>, vector<1x4x128xf32>,
    %cst_69 = arith.constant 0.000000e+00 : f32
    %228 = vector.broadcast %cst_69 : f32 to vector<7x128xf32>
    %c0_70 = arith.constant 0 : index
    %c25 = arith.constant 25 : index
    %c0_71 = arith.constant 0 : index
    %229 = vector.load %arg4[%c0_70, %c25, %c0_71] : memref<1x32x128xf32, #tpu.memory_space<vmem>>, vector<1x7x128xf32>
    %230 = vector.shape_cast %229 : vector<1x7x128xf32> to vector<7x128xf32>
    %231 = vector.shape_cast %228 : vector<7x128xf32> to vector<1x7x128xf32>
    tpu.vector_store %arg4[%c0_70, %c25, %c0_71], %231 {strides = array<i32>} : memref<1x32x128xf32, #tpu.memory_space<vmem>>, vector<1x7x128xf32>,
    return
  }
  func.func @transform_0(%arg0: i32) -> (i32, i32, i32) {
    %c0_i32 = arith.constant 0 : i32
    %c0_i32_0 = arith.constant 0 : i32
    %c0_i32_1 = arith.constant 0 : i32
    return %arg0, %c0_i32, %c0_i32_0 : i32, i32, i32
  }
  func.func @transform_1(%arg0: i32) -> (i32, i32, i32) {
    %c0_i32 = arith.constant 0 : i32
    %c0_i32_0 = arith.constant 0 : i32
    %c0_i32_1 = arith.constant 0 : i32
    return %arg0, %c0_i32, %c0_i32_0 : i32, i32, i32
  }
  func.func @transform_2(%arg0: i32) -> (i32, i32, i32) {
    %c0_i32 = arith.constant 0 : i32
    %c0_i32_0 = arith.constant 0 : i32
    %c0_i32_1 = arith.constant 0 : i32
    return %arg0, %c0_i32, %c0_i32_0 : i32, i32, i32
  }
  func.func @transform_3(%arg0: i32) -> (i32, i32, i32) {
    %c0_i32 = arith.constant 0 : i32
    %c0_i32_0 = arith.constant 0 : i32
    %c0_i32_1 = arith.constant 0 : i32
    return %arg0, %c0_i32, %c0_i32_0 : i32, i32, i32
  }
}

</mosaic_0001>

<llo_original>
// kernel: tpu_custom_call.1
$region0: #{tpu_custom_call.1}
  #allocation0 [shape = 'u32[]', space=smem, size = 0x4, offset = 0x4, fixed_abs, tag = 'smem constant byte address 0x4 - core index']
  #allocation1 [shape = 'u32[144,128]{1,0:T(1,128)}', space=vmem, size = 0x12000, scoped, tag = 'internal scratch']
  %s0 = inlined_call_operand.vmem [shape: s32[3,2,128], index: 0, kind: input, shape index: {}]
  %s1 = inlined_call_operand.vmem [shape: f32[3,3,128], index: 1, kind: input, shape index: {}]
  %s2 = inlined_call_operand.vmem [shape: f32[3,128,5], index: 2, kind: input, shape index: {}]
  %s3 = inlined_call_operand.hbm [shape: f32[3,32,128], index: 3, kind: output, shape index: {}]
  %s4 = sld [smem:[#allocation0]]
  $region45: #{tpu_custom_call.1} parent=0
    _
  %s6 = ssub.s32 1, %s4
  %s7 = scalar_select 0, %s6, %s4
  $region1: #{tpu_custom_call.1} parent=0
    #allocation2 [shape = 'u8[32768]{0}', space=vmem, size = 0x8000, scoped, tag = 'output window, operand 0']
    #allocation3 [shape = 's32[2]{0}', space=sflag, size = 0x8, scoped, tag = 'scoped memory for tpu_custom_call.1']
    %8 = vsyncpa [#allocation3], 0
    %s9 = scalar_lea.sflag [#allocation3], 1
    %10 = vsyncpa %s9, 0
    loop: start=0, step=1, limit=5
    $region2: #{tpu_custom_call.1} parent=1 // loop_pre_header
      _
    $region3: #{tpu_custom_call.1} parent=1 // loop_header
      %s12 = sphi 0, %s16
      %p13 = scmp.ge.s32.totalorder %s12, 5
      %s22 = sphi 0, %s24
      %s25 = sphi 0, %s22
      %s26 = sphi 0, %s25
      %s42 = sphi 0, %s26
      %s48 = sphi 0, %s50
      %s51 = sphi 0, %s48
      %s52 = sphi 0, %s51
      %s68 = sphi 0, %s52
      %s74 = sphi 0, %s76
      %s77 = sphi 0, %s74
      %s78 = sphi 0, %s77
      %s94 = sphi 0, %s78
      %s100 = sphi 0, %s102
      %s103 = sphi 0, %s100
      %s104 = sphi 0, %s103
      %s120 = sphi 0, %s104
    $region4: #{tpu_custom_call.1} parent=1 // loop_header_branch
      %15 = sbr.rel (%p13) target = $region8
    $region5: #{tpu_custom_call.1} parent=1 // loop_body
      %s17 = ssub.s32 %s12, 1
      %s18 = ssub.s32 %s12, 2
      %s19 = sadd.s32 %s12, 1
      %s20 = ssub.s32 %s12, %s19
      %p21 = scmp.eq.s32.totalorder %s20, 0
      %s23 = sadd.s32 %s22, 1
      %s24 = scalar_select %p21, %s22, %s23
      %p27 = pneg %p21
      %p28 = scmp.eq.s32.totalorder %s12, 2
      %p29 = por %p27, %p28
      %p30 = scmp.ne.s32.totalorder %s22, %s25
      %p31 = scmp.eq.s32.totalorder %s12, 0
      %p32 = por %p30, %p31
      %p33 = scmp.ne.s32.totalorder %s22, %s25
      %p34 = scmp.eq.s32.totalorder %s17, 2
      %p35 = por %p33, %p34
      %p36 = scmp.ne.s32.totalorder %s25, %s26
      %p37 = scmp.eq.s32.totalorder %s17, 0
      %p38 = por %p36, %p37
      %p39 = scmp.ne.s32.totalorder %s25, %s26
      %p40 = scmp.eq.s32.totalorder %s18, 2
      %p41 = por %p39, %p40
      %p43 = scmp.ne.s32.totalorder %s26, %s42
      %p44 = scmp.eq.s32.totalorder %s18, 0
      %p45 = por %p43, %p44
      %s46 = ssub.s32 %s12, %s19
      %p47 = scmp.eq.s32.totalorder %s46, 0
      %s49 = sadd.s32 %s48, 1
      %s50 = scalar_select %p47, %s48, %s49
      %p53 = pneg %p47
      %p54 = scmp.eq.s32.totalorder %s12, 2
      %p55 = por %p53, %p54
      %p56 = scmp.ne.s32.totalorder %s48, %s51
      %p57 = scmp.eq.s32.totalorder %s12, 0
      %p58 = por %p56, %p57
      %p59 = scmp.ne.s32.totalorder %s48, %s51
      %p60 = scmp.eq.s32.totalorder %s17, 2
      %p61 = por %p59, %p60
      %p62 = scmp.ne.s32.totalorder %s51, %s52
      %p63 = scmp.eq.s32.totalorder %s17, 0
      %p64 = por %p62, %p63
      %p65 = scmp.ne.s32.totalorder %s51, %s52
      %p66 = scmp.eq.s32.totalorder %s18, 2
      %p67 = por %p65, %p66
      %p69 = scmp.ne.s32.totalorder %s52, %s68
      %p70 = scmp.eq.s32.totalorder %s18, 0
      %p71 = por %p69, %p70
      %s72 = ssub.s32 %s12, %s19
      %p73 = scmp.eq.s32.totalorder %s72, 0
      %s75 = sadd.s32 %s74, 1
      %s76 = scalar_select %p73, %s74, %s75
      %p79 = pneg %p73
      %p80 = scmp.eq.s32.totalorder %s12, 2
      %p81 = por %p79, %p80
      %p82 = scmp.ne.s32.totalorder %s74, %s77
      %p83 = scmp.eq.s32.totalorder %s12, 0
      %p84 = por %p82, %p83
      %p85 = scmp.ne.s32.totalorder %s74, %s77
      %p86 = scmp.eq.s32.totalorder %s17, 2
      %p87 = por %p85, %p86
      %p88 = scmp.ne.s32.totalorder %s77, %s78
      %p89 = scmp.eq.s32.totalorder %s17, 0
      %p90 = por %p88, %p89
      %p91 = scmp.ne.s32.totalorder %s77, %s78
      %p92 = scmp.eq.s32.totalorder %s18, 2
      %p93 = por %p91, %p92
      %p95 = scmp.ne.s32.totalorder %s78, %s94
      %p96 = scmp.eq.s32.totalorder %s18, 0
      %p97 = por %p95, %p96
      %s98 = ssub.s32 %s12, %s19
      %p99 = scmp.eq.s32.totalorder %s98, 0
      %s101 = sadd.s32 %s100, 1
      %s102 = scalar_select %p99, %s100, %s101
      %p105 = pneg %p99
      %p106 = scmp.eq.s32.totalorder %s12, 2
      %p107 = por %p105, %p106
      %p108 = scmp.ne.s32.totalorder %s100, %s103
      %p109 = scmp.eq.s32.totalorder %s12, 0
      %p110 = por %p108, %p109
      %p111 = scmp.ne.s32.totalorder %s100, %s103
      %p112 = scmp.eq.s32.totalorder %s17, 2
      %p113 = por %p111, %p112
      %p114 = scmp.ne.s32.totalorder %s103, %s104
      %p115 = scmp.eq.s32.totalorder %s17, 0
      %p116 = por %p114, %p115
      %p117 = scmp.ne.s32.totalorder %s103, %s104
      %p118 = scmp.eq.s32.totalorder %s18, 2
      %p119 = por %p117, %p118
      %p121 = scmp.ne.s32.totalorder %s104, %s120
      %p122 = scmp.eq.s32.totalorder %s18, 0
      %p123 = por %p121, %p122
      %p124 = scmp.le.s32.totalorder 1, %s12
      %p125 = scmp.lt.s32.totalorder %s12, 4
      %p126 = pnand %p124, %p125
      %p127 = pneg %p126
      // Predicated region
      $region9: #{tpu_custom_call.1} parent=5 // pred_check
        _
      $region10: #{tpu_custom_call.1} parent=5 // pred_check_branch
        %129 = sbr.rel (%p126) target = $region12
      $region11: #{tpu_custom_call.1} parent=5 // pred_region
        %s130 = ssub.s32 %s12, 1
      $region12: #{tpu_custom_call.1} parent=5 // pred_fallthru
        _
      %p131 = scmp.lt.s32.totalorder %s12, 3
      // Predicated region
      $region13: #{tpu_custom_call.1} parent=5 // pred_check
        %p132 = pneg %p131
      $region14: #{tpu_custom_call.1} parent=5 // pred_check_branch
        %134 = sbr.rel (%p132) target = $region16
      $region15: #{tpu_custom_call.1} parent=5 // pred_region
        // Predicated region
        $region17: #{tpu_custom_call.1} parent=15 // pred_check
          %p135 = pneg %p32
        $region18: #{tpu_custom_call.1} parent=15 // pred_check_branch
          %137 = sbr.rel (%p135) target = $region20
        $region19: #{tpu_custom_call.1} parent=15 // pred_region
          %p138 = scmp.lt.s32.totalorder %s12, 2
          %s139 = scalar_select %p138, %s12, 2
          %s140 = smul.addr %s139, 2
          %s141 = scalar_lea.vmem %s0, %s140
        $region20: #{tpu_custom_call.1} parent=15 // pred_fallthru
          _
        // Predicated region
        $region21: #{tpu_custom_call.1} parent=15 // pred_check
          %p142 = pneg %p58
        $region22: #{tpu_custom_call.1} parent=15 // pred_check_branch
          %144 = sbr.rel (%p142) target = $region24
        $region23: #{tpu_custom_call.1} parent=15 // pred_region
          %p145 = scmp.lt.s32.totalorder %s12, 2
          %s146 = scalar_select %p145, %s12, 2
          %s147 = smul.addr %s146, 4
          %s148 = scalar_lea.vmem %s1, %s147
        $region24: #{tpu_custom_call.1} parent=15 // pred_fallthru
          _
        // Predicated region
        $region25: #{tpu_custom_call.1} parent=15 // pred_check
          %p149 = pneg %p84
        $region26: #{tpu_custom_call.1} parent=15 // pred_check_branch
          %151 = sbr.rel (%p149) target = $region28
        $region27: #{tpu_custom_call.1} parent=15 // pred_region
          %p152 = scmp.lt.s32.totalorder %s12, 2
          %s153 = scalar_select %p152, %s12, 2
          %s154 = smul.addr %s153, 16
          %s155 = smul.addr %s154, 8
          %s156 = scalar_lea.vmem %s2, %s155
        $region28: #{tpu_custom_call.1} parent=15 // pred_fallthru
          _
      $region16: #{tpu_custom_call.1} parent=5 // pred_fallthru
        _
      %p157 = scmp.le.s32.totalorder 1, %s12
      %p158 = scmp.lt.s32.totalorder %s12, 4
      %p159 = pnand %p157, %p158
      %p160 = pneg %p159
      // Predicated region
      $region29: #{tpu_custom_call.1} parent=5 // pred_check
        _
      $region30: #{tpu_custom_call.1} parent=5 // pred_check_branch
        %162 = sbr.rel (%p159) target = $region32
      $region31: #{tpu_custom_call.1} parent=5 // pred_region
        %s163 = ssub.s32 %s12, 1
        %p164 = scmp.lt.s32.totalorder %s17, 2
        %s165 = scalar_select %p164, %s17, 2
        %s166 = smul.addr %s165, 2
        %s167 = scalar_lea.vmem %s0, %s166
        %p168 = pneg %p38
        %p169 = pneg %p35
        %p170 = scmp.lt.s32.totalorder %s17, 2
        %s171 = scalar_select %p170, %s17, 2
        %s172 = smul.addr %s171, 4
        %s173 = scalar_lea.vmem %s1, %s172
        %p174 = pneg %p64
        %p175 = pneg %p61
        %p176 = scmp.lt.s32.totalorder %s17, 2
        %s177 = scalar_select %p176, %s17, 2
        %s178 = smul.addr %s177, 16
        %s179 = smul.addr %s178, 8
        %s180 = scalar_lea.vmem %s2, %s179
        %p181 = pneg %p90
        %p182 = pneg %p87
        %p183 = pneg %p116
        %p184 = pneg %p113
        %s185 = sand.u32 %s103, 1
        %s186 = scalar_lea.sflag [#allocation3], %s185
        %s187 = sand.u32 %s103, 1
        %s188 = smul.addr %s187, 32
        %s189 = scalar_lea.vmem [#allocation2], %s188
        %p190 = scmp.lt.s32.totalorder %s17, 2
        %s191 = scalar_select %p190, %s17, 2
        %s192 = smul.addr %s191, 2
        %s193 = scalar_lea.vmem %s0, %s192
        %p194 = scmp.lt.s32.totalorder %s17, 2
        %s195 = scalar_select %p194, %s17, 2
        %s196 = smul.addr %s195, 4
        %s197 = scalar_lea.vmem %s1, %s196
        %p198 = scmp.lt.s32.totalorder %s17, 2
        %s199 = scalar_select %p198, %s17, 2
        %s200 = smul.addr %s199, 16
        %s201 = smul.addr %s200, 8
        %s202 = scalar_lea.vmem %s2, %s201
        %v203 = vld [vmem:[%s193] sm:$0x3]
        %v204 = vld [vmem:[%s197] sm:$0x7]
        %v205 = vld [vmem:[%s202] sm:$0xff]
        %v206 = vld [vmem:[%s202 + $0x8] sm:$0xff]
        %v207 = vld [vmem:[%s202 + $0x10] sm:$0xff]
        %v208 = vld [vmem:[%s202 + $0x18] sm:$0xff]
        %v209 = vld [vmem:[%s202 + $0x20] sm:$0xff]
        %v210 = vld [vmem:[%s202 + $0x28] sm:$0xff]
        %v211 = vld [vmem:[%s202 + $0x30] sm:$0xff]
        %v212 = vld [vmem:[%s202 + $0x38] sm:$0xff]
        %v213 = vld [vmem:[%s202 + $0x40] sm:$0xff]
        %v214 = vld [vmem:[%s202 + $0x48] sm:$0xff]
        %v215 = vld [vmem:[%s202 + $0x50] sm:$0xff]
        %v216 = vld [vmem:[%s202 + $0x58] sm:$0xff]
        %v217 = vld [vmem:[%s202 + $0x60] sm:$0xff]
        %v218 = vld [vmem:[%s202 + $0x68] sm:$0xff]
        %v219 = vld [vmem:[%s202 + $0x70] sm:$0xff]
        %v220 = vld [vmem:[%s202 + $0x78] sm:$0xff]
        %v221 = vcvt.f32.s32.to.zero.pseudo %v205
        %v222 = vcvt.f32.s32.to.zero.pseudo %v206
        %v223 = vcvt.f32.s32.to.zero.pseudo %v207
        %v224 = vcvt.f32.s32.to.zero.pseudo %v208
        %v225 = vcvt.f32.s32.to.zero.pseudo %v209
        %v226 = vcvt.f32.s32.to.zero.pseudo %v210
        %v227 = vcvt.f32.s32.to.zero.pseudo %v211
        %v228 = vcvt.f32.s32.to.zero.pseudo %v212
        %v229 = vcvt.f32.s32.to.zero.pseudo %v213
        %v230 = vcvt.f32.s32.to.zero.pseudo %v214
        %v231 = vcvt.f32.s32.to.zero.pseudo %v215
        %v232 = vcvt.f32.s32.to.zero.pseudo %v216
        %v233 = vcvt.f32.s32.to.zero.pseudo %v217
        %v234 = vcvt.f32.s32.to.zero.pseudo %v218
        %v235 = vcvt.f32.s32.to.zero.pseudo %v219
        %v236 = vcvt.f32.s32.to.zero.pseudo %v220
        %v237 = vlaneseq
        %v238 = vand.u32 %v237, 127
        %v239 = vlaneseq
        %v240 = vshrl.u32 %v239, 7
        %v241 = vadd.s32 %v240, 8
        %v242 = vadd.s32 %v240, 16
        %v243 = vadd.s32 %v240, 24
        %v244 = vadd.s32 %v240, 32
        %v245 = vadd.s32 %v240, 40
        %v246 = vadd.s32 %v240, 48
        %v247 = vadd.s32 %v240, 56
        %v248 = vadd.s32 %v240, 64
        %v249 = vadd.s32 %v240, 72
        %v250 = vadd.s32 %v240, 80
        %v251 = vadd.s32 %v240, 88
        %v252 = vadd.s32 %v240, 96
        %v253 = vadd.s32 %v240, 104
        %v254 = vadd.s32 %v240, 112
        %v255 = vadd.s32 %v240, 120
        %256 = vset.pattern.permute.xlu0 0
        %257 = vperm.xlu0 %256, %v221
        %v258 = vpop.permute.xlu0 %257
        %259 = vset.pattern.permute.xlu0 0
        %260 = vperm.xlu0 %259, %v222
        %v261 = vpop.permute.xlu0 %260
        %262 = vset.pattern.permute.xlu0 0
        %263 = vperm.xlu0 %262, %v223
        %v264 = vpop.permute.xlu0 %263
        %265 = vset.pattern.permute.xlu0 0
        %266 = vperm.xlu0 %265, %v224
        %v267 = vpop.permute.xlu0 %266
        %268 = vset.pattern.permute.xlu0 0
        %269 = vperm.xlu0 %268, %v225
        %v270 = vpop.permute.xlu0 %269
        %271 = vset.pattern.permute.xlu0 0
        %272 = vperm.xlu0 %271, %v226
        %v273 = vpop.permute.xlu0 %272
        %274 = vset.pattern.permute.xlu0 0
        %275 = vperm.xlu0 %274, %v227
        %v276 = vpop.permute.xlu0 %275
        %277 = vset.pattern.permute.xlu0 0
        %278 = vperm.xlu0 %277, %v228
        %v279 = vpop.permute.xlu0 %278
        %280 = vset.pattern.permute.xlu0 0
        %281 = vperm.xlu0 %280, %v229
        %v282 = vpop.permute.xlu0 %281
        %283 = vset.pattern.permute.xlu0 0
        %284 = vperm.xlu0 %283, %v230
        %v285 = vpop.permute.xlu0 %284
        %286 = vset.pattern.permute.xlu0 0
        %287 = vperm.xlu0 %286, %v231
        %v288 = vpop.permute.xlu0 %287
        %289 = vset.pattern.permute.xlu0 0
        %290 = vperm.xlu0 %289, %v232
        %v291 = vpop.permute.xlu0 %290
        %292 = vset.pattern.permute.xlu0 0
        %293 = vperm.xlu0 %292, %v233
        %v294 = vpop.permute.xlu0 %293
        %295 = vset.pattern.permute.xlu0 0
        %296 = vperm.xlu0 %295, %v234
        %v297 = vpop.permute.xlu0 %296
        %298 = vset.pattern.permute.xlu0 0
        %299 = vperm.xlu0 %298, %v235
        %v300 = vpop.permute.xlu0 %299
        %301 = vset.pattern.permute.xlu0 0
        %302 = vperm.xlu0 %301, %v236
        %v303 = vpop.permute.xlu0 %302
        %vm304 = vcmp.eq.s32.totalorder %v238, %v258
        %vm305 = vcmp.eq.s32.totalorder %v238, %v261
        %vm306 = vcmp.eq.s32.totalorder %v238, %v264
        %vm307 = vcmp.eq.s32.totalorder %v238, %v267
        %vm308 = vcmp.eq.s32.totalorder %v238, %v270
        %vm309 = vcmp.eq.s32.totalorder %v238, %v273
        %vm310 = vcmp.eq.s32.totalorder %v238, %v276
        %vm311 = vcmp.eq.s32.totalorder %v238, %v279
        %vm312 = vcmp.eq.s32.totalorder %v238, %v282
        %vm313 = vcmp.eq.s32.totalorder %v238, %v285
        %vm314 = vcmp.eq.s32.totalorder %v238, %v288
        %vm315 = vcmp.eq.s32.totalorder %v238, %v291
        %vm316 = vcmp.eq.s32.totalorder %v238, %v294
        %vm317 = vcmp.eq.s32.totalorder %v238, %v297
        %vm318 = vcmp.eq.s32.totalorder %v238, %v300
        %vm319 = vcmp.eq.s32.totalorder %v238, %v303
        %v320 = vsel %vm304, 1, 0
        %v321 = vsel %vm305, 1, 0
        %v322 = vsel %vm306, 1, 0
        %v323 = vsel %vm307, 1, 0
        %v324 = vsel %vm308, 1, 0
        %v325 = vsel %vm309, 1, 0
        %v326 = vsel %vm310, 1, 0
        %v327 = vsel %vm311, 1, 0
        %v328 = vsel %vm312, 1, 0
        %v329 = vsel %vm313, 1, 0
        %v330 = vsel %vm314, 1, 0
        %v331 = vsel %vm315, 1, 0
        %v332 = vsel %vm316, 1, 0
        %v333 = vsel %vm317, 1, 0
        %v334 = vsel %vm318, 1, 0
        %v335 = vsel %vm319, 1, 0
        %v336 = vcvt.s32.f32 %v320
        %v337 = vcvt.s32.f32 %v321
        %v338 = vcvt.s32.f32 %v322
        %v339 = vcvt.s32.f32 %v323
        %v340 = vcvt.s32.f32 %v324
        %v341 = vcvt.s32.f32 %v325
        %v342 = vcvt.s32.f32 %v326
        %v343 = vcvt.s32.f32 %v327
        %v344 = vcvt.s32.f32 %v328
        %v345 = vcvt.s32.f32 %v329
        %v346 = vcvt.s32.f32 %v330
        %v347 = vcvt.s32.f32 %v331
        %v348 = vcvt.s32.f32 %v332
        %v349 = vcvt.s32.f32 %v333
        %v350 = vcvt.s32.f32 %v334
        %v351 = vcvt.s32.f32 %v335
        %352 = vset.pattern.permute.xlu0 1
        %353 = vperm.xlu0 %352, %v221
        %v354 = vpop.permute.xlu0 %353
        %355 = vset.pattern.permute.xlu0 1
        %356 = vperm.xlu0 %355, %v222
        %v357 = vpop.permute.xlu0 %356
        %358 = vset.pattern.permute.xlu0 1
        %359 = vperm.xlu0 %358, %v223
        %v360 = vpop.permute.xlu0 %359
        %361 = vset.pattern.permute.xlu0 1
        %362 = vperm.xlu0 %361, %v224
        %v363 = vpop.permute.xlu0 %362
        %364 = vset.pattern.permute.xlu0 1
        %365 = vperm.xlu0 %364, %v225
        %v366 = vpop.permute.xlu0 %365
        %367 = vset.pattern.permute.xlu0 1
        %368 = vperm.xlu0 %367, %v226
        %v369 = vpop.permute.xlu0 %368
        %370 = vset.pattern.permute.xlu0 1
        %371 = vperm.xlu0 %370, %v227
        %v372 = vpop.permute.xlu0 %371
        %373 = vset.pattern.permute.xlu0 1
        %374 = vperm.xlu0 %373, %v228
        %v375 = vpop.permute.xlu0 %374
        %376 = vset.pattern.permute.xlu0 1
        %377 = vperm.xlu0 %376, %v229
        %v378 = vpop.permute.xlu0 %377
        %379 = vset.pattern.permute.xlu0 1
        %380 = vperm.xlu0 %379, %v230
        %v381 = vpop.permute.xlu0 %380
        %382 = vset.pattern.permute.xlu0 1
        %383 = vperm.xlu0 %382, %v231
        %v384 = vpop.permute.xlu0 %383
        %385 = vset.pattern.permute.xlu0 1
        %386 = vperm.xlu0 %385, %v232
        %v387 = vpop.permute.xlu0 %386
        %388 = vset.pattern.permute.xlu0 1
        %389 = vperm.xlu0 %388, %v233
        %v390 = vpop.permute.xlu0 %389
        %391 = vset.pattern.permute.xlu0 1
        %392 = vperm.xlu0 %391, %v234
        %v393 = vpop.permute.xlu0 %392
        %394 = vset.pattern.permute.xlu0 1
        %395 = vperm.xlu0 %394, %v235
        %v396 = vpop.permute.xlu0 %395
        %397 = vset.pattern.permute.xlu0 1
        %398 = vperm.xlu0 %397, %v236
        %v399 = vpop.permute.xlu0 %398
        %vm400 = vcmp.eq.s32.totalorder %v238, %v354
        %vm401 = vcmp.eq.s32.totalorder %v238, %v357
        %vm402 = vcmp.eq.s32.totalorder %v238, %v360
        %vm403 = vcmp.eq.s32.totalorder %v238, %v363
        %vm404 = vcmp.eq.s32.totalorder %v238, %v366
        %vm405 = vcmp.eq.s32.totalorder %v238, %v369
        %vm406 = vcmp.eq.s32.totalorder %v238, %v372
        %vm407 = vcmp.eq.s32.totalorder %v238, %v375
        %vm408 = vcmp.eq.s32.totalorder %v238, %v378
        %vm409 = vcmp.eq.s32.totalorder %v238, %v381
        %vm410 = vcmp.eq.s32.totalorder %v238, %v384
        %vm411 = vcmp.eq.s32.totalorder %v238, %v387
        %vm412 = vcmp.eq.s32.totalorder %v238, %v390
        %vm413 = vcmp.eq.s32.totalorder %v238, %v393
        %vm414 = vcmp.eq.s32.totalorder %v238, %v396
        %vm415 = vcmp.eq.s32.totalorder %v238, %v399
        %v416 = vsel %vm400, 1, 0
        %v417 = vsel %vm401, 1, 0
        %v418 = vsel %vm402, 1, 0
        %v419 = vsel %vm403, 1, 0
        %v420 = vsel %vm404, 1, 0
        %v421 = vsel %vm405, 1, 0
        %v422 = vsel %vm406, 1, 0
        %v423 = vsel %vm407, 1, 0
        %v424 = vsel %vm408, 1, 0
        %v425 = vsel %vm409, 1, 0
        %v426 = vsel %vm410, 1, 0
        %v427 = vsel %vm411, 1, 0
        %v428 = vsel %vm412, 1, 0
        %v429 = vsel %vm413, 1, 0
        %v430 = vsel %vm414, 1, 0
        %v431 = vsel %vm415, 1, 0
        %v432 = vcvt.s32.f32 %v416
        %v433 = vcvt.s32.f32 %v417
        %v434 = vcvt.s32.f32 %v418
        %v435 = vcvt.s32.f32 %v419
        %v436 = vcvt.s32.f32 %v420
        %v437 = vcvt.s32.f32 %v421
        %v438 = vcvt.s32.f32 %v422
        %v439 = vcvt.s32.f32 %v423
        %v440 = vcvt.s32.f32 %v424
        %v441 = vcvt.s32.f32 %v425
        %v442 = vcvt.s32.f32 %v426
        %v443 = vcvt.s32.f32 %v427
        %v444 = vcvt.s32.f32 %v428
        %v445 = vcvt.s32.f32 %v429
        %v446 = vcvt.s32.f32 %v430
        %v447 = vcvt.s32.f32 %v431
        %v448 = vlaneseq
        %v449 = vshrl.u32 %v448, 7
        %v450 = vsub.s32 1, %v449
        %v451 = vrot.slane %v203, %v450
        %vm452 = vcmp.eq.s32.totalorder %v240, %v451
        %vm453 = vcmp.eq.s32.totalorder %v241, %v451
        %vm454 = vcmp.eq.s32.totalorder %v242, %v451
        %vm455 = vcmp.eq.s32.totalorder %v243, %v451
        %vm456 = vcmp.eq.s32.totalorder %v244, %v451
        %vm457 = vcmp.eq.s32.totalorder %v245, %v451
        %vm458 = vcmp.eq.s32.totalorder %v246, %v451
        %vm459 = vcmp.eq.s32.totalorder %v247, %v451
        %vm460 = vcmp.eq.s32.totalorder %v248, %v451
        %vm461 = vcmp.eq.s32.totalorder %v249, %v451
        %vm462 = vcmp.eq.s32.totalorder %v250, %v451
        %vm463 = vcmp.eq.s32.totalorder %v251, %v451
        %vm464 = vcmp.eq.s32.totalorder %v252, %v451
        %vm465 = vcmp.eq.s32.totalorder %v253, %v451
        %vm466 = vcmp.eq.s32.totalorder %v254, %v451
        %vm467 = vcmp.eq.s32.totalorder %v255, %v451
        %v468 = vsel %vm452, 1, 0
        %v469 = vsel %vm453, 1, 0
        %v470 = vsel %vm454, 1, 0
        %v471 = vsel %vm455, 1, 0
        %v472 = vsel %vm456, 1, 0
        %v473 = vsel %vm457, 1, 0
        %v474 = vsel %vm458, 1, 0
        %v475 = vsel %vm459, 1, 0
        %v476 = vsel %vm460, 1, 0
        %v477 = vsel %vm461, 1, 0
        %v478 = vsel %vm462, 1, 0
        %v479 = vsel %vm463, 1, 0
        %v480 = vsel %vm464, 1, 0
        %v481 = vsel %vm465, 1, 0
        %v482 = vsel %vm466, 1, 0
        %v483 = vsel %vm467, 1, 0
        %v484 = vcvt.s32.f32 %v468
        %v485 = vcvt.s32.f32 %v469
        %v486 = vcvt.s32.f32 %v470
        %v487 = vcvt.s32.f32 %v471
        %v488 = vcvt.s32.f32 %v472
        %v489 = vcvt.s32.f32 %v473
        %v490 = vcvt.s32.f32 %v474
        %v491 = vcvt.s32.f32 %v475
        %v492 = vcvt.s32.f32 %v476
        %v493 = vcvt.s32.f32 %v477
        %v494 = vcvt.s32.f32 %v478
        %v495 = vcvt.s32.f32 %v479
        %v496 = vcvt.s32.f32 %v480
        %v497 = vcvt.s32.f32 %v481
        %v498 = vcvt.s32.f32 %v482
        %v499 = vcvt.s32.f32 %v483
        %v500 = vadd.f32 %v336, %v337
        %v501 = vadd.f32 %v500, %v338
        %v502 = vadd.f32 %v501, %v339
        %v503 = vadd.f32 %v502, %v340
        %v504 = vadd.f32 %v503, %v341
        %v505 = vadd.f32 %v504, %v342
        %v506 = vadd.f32 %v505, %v343
        %v507 = vadd.f32 %v506, %v344
        %v508 = vadd.f32 %v507, %v345
        %v509 = vadd.f32 %v508, %v346
        %v510 = vadd.f32 %v509, %v347
        %v511 = vadd.f32 %v510, %v348
        %v512 = vadd.f32 %v511, %v349
        %v513 = vadd.f32 %v512, %v350
        %v514 = vadd.f32 %v513, %v351
        %v515 = vrot.slane %v514, 4
        %v516 = vadd.f32 %v514, %v515
        %v517 = vrot.slane %v516, 2
        %v518 = vadd.f32 %v516, %v517
        %v519 = vrot.slane %v518, 1
        %v520 = vadd.f32 %v518, %v519
        %vm521 = vcmp.gt.f32.partialorder %v520, 0.0
        %v522 = vmax.f32 %v520, 1.0
        %v523 = vsub.f32 %v520, 1.0
        %v524 = vmax.f32 %v523, 1.0
        %v525 = vadd.f32 %v524, 1e-06
        %v526 = vrcp.pop %v525
        %v527 = vmul.f32 1.0, %v526
        %528 = vmatprep.subr.mxu0 0.0
        %v529 = vand.u32 %v499, 4294901760
        %530 = vmatpush1.msra.mxu0 %v529
        %531 = vmatprep.subr.mxu0 0.0
        %v532 = vand.u32 %v498, 4294901760
        %533 = vmatpush1.msra.mxu0 %v532
        %534 = vmatprep.subr.mxu0 0.0
        %v535 = vand.u32 %v497, 4294901760
        %536 = vmatpush1.msra.mxu0 %v535
        %537 = vmatprep.subr.mxu0 0.0
        %v538 = vand.u32 %v496, 4294901760
        %539 = vmatpush1.msra.mxu0 %v538
        %540 = vmatprep.subr.mxu0 0.0
        %v541 = vand.u32 %v495, 4294901760
        %542 = vmatpush1.msra.mxu0 %v541
        %543 = vmatprep.subr.mxu0 0.0
        %v544 = vand.u32 %v494, 4294901760
        %545 = vmatpush1.msra.mxu0 %v544
        %546 = vmatprep.subr.mxu0 0.0
        %v547 = vand.u32 %v493, 4294901760
        %548 = vmatpush1.msra.mxu0 %v547
        %549 = vmatprep.subr.mxu0 0.0
        %v550 = vand.u32 %v492, 4294901760
        %551 = vmatpush1.msra.mxu0 %v550
        %552 = vmatprep.subr.mxu0 0.0
        %v553 = vand.u32 %v491, 4294901760
        %554 = vmatpush1.msra.mxu0 %v553
        %555 = vmatprep.subr.mxu0 0.0
        %v556 = vand.u32 %v490, 4294901760
        %557 = vmatpush1.msra.mxu0 %v556
        %558 = vmatprep.subr.mxu0 0.0
        %v559 = vand.u32 %v489, 4294901760
        %560 = vmatpush1.msra.mxu0 %v559
        %561 = vmatprep.subr.mxu0 0.0
        %v562 = vand.u32 %v488, 4294901760
        %563 = vmatpush1.msra.mxu0 %v562
        %564 = vmatprep.subr.mxu0 0.0
        %v565 = vand.u32 %v487, 4294901760
        %566 = vmatpush1.msra.mxu0 %v565
        %567 = vmatprep.subr.mxu0 0.0
        %v568 = vand.u32 %v486, 4294901760
        %569 = vmatpush1.msra.mxu0 %v568
        %570 = vmatprep.subr.mxu0 0.0
        %v571 = vand.u32 %v485, 4294901760
        %572 = vmatpush1.msra.mxu0 %v571
        %573 = vmatprep.subr.mxu0 0.0
        %v574 = vand.u32 %v484, 4294901760
        %575 = vmatpush1.msra.mxu0 %v574
        %576 = vmatprep.subr.mxu0 0.0
        %577 = vmatpush2.msra.mxu0 0.0
        %578 = vmatprep.subr.mxu0 0.0
        %579 = vmatpush2.msra.mxu0 0.0
        %580 = vmatprep.subr.mxu0 0.0
        %581 = vmatpush2.msra.mxu0 0.0
        %582 = vmatprep.subr.mxu0 0.0
        %583 = vmatpush2.msra.mxu0 0.0
        %584 = vmatprep.subr.mxu0 0.0
        %585 = vmatpush2.msra.mxu0 0.0
        %586 = vmatprep.subr.mxu0 0.0
        %587 = vmatpush2.msra.mxu0 0.0
        %588 = vmatprep.subr.mxu0 0.0
        %589 = vmatpush2.msra.mxu0 0.0
        %590 = vmatprep.subr.mxu0 0.0
        %591 = vmatpush2.msra.mxu0 0.0
        %592 = vmatprep.subr.mxu0 0.0
        %593 = vmatpush2.msra.mxu0 0.0
        %594 = vmatprep.subr.mxu0 0.0
        %595 = vmatpush2.msra.mxu0 0.0
        %596 = vmatprep.subr.mxu0 0.0
        %597 = vmatpush2.msra.mxu0 0.0
        %598 = vmatprep.subr.mxu0 0.0
        %599 = vmatpush2.msra.mxu0 0.0
        %600 = vmatprep.subr.mxu0 0.0
        %601 = vmatpush2.msra.mxu0 0.0
        %602 = vmatprep.subr.mxu0 0.0
        %603 = vmatpush2.msra.mxu0 0.0
        %604 = vmatprep.subr.mxu0 0.0
        %605 = vmatpush2.msra.mxu0 0.0
        %606 = vmatprep.subr.mxu0 0.0
        %607 = vmatpush2.msra.mxu0 0.0
        %608 = vmatprep.mubr.f32.mxu0 0.0
        %v609 = vand.u32 %v520, 4294901760
        %v610 = vsub.f32 %v520, %v609
        %v611 = vand.u32 %v610, 4294901760
        %v612 = vsub.f32 %v610, %v611
        %v613 = vand.u32 %v612, 4294901760
        %614 = vmatmul.mubr.f32.gmra.mxu0 %v613
        %v615 = vpop.f32.mrf.mxu0
        %v616 = vadd.f32 0.0, %v615
        %v617 = vpop.f32.mrf.mxu0
        %618 = vdwg.mxu0
        %619 = vmatprep.subr.mxu0 0.0
        %v620 = vand.u32 %v499, 4294901760
        %v621 = vsub.f32 %v499, %v620
        %v622 = vand.u32 %v621, 4294901760
        %v623 = vsub.f32 %v621, %v622
        %v624 = vand.u32 %v623, 4294901760
        %625 = vmatpush1.msra.mxu0 %v624
        %626 = vmatprep.subr.mxu0 0.0
        %v627 = vand.u32 %v498, 4294901760
        %v628 = vsub.f32 %v498, %v627
        %v629 = vand.u32 %v628, 4294901760
        %v630 = vsub.f32 %v628, %v629
        %v631 = vand.u32 %v630, 4294901760
        %632 = vmatpush1.msra.mxu0 %v631
        %633 = vmatprep.subr.mxu0 0.0
        %v634 = vand.u32 %v497, 4294901760
        %v635 = vsub.f32 %v497, %v634
        %v636 = vand.u32 %v635, 4294901760
        %v637 = vsub.f32 %v635, %v636
        %v638 = vand.u32 %v637, 4294901760
        %639 = vmatpush1.msra.mxu0 %v638
        %640 = vmatprep.subr.mxu0 0.0
        %v641 = vand.u32 %v496, 4294901760
        %v642 = vsub.f32 %v496, %v641
        %v643 = vand.u32 %v642, 4294901760
        %v644 = vsub.f32 %v642, %v643
        %v645 = vand.u32 %v644, 4294901760
        %646 = vmatpush1.msra.mxu0 %v645
        %647 = vmatprep.subr.mxu0 0.0
        %v648 = vand.u32 %v495, 4294901760
        %v649 = vsub.f32 %v495, %v648
        %v650 = vand.u32 %v649, 4294901760
        %v651 = vsub.f32 %v649, %v650
        %v652 = vand.u32 %v651, 4294901760
        %653 = vmatpush1.msra.mxu0 %v652
        %654 = vmatprep.subr.mxu0 0.0
        %v655 = vand.u32 %v494, 4294901760
        %v656 = vsub.f32 %v494, %v655
        %v657 = vand.u32 %v656, 4294901760
        %v658 = vsub.f32 %v656, %v657
        %v659 = vand.u32 %v658, 4294901760
        %660 = vmatpush1.msra.mxu0 %v659
        %661 = vmatprep.subr.mxu0 0.0
        %v662 = vand.u32 %v493, 4294901760
        %v663 = vsub.f32 %v493, %v662
        %v664 = vand.u32 %v663, 4294901760
        %v665 = vsub.f32 %v663, %v664
        %v666 = vand.u32 %v665, 4294901760
        %667 = vmatpush1.msra.mxu0 %v666
        %668 = vmatprep.subr.mxu0 0.0
        %v669 = vand.u32 %v492, 4294901760
        %v670 = vsub.f32 %v492, %v669
        %v671 = vand.u32 %v670, 4294901760
        %v672 = vsub.f32 %v670, %v671
        %v673 = vand.u32 %v672, 4294901760
        %674 = vmatpush1.msra.mxu0 %v673
        %675 = vmatprep.subr.mxu0 0.0
        %v676 = vand.u32 %v491, 4294901760
        %v677 = vsub.f32 %v491, %v676
        %v678 = vand.u32 %v677, 4294901760
        %v679 = vsub.f32 %v677, %v678
        %v680 = vand.u32 %v679, 4294901760
        %681 = vmatpush1.msra.mxu0 %v680
        %682 = vmatprep.subr.mxu0 0.0
        %v683 = vand.u32 %v490, 4294901760
        %v684 = vsub.f32 %v490, %v683
        %v685 = vand.u32 %v684, 4294901760
        %v686 = vsub.f32 %v684, %v685
        %v687 = vand.u32 %v686, 4294901760
        %688 = vmatpush1.msra.mxu0 %v687
        %689 = vmatprep.subr.mxu0 0.0
        %v690 = vand.u32 %v489, 4294901760
        %v691 = vsub.f32 %v489, %v690
        %v692 = vand.u32 %v691, 4294901760
        %v693 = vsub.f32 %v691, %v692
        %v694 = vand.u32 %v693, 4294901760
        %695 = vmatpush1.msra.mxu0 %v694
        %696 = vmatprep.subr.mxu0 0.0
        %v697 = vand.u32 %v488, 4294901760
        %v698 = vsub.f32 %v488, %v697
        %v699 = vand.u32 %v698, 4294901760
        %v700 = vsub.f32 %v698, %v699
        %v701 = vand.u32 %v700, 4294901760
        %702 = vmatpush1.msra.mxu0 %v701
        %703 = vmatprep.subr.mxu0 0.0
        %v704 = vand.u32 %v487, 4294901760
        %v705 = vsub.f32 %v487, %v704
        %v706 = vand.u32 %v705, 4294901760
        %v707 = vsub.f32 %v705, %v706
        %v708 = vand.u32 %v707, 4294901760
        %709 = vmatpush1.msra.mxu0 %v708
        %710 = vmatprep.subr.mxu0 0.0
        %v711 = vand.u32 %v486, 4294901760
        %v712 = vsub.f32 %v486, %v711
        %v713 = vand.u32 %v712, 4294901760
        %v714 = vsub.f32 %v712, %v713
        %v715 = vand.u32 %v714, 4294901760
        %716 = vmatpush1.msra.mxu0 %v715
        %717 = vmatprep.subr.mxu0 0.0
        %v718 = vand.u32 %v485, 4294901760
        %v719 = vsub.f32 %v485, %v718
        %v720 = vand.u32 %v719, 4294901760
        %v721 = vsub.f32 %v719, %v720
        %v722 = vand.u32 %v721, 4294901760
        %723 = vmatpush1.msra.mxu0 %v722
        %724 = vmatprep.subr.mxu0 0.0
        %v725 = vand.u32 %v484, 4294901760
        %v726 = vsub.f32 %v484, %v725
        %v727 = vand.u32 %v726, 4294901760
        %v728 = vsub.f32 %v726, %v727
        %v729 = vand.u32 %v728, 4294901760
        %730 = vmatpush1.msra.mxu0 %v729
        %731 = vmatprep.subr.mxu0 0.0
        %732 = vmatpush2.msra.mxu0 0.0
        %733 = vmatprep.subr.mxu0 0.0
        %734 = vmatpush2.msra.mxu0 0.0
        %735 = vmatprep.subr.mxu0 0.0
        %736 = vmatpush2.msra.mxu0 0.0
        %737 = vmatprep.subr.mxu0 0.0
        %738 = vmatpush2.msra.mxu0 0.0
        %739 = vmatprep.subr.mxu0 0.0
        %740 = vmatpush2.msra.mxu0 0.0
        %741 = vmatprep.subr.mxu0 0.0
        %742 = vmatpush2.msra.mxu0 0.0
        %743 = vmatprep.subr.mxu0 0.0
        %744 = vmatpush2.msra.mxu0 0.0
        %745 = vmatprep.subr.mxu0 0.0
        %746 = vmatpush2.msra.mxu0 0.0
        %747 = vmatprep.subr.mxu0 0.0
        %748 = vmatpush2.msra.mxu0 0.0
        %749 = vmatprep.subr.mxu0 0.0
        %750 = vmatpush2.msra.mxu0 0.0
        %751 = vmatprep.subr.mxu0 0.0
        %752 = vmatpush2.msra.mxu0 0.0
        %753 = vmatprep.subr.mxu0 0.0
        %754 = vmatpush2.msra.mxu0 0.0
        %755 = vmatprep.subr.mxu0 0.0
        %756 = vmatpush2.msra.mxu0 0.0
        %757 = vmatprep.subr.mxu0 0.0
        %758 = vmatpush2.msra.mxu0 0.0
        %759 = vmatprep.subr.mxu0 0.0
        %760 = vmatpush2.msra.mxu0 0.0
        %761 = vmatprep.subr.mxu0 0.0
        %762 = vmatpush2.msra.mxu0 0.0
        %763 = vmatprep.mubr.f32.mxu0 0.0
        %v764 = vand.u32 %v520, 4294901760
        %765 = vmatmul.mubr.f32.gmra.mxu0 %v764
        %v766 = vpop.f32.mrf.mxu0
        %v767 = vadd.f32 %v616, %v766
        %v768 = vpop.f32.mrf.mxu0
        %769 = vdwg.mxu0
        %770 = vmatprep.subr.mxu0 0.0
        %v771 = vand.u32 %v499, 4294901760
        %v772 = vsub.f32 %v499, %v771
        %773 = vmatpush1.msra.mxu0 %v772
        %774 = vmatprep.subr.mxu0 0.0
        %v775 = vand.u32 %v498, 4294901760
        %v776 = vsub.f32 %v498, %v775
        %777 = vmatpush1.msra.mxu0 %v776
        %778 = vmatprep.subr.mxu0 0.0
        %v779 = vand.u32 %v497, 4294901760
        %v780 = vsub.f32 %v497, %v779
        %781 = vmatpush1.msra.mxu0 %v780
        %782 = vmatprep.subr.mxu0 0.0
        %v783 = vand.u32 %v496, 4294901760
        %v784 = vsub.f32 %v496, %v783
        %785 = vmatpush1.msra.mxu0 %v784
        %786 = vmatprep.subr.mxu0 0.0
        %v787 = vand.u32 %v495, 4294901760
        %v788 = vsub.f32 %v495, %v787
        %789 = vmatpush1.msra.mxu0 %v788
        %790 = vmatprep.subr.mxu0 0.0
        %v791 = vand.u32 %v494, 4294901760
        %v792 = vsub.f32 %v494, %v791
        %793 = vmatpush1.msra.mxu0 %v792
        %794 = vmatprep.subr.mxu0 0.0
        %v795 = vand.u32 %v493, 4294901760
        %v796 = vsub.f32 %v493, %v795
        %797 = vmatpush1.msra.mxu0 %v796
        %798 = vmatprep.subr.mxu0 0.0
        %v799 = vand.u32 %v492, 4294901760
        %v800 = vsub.f32 %v492, %v799
        %801 = vmatpush1.msra.mxu0 %v800
        %802 = vmatprep.subr.mxu0 0.0
        %v803 = vand.u32 %v491, 4294901760
        %v804 = vsub.f32 %v491, %v803
        %805 = vmatpush1.msra.mxu0 %v804
        %806 = vmatprep.subr.mxu0 0.0
        %v807 = vand.u32 %v490, 4294901760
        %v808 = vsub.f32 %v490, %v807
        %809 = vmatpush1.msra.mxu0 %v808
        %810 = vmatprep.subr.mxu0 0.0
        %v811 = vand.u32 %v489, 4294901760
        %v812 = vsub.f32 %v489, %v811
        %813 = vmatpush1.msra.mxu0 %v812
        %814 = vmatprep.subr.mxu0 0.0
        %v815 = vand.u32 %v488, 4294901760
        %v816 = vsub.f32 %v488, %v815
        %817 = vmatpush1.msra.mxu0 %v816
        %818 = vmatprep.subr.mxu0 0.0
        %v819 = vand.u32 %v487, 4294901760
        %v820 = vsub.f32 %v487, %v819
        %821 = vmatpush1.msra.mxu0 %v820
        %822 = vmatprep.subr.mxu0 0.0
        %v823 = vand.u32 %v486, 4294901760
        %v824 = vsub.f32 %v486, %v823
        %825 = vmatpush1.msra.mxu0 %v824
        %826 = vmatprep.subr.mxu0 0.0
        %v827 = vand.u32 %v485, 4294901760
        %v828 = vsub.f32 %v485, %v827
        %829 = vmatpush1.msra.mxu0 %v828
        %830 = vmatprep.subr.mxu0 0.0
        %v831 = vand.u32 %v484, 4294901760
        %v832 = vsub.f32 %v484, %v831
        %833 = vmatpush1.msra.mxu0 %v832
        %834 = vmatprep.subr.mxu0 0.0
        %835 = vmatpush2.msra.mxu0 0.0
        %836 = vmatprep.subr.mxu0 0.0
        %837 = vmatpush2.msra.mxu0 0.0
        %838 = vmatprep.subr.mxu0 0.0
        %839 = vmatpush2.msra.mxu0 0.0
        %840 = vmatprep.subr.mxu0 0.0
        %841 = vmatpush2.msra.mxu0 0.0
        %842 = vmatprep.subr.mxu0 0.0
        %843 = vmatpush2.msra.mxu0 0.0
        %844 = vmatprep.subr.mxu0 0.0
        %845 = vmatpush2.msra.mxu0 0.0
        %846 = vmatprep.subr.mxu0 0.0
        %847 = vmatpush2.msra.mxu0 0.0
        %848 = vmatprep.subr.mxu0 0.0
        %849 = vmatpush2.msra.mxu0 0.0
        %850 = vmatprep.subr.mxu0 0.0
        %851 = vmatpush2.msra.mxu0 0.0
        %852 = vmatprep.subr.mxu0 0.0
        %853 = vmatpush2.msra.mxu0 0.0
        %854 = vmatprep.subr.mxu0 0.0
        %855 = vmatpush2.msra.mxu0 0.0
        %856 = vmatprep.subr.mxu0 0.0
        %857 = vmatpush2.msra.mxu0 0.0
        %858 = vmatprep.subr.mxu0 0.0
        %859 = vmatpush2.msra.mxu0 0.0
        %860 = vmatprep.subr.mxu0 0.0
        %861 = vmatpush2.msra.mxu0 0.0
        %862 = vmatprep.subr.mxu0 0.0
        %863 = vmatpush2.msra.mxu0 0.0
        %864 = vmatprep.subr.mxu0 0.0
        %865 = vmatpush2.msra.mxu0 0.0
        %866 = vmatprep.mubr.f32.mxu0 0.0
        %v867 = vand.u32 %v520, 4294901760
        %v868 = vsub.f32 %v520, %v867
        %869 = vmatmul.mubr.f32.gmra.mxu0 %v868
        %v870 = vpop.f32.mrf.mxu0
        %v871 = vadd.f32 %v767, %v870
        %v872 = vpop.f32.mrf.mxu0
        %873 = vdwg.mxu0
        %874 = vmatprep.subr.mxu0 0.0
        %v875 = vand.u32 %v499, 4294901760
        %876 = vmatpush1.msra.mxu0 %v875
        %877 = vmatprep.subr.mxu0 0.0
        %v878 = vand.u32 %v498, 4294901760
        %879 = vmatpush1.msra.mxu0 %v878
        %880 = vmatprep.subr.mxu0 0.0
        %v881 = vand.u32 %v497, 4294901760
        %882 = vmatpush1.msra.mxu0 %v881
        %883 = vmatprep.subr.mxu0 0.0
        %v884 = vand.u32 %v496, 4294901760
        %885 = vmatpush1.msra.mxu0 %v884
        %886 = vmatprep.subr.mxu0 0.0
        %v887 = vand.u32 %v495, 4294901760
        %888 = vmatpush1.msra.mxu0 %v887
        %889 = vmatprep.subr.mxu0 0.0
        %v890 = vand.u32 %v494, 4294901760
        %891 = vmatpush1.msra.mxu0 %v890
        %892 = vmatprep.subr.mxu0 0.0
        %v893 = vand.u32 %v493, 4294901760
        %894 = vmatpush1.msra.mxu0 %v893
        %895 = vmatprep.subr.mxu0 0.0
        %v896 = vand.u32 %v492, 4294901760
        %897 = vmatpush1.msra.mxu0 %v896
        %898 = vmatprep.subr.mxu0 0.0
        %v899 = vand.u32 %v491, 4294901760
        %900 = vmatpush1.msra.mxu0 %v899
        %901 = vmatprep.subr.mxu0 0.0
        %v902 = vand.u32 %v490, 4294901760
        %903 = vmatpush1.msra.mxu0 %v902
        %904 = vmatprep.subr.mxu0 0.0
        %v905 = vand.u32 %v489, 4294901760
        %906 = vmatpush1.msra.mxu0 %v905
        %907 = vmatprep.subr.mxu0 0.0
        %v908 = vand.u32 %v488, 4294901760
        %909 = vmatpush1.msra.mxu0 %v908
        %910 = vmatprep.subr.mxu0 0.0
        %v911 = vand.u32 %v487, 4294901760
        %912 = vmatpush1.msra.mxu0 %v911
        %913 = vmatprep.subr.mxu0 0.0
        %v914 = vand.u32 %v486, 4294901760
        %915 = vmatpush1.msra.mxu0 %v914
        %916 = vmatprep.subr.mxu0 0.0
        %v917 = vand.u32 %v485, 4294901760
        %918 = vmatpush1.msra.mxu0 %v917
        %919 = vmatprep.subr.mxu0 0.0
        %v920 = vand.u32 %v484, 4294901760
        %921 = vmatpush1.msra.mxu0 %v920
        %922 = vmatprep.subr.mxu0 0.0
        %923 = vmatpush2.msra.mxu0 0.0
        %924 = vmatprep.subr.mxu0 0.0
        %925 = vmatpush2.msra.mxu0 0.0
        %926 = vmatprep.subr.mxu0 0.0
        %927 = vmatpush2.msra.mxu0 0.0
        %928 = vmatprep.subr.mxu0 0.0
        %929 = vmatpush2.msra.mxu0 0.0
        %930 = vmatprep.subr.mxu0 0.0
        %931 = vmatpush2.msra.mxu0 0.0
        %932 = vmatprep.subr.mxu0 0.0
        %933 = vmatpush2.msra.mxu0 0.0
        %934 = vmatprep.subr.mxu0 0.0
        %935 = vmatpush2.msra.mxu0 0.0
        %936 = vmatprep.subr.mxu0 0.0
        %937 = vmatpush2.msra.mxu0 0.0
        %938 = vmatprep.subr.mxu0 0.0
        %939 = vmatpush2.msra.mxu0 0.0
        %940 = vmatprep.subr.mxu0 0.0
        %941 = vmatpush2.msra.mxu0 0.0
        %942 = vmatprep.subr.mxu0 0.0
        %943 = vmatpush2.msra.mxu0 0.0
        %944 = vmatprep.subr.mxu0 0.0
        %945 = vmatpush2.msra.mxu0 0.0
        %946 = vmatprep.subr.mxu0 0.0
        %947 = vmatpush2.msra.mxu0 0.0
        %948 = vmatprep.subr.mxu0 0.0
        %949 = vmatpush2.msra.mxu0 0.0
        %950 = vmatprep.subr.mxu0 0.0
        %951 = vmatpush2.msra.mxu0 0.0
        %952 = vmatprep.subr.mxu0 0.0
        %953 = vmatpush2.msra.mxu0 0.0
        %954 = vmatprep.mubr.f32.mxu0 0.0
        %v955 = vand.u32 %v520, 4294901760
        %v956 = vsub.f32 %v520, %v955
        %v957 = vand.u32 %v956, 4294901760
        %958 = vmatmul.mubr.f32.gmra.mxu0 %v957
        %v959 = vpop.f32.mrf.mxu0
        %v960 = vadd.f32 %v871, %v959
        %v961 = vpop.f32.mrf.mxu0
        %962 = vdwg.mxu0
        %963 = vmatprep.subr.mxu0 0.0
        %v964 = vand.u32 %v499, 4294901760
        %v965 = vsub.f32 %v499, %v964
        %v966 = vand.u32 %v965, 4294901760
        %967 = vmatpush1.msra.mxu0 %v966
        %968 = vmatprep.subr.mxu0 0.0
        %v969 = vand.u32 %v498, 4294901760
        %v970 = vsub.f32 %v498, %v969
        %v971 = vand.u32 %v970, 4294901760
        %972 = vmatpush1.msra.mxu0 %v971
        %973 = vmatprep.subr.mxu0 0.0
        %v974 = vand.u32 %v497, 4294901760
        %v975 = vsub.f32 %v497, %v974
        %v976 = vand.u32 %v975, 4294901760
        %977 = vmatpush1.msra.mxu0 %v976
        %978 = vmatprep.subr.mxu0 0.0
        %v979 = vand.u32 %v496, 4294901760
        %v980 = vsub.f32 %v496, %v979
        %v981 = vand.u32 %v980, 4294901760
        %982 = vmatpush1.msra.mxu0 %v981
        %983 = vmatprep.subr.mxu0 0.0
        %v984 = vand.u32 %v495, 4294901760
        %v985 = vsub.f32 %v495, %v984
        %v986 = vand.u32 %v985, 4294901760
        %987 = vmatpush1.msra.mxu0 %v986
        %988 = vmatprep.subr.mxu0 0.0
        %v989 = vand.u32 %v494, 4294901760
        %v990 = vsub.f32 %v494, %v989
        %v991 = vand.u32 %v990, 4294901760
        %992 = vmatpush1.msra.mxu0 %v991
        %993 = vmatprep.subr.mxu0 0.0
        %v994 = vand.u32 %v493, 4294901760
        %v995 = vsub.f32 %v493, %v994
        %v996 = vand.u32 %v995, 4294901760
        %997 = vmatpush1.msra.mxu0 %v996
        %998 = vmatprep.subr.mxu0 0.0
        %v999 = vand.u32 %v492, 4294901760
        %v1000 = vsub.f32 %v492, %v999
        %v1001 = vand.u32 %v1000, 4294901760
        %1002 = vmatpush1.msra.mxu0 %v1001
        %1003 = vmatprep.subr.mxu0 0.0
        %v1004 = vand.u32 %v491, 4294901760
        %v1005 = vsub.f32 %v491, %v1004
        %v1006 = vand.u32 %v1005, 4294901760
        %1007 = vmatpush1.msra.mxu0 %v1006
        %1008 = vmatprep.subr.mxu0 0.0
        %v1009 = vand.u32 %v490, 4294901760
        %v1010 = vsub.f32 %v490, %v1009
        %v1011 = vand.u32 %v1010, 4294901760
        %1012 = vmatpush1.msra.mxu0 %v1011
        %1013 = vmatprep.subr.mxu0 0.0
        %v1014 = vand.u32 %v489, 4294901760
        %v1015 = vsub.f32 %v489, %v1014
        %v1016 = vand.u32 %v1015, 4294901760
        %1017 = vmatpush1.msra.mxu0 %v1016
        %1018 = vmatprep.subr.mxu0 0.0
        %v1019 = vand.u32 %v488, 4294901760
        %v1020 = vsub.f32 %v488, %v1019
        %v1021 = vand.u32 %v1020, 4294901760
        %1022 = vmatpush1.msra.mxu0 %v1021
        %1023 = vmatprep.subr.mxu0 0.0
        %v1024 = vand.u32 %v487, 4294901760
        %v1025 = vsub.f32 %v487, %v1024
        %v1026 = vand.u32 %v1025, 4294901760
        %1027 = vmatpush1.msra.mxu0 %v1026
        %1028 = vmatprep.subr.mxu0 0.0
        %v1029 = vand.u32 %v486, 4294901760
        %v1030 = vsub.f32 %v486, %v1029
        %v1031 = vand.u32 %v1030, 4294901760
        %1032 = vmatpush1.msra.mxu0 %v1031
        %1033 = vmatprep.subr.mxu0 0.0
        %v1034 = vand.u32 %v485, 4294901760
        %v1035 = vsub.f32 %v485, %v1034
        %v1036 = vand.u32 %v1035, 4294901760
        %1037 = vmatpush1.msra.mxu0 %v1036
        %1038 = vmatprep.subr.mxu0 0.0
        %v1039 = vand.u32 %v484, 4294901760
        %v1040 = vsub.f32 %v484, %v1039
        %v1041 = vand.u32 %v1040, 4294901760
        %1042 = vmatpush1.msra.mxu0 %v1041
        %1043 = vmatprep.subr.mxu0 0.0
        %1044 = vmatpush2.msra.mxu0 0.0
        %1045 = vmatprep.subr.mxu0 0.0
        %1046 = vmatpush2.msra.mxu0 0.0
        %1047 = vmatprep.subr.mxu0 0.0
        %1048 = vmatpush2.msra.mxu0 0.0
        %1049 = vmatprep.subr.mxu0 0.0
        %1050 = vmatpush2.msra.mxu0 0.0
        %1051 = vmatprep.subr.mxu0 0.0
        %1052 = vmatpush2.msra.mxu0 0.0
        %1053 = vmatprep.subr.mxu0 0.0
        %1054 = vmatpush2.msra.mxu0 0.0
        %1055 = vmatprep.subr.mxu0 0.0
        %1056 = vmatpush2.msra.mxu0 0.0
        %1057 = vmatprep.subr.mxu0 0.0
        %1058 = vmatpush2.msra.mxu0 0.0
        %1059 = vmatprep.subr.mxu0 0.0
        %1060 = vmatpush2.msra.mxu0 0.0
        %1061 = vmatprep.subr.mxu0 0.0
        %1062 = vmatpush2.msra.mxu0 0.0
        %1063 = vmatprep.subr.mxu0 0.0
        %1064 = vmatpush2.msra.mxu0 0.0
        %1065 = vmatprep.subr.mxu0 0.0
        %1066 = vmatpush2.msra.mxu0 0.0
        %1067 = vmatprep.subr.mxu0 0.0
        %1068 = vmatpush2.msra.mxu0 0.0
        %1069 = vmatprep.subr.mxu0 0.0
        %1070 = vmatpush2.msra.mxu0 0.0
        %1071 = vmatprep.subr.mxu0 0.0
        %1072 = vmatpush2.msra.mxu0 0.0
        %1073 = vmatprep.subr.mxu0 0.0
        %1074 = vmatpush2.msra.mxu0 0.0
        %1075 = vmatprep.mubr.f32.mxu0 0.0
        %v1076 = vand.u32 %v520, 4294901760
        %1077 = vmatmul.mubr.f32.gmra.mxu0 %v1076
        %v1078 = vpop.f32.mrf.mxu0
        %v1079 = vadd.f32 %v960, %v1078
        %v1080 = vpop.f32.mrf.mxu0
        %1081 = vdwg.mxu0
        %1082 = vmatprep.subr.mxu0 0.0
        %v1083 = vand.u32 %v499, 4294901760
        %1084 = vmatpush1.msra.mxu0 %v1083
        %1085 = vmatprep.subr.mxu0 0.0
        %v1086 = vand.u32 %v498, 4294901760
        %1087 = vmatpush1.msra.mxu0 %v1086
        %1088 = vmatprep.subr.mxu0 0.0
        %v1089 = vand.u32 %v497, 4294901760
        %1090 = vmatpush1.msra.mxu0 %v1089
        %1091 = vmatprep.subr.mxu0 0.0
        %v1092 = vand.u32 %v496, 4294901760
        %1093 = vmatpush1.msra.mxu0 %v1092
        %1094 = vmatprep.subr.mxu0 0.0
        %v1095 = vand.u32 %v495, 4294901760
        %1096 = vmatpush1.msra.mxu0 %v1095
        %1097 = vmatprep.subr.mxu0 0.0
        %v1098 = vand.u32 %v494, 4294901760
        %1099 = vmatpush1.msra.mxu0 %v1098
        %1100 = vmatprep.subr.mxu0 0.0
        %v1101 = vand.u32 %v493, 4294901760
        %1102 = vmatpush1.msra.mxu0 %v1101
        %1103 = vmatprep.subr.mxu0 0.0
        %v1104 = vand.u32 %v492, 4294901760
        %1105 = vmatpush1.msra.mxu0 %v1104
        %1106 = vmatprep.subr.mxu0 0.0
        %v1107 = vand.u32 %v491, 4294901760
        %1108 = vmatpush1.msra.mxu0 %v1107
        %1109 = vmatprep.subr.mxu0 0.0
        %v1110 = vand.u32 %v490, 4294901760
        %1111 = vmatpush1.msra.mxu0 %v1110
        %1112 = vmatprep.subr.mxu0 0.0
        %v1113 = vand.u32 %v489, 4294901760
        %1114 = vmatpush1.msra.mxu0 %v1113
        %1115 = vmatprep.subr.mxu0 0.0
        %v1116 = vand.u32 %v488, 4294901760
        %1117 = vmatpush1.msra.mxu0 %v1116
        %1118 = vmatprep.subr.mxu0 0.0
        %v1119 = vand.u32 %v487, 4294901760
        %1120 = vmatpush1.msra.mxu0 %v1119
        %1121 = vmatprep.subr.mxu0 0.0
        %v1122 = vand.u32 %v486, 4294901760
        %1123 = vmatpush1.msra.mxu0 %v1122
        %1124 = vmatprep.subr.mxu0 0.0
        %v1125 = vand.u32 %v485, 4294901760
        %1126 = vmatpush1.msra.mxu0 %v1125
        %1127 = vmatprep.subr.mxu0 0.0
        %v1128 = vand.u32 %v484, 4294901760
        %1129 = vmatpush1.msra.mxu0 %v1128
        %1130 = vmatprep.subr.mxu0 0.0
        %1131 = vmatpush2.msra.mxu0 0.0
        %1132 = vmatprep.subr.mxu0 0.0
        %1133 = vmatpush2.msra.mxu0 0.0
        %1134 = vmatprep.subr.mxu0 0.0
        %1135 = vmatpush2.msra.mxu0 0.0
        %1136 = vmatprep.subr.mxu0 0.0
        %1137 = vmatpush2.msra.mxu0 0.0
        %1138 = vmatprep.subr.mxu0 0.0
        %1139 = vmatpush2.msra.mxu0 0.0
        %1140 = vmatprep.subr.mxu0 0.0
        %1141 = vmatpush2.msra.mxu0 0.0
        %1142 = vmatprep.subr.mxu0 0.0
        %1143 = vmatpush2.msra.mxu0 0.0
        %1144 = vmatprep.subr.mxu0 0.0
        %1145 = vmatpush2.msra.mxu0 0.0
        %1146 = vmatprep.subr.mxu0 0.0
        %1147 = vmatpush2.msra.mxu0 0.0
        %1148 = vmatprep.subr.mxu0 0.0
        %1149 = vmatpush2.msra.mxu0 0.0
        %1150 = vmatprep.subr.mxu0 0.0
        %1151 = vmatpush2.msra.mxu0 0.0
        %1152 = vmatprep.subr.mxu0 0.0
        %1153 = vmatpush2.msra.mxu0 0.0
        %1154 = vmatprep.subr.mxu0 0.0
        %1155 = vmatpush2.msra.mxu0 0.0
        %1156 = vmatprep.subr.mxu0 0.0
        %1157 = vmatpush2.msra.mxu0 0.0
        %1158 = vmatprep.subr.mxu0 0.0
        %1159 = vmatpush2.msra.mxu0 0.0
        %1160 = vmatprep.subr.mxu0 0.0
        %1161 = vmatpush2.msra.mxu0 0.0
        %1162 = vmatprep.mubr.f32.mxu0 0.0
        %v1163 = vand.u32 %v520, 4294901760
        %1164 = vmatmul.mubr.f32.gmra.mxu0 %v1163
        %v1165 = vpop.f32.mrf.mxu0
        %v1166 = vadd.f32 %v1079, %v1165
        %v1167 = vpop.f32.mrf.mxu0
        %1168 = vdwg.mxu0
        %v1169 = vmul.f32 %v432, %v520
        %v1170 = vmul.f32 %v433, %v520
        %v1171 = vmul.f32 %v434, %v520
        %v1172 = vmul.f32 %v435, %v520
        %v1173 = vmul.f32 %v436, %v520
        %v1174 = vmul.f32 %v437, %v520
        %v1175 = vmul.f32 %v438, %v520
        %v1176 = vmul.f32 %v439, %v520
        %v1177 = vmul.f32 %v440, %v520
        %v1178 = vmul.f32 %v441, %v520
        %v1179 = vmul.f32 %v442, %v520
        %v1180 = vmul.f32 %v443, %v520
        %v1181 = vmul.f32 %v444, %v520
        %v1182 = vmul.f32 %v445, %v520
        %v1183 = vmul.f32 %v446, %v520
        %v1184 = vmul.f32 %v447, %v520
        %1185 = vadd.xlane.f32.xlu0 %v1169
        %v1186 = vpop.xlane.xlu0 %1185
        %1187 = vadd.xlane.f32.xlu0 %v1170
        %v1188 = vpop.xlane.xlu0 %1187
        %1189 = vadd.xlane.f32.xlu0 %v1171
        %v1190 = vpop.xlane.xlu0 %1189
        %1191 = vadd.xlane.f32.xlu0 %v1172
        %v1192 = vpop.xlane.xlu0 %1191
        %1193 = vadd.xlane.f32.xlu0 %v1173
        %v1194 = vpop.xlane.xlu0 %1193
        %1195 = vadd.xlane.f32.xlu0 %v1174
        %v1196 = vpop.xlane.xlu0 %1195
        %1197 = vadd.xlane.f32.xlu0 %v1175
        %v1198 = vpop.xlane.xlu0 %1197
        %1199 = vadd.xlane.f32.xlu0 %v1176
        %v1200 = vpop.xlane.xlu0 %1199
        %1201 = vadd.xlane.f32.xlu0 %v1177
        %v1202 = vpop.xlane.xlu0 %1201
        %1203 = vadd.xlane.f32.xlu0 %v1178
        %v1204 = vpop.xlane.xlu0 %1203
        %1205 = vadd.xlane.f32.xlu0 %v1179
        %v1206 = vpop.xlane.xlu0 %1205
        %1207 = vadd.xlane.f32.xlu0 %v1180
        %v1208 = vpop.xlane.xlu0 %1207
        %1209 = vadd.xlane.f32.xlu0 %v1181
        %v1210 = vpop.xlane.xlu0 %1209
        %1211 = vadd.xlane.f32.xlu0 %v1182
        %v1212 = vpop.xlane.xlu0 %1211
        %1213 = vadd.xlane.f32.xlu0 %v1183
        %v1214 = vpop.xlane.xlu0 %1213
        %1215 = vadd.xlane.f32.xlu0 %v1184
        %v1216 = vpop.xlane.xlu0 %1215
        %v1218 = vrot.slane %v204, 7
        %vm1220 = vcmask 1040384
        %v1221 = vsel %vm1220, %v1166, %v1218
        %vm1222 = vcmp.ge.s32.totalorder %v203, 0
        %v1223 = vsel %vm1222, 1, 0
        %v1224 = vcvt.s32.f32 %v1223
        %v1225 = vsel %vm1220, %v1224, 0.0
        %1226 = vadd.xlane.f32.xlu0 %v1225
        %v1227 = vpop.xlane.xlu0 %1226
        %v1228 = vmax.f32 %v1227, 1.0
        %vm1229 = vcmask 1043456
        %v1230 = vsel %vm1229, %v1221, 0.0
        %1231 = vadd.xlane.f32.xlu0 %v1230
        %v1232 = vpop.xlane.xlu0 %1231
        %v1233 = vlaneseq
        %v1234 = vshrl.u32 %v1233, 7
        %v1235 = vsub.s32 0, %v1234
        %v1236 = vrot.slane %v1228, %v1235
        %v1237 = vrcp.pop %v1236
        %v1238 = vmul.f32 %v1232, %v1237
        %v1239 = vsub.f32 %v1221, %v1238
        %v1240 = vmul.f32 %v1239, %v1239
        %v1241 = vlaneseq
        %v1242 = vshrl.u32 %v1241, 7
        %v1243 = vsub.s32 0, %v1242
        %v1244 = vrot.slane %v203, %v1243
        %vm1245 = vcmp.eq.s32.totalorder %v258, %v1244
        %vm1246 = vcmp.eq.s32.totalorder %v261, %v1244
        %vm1247 = vcmp.eq.s32.totalorder %v264, %v1244
        %vm1248 = vcmp.eq.s32.totalorder %v267, %v1244
        %vm1249 = vcmp.eq.s32.totalorder %v270, %v1244
        %vm1250 = vcmp.eq.s32.totalorder %v273, %v1244
        %vm1251 = vcmp.eq.s32.totalorder %v276, %v1244
        %vm1252 = vcmp.eq.s32.totalorder %v279, %v1244
        %vm1253 = vcmp.eq.s32.totalorder %v282, %v1244
        %vm1254 = vcmp.eq.s32.totalorder %v285, %v1244
        %vm1255 = vcmp.eq.s32.totalorder %v288, %v1244
        %vm1256 = vcmp.eq.s32.totalorder %v291, %v1244
        %vm1257 = vcmp.eq.s32.totalorder %v294, %v1244
        %vm1258 = vcmp.eq.s32.totalorder %v297, %v1244
        %vm1259 = vcmp.eq.s32.totalorder %v300, %v1244
        %vm1260 = vcmp.eq.s32.totalorder %v303, %v1244
        %v1261 = vlaneseq
        %v1262 = vshrl.u32 %v1261, 7
        %v1263 = vsub.s32 0, %v1262
        %v1264 = vrot.slane %v1221, %v1263
        %vm1265 = vcmp.eq.f32.partialorder %v1186, %v1264
        %vm1266 = vcmp.eq.f32.partialorder %v1188, %v1264
        %vm1267 = vcmp.eq.f32.partialorder %v1190, %v1264
        %vm1268 = vcmp.eq.f32.partialorder %v1192, %v1264
        %vm1269 = vcmp.eq.f32.partialorder %v1194, %v1264
        %vm1270 = vcmp.eq.f32.partialorder %v1196, %v1264
        %vm1271 = vcmp.eq.f32.partialorder %v1198, %v1264
        %vm1272 = vcmp.eq.f32.partialorder %v1200, %v1264
        %vm1273 = vcmp.eq.f32.partialorder %v1202, %v1264
        %vm1274 = vcmp.eq.f32.partialorder %v1204, %v1264
        %vm1275 = vcmp.eq.f32.partialorder %v1206, %v1264
        %vm1276 = vcmp.eq.f32.partialorder %v1208, %v1264
        %vm1277 = vcmp.eq.f32.partialorder %v1210, %v1264
        %vm1278 = vcmp.eq.f32.partialorder %v1212, %v1264
        %vm1279 = vcmp.eq.f32.partialorder %v1214, %v1264
        %vm1280 = vcmp.eq.f32.partialorder %v1216, %v1264
        %vm1281 = vmand %vm1245, %vm1265
        %vm1282 = vmand %vm1246, %vm1266
        %vm1283 = vmand %vm1247, %vm1267
        %vm1284 = vmand %vm1248, %vm1268
        %vm1285 = vmand %vm1249, %vm1269
        %vm1286 = vmand %vm1250, %vm1270
        %vm1287 = vmand %vm1251, %vm1271
        %vm1288 = vmand %vm1252, %vm1272
        %vm1289 = vmand %vm1253, %vm1273
        %vm1290 = vmand %vm1254, %vm1274
        %vm1291 = vmand %vm1255, %vm1275
        %vm1292 = vmand %vm1256, %vm1276
        %vm1293 = vmand %vm1257, %vm1277
        %vm1294 = vmand %vm1258, %vm1278
        %vm1295 = vmand %vm1259, %vm1279
        %vm1296 = vmand %vm1260, %vm1280
        %v1297 = vsel %vm1281, 1, 0
        %v1298 = vsel %vm1282, 1, 0
        %v1299 = vsel %vm1283, 1, 0
        %v1300 = vsel %vm1284, 1, 0
        %v1301 = vsel %vm1285, 1, 0
        %v1302 = vsel %vm1286, 1, 0
        %v1303 = vsel %vm1287, 1, 0
        %v1304 = vsel %vm1288, 1, 0
        %v1305 = vsel %vm1289, 1, 0
        %v1306 = vsel %vm1290, 1, 0
        %v1307 = vsel %vm1291, 1, 0
        %v1308 = vsel %vm1292, 1, 0
        %v1309 = vsel %vm1293, 1, 0
        %v1310 = vsel %vm1294, 1, 0
        %v1311 = vsel %vm1295, 1, 0
        %v1312 = vsel %vm1296, 1, 0
        %v1313 = vcvt.s32.f32 %v1297
        %v1314 = vcvt.s32.f32 %v1298
        %v1315 = vcvt.s32.f32 %v1299
        %v1316 = vcvt.s32.f32 %v1300
        %v1317 = vcvt.s32.f32 %v1301
        %v1318 = vcvt.s32.f32 %v1302
        %v1319 = vcvt.s32.f32 %v1303
        %v1320 = vcvt.s32.f32 %v1304
        %v1321 = vcvt.s32.f32 %v1305
        %v1322 = vcvt.s32.f32 %v1306
        %v1323 = vcvt.s32.f32 %v1307
        %v1324 = vcvt.s32.f32 %v1308
        %v1325 = vcvt.s32.f32 %v1309
        %v1326 = vcvt.s32.f32 %v1310
        %v1327 = vcvt.s32.f32 %v1311
        %v1328 = vcvt.s32.f32 %v1312
        %1329 = vmatprep.subr.mxu0 0.0
        %1330 = vmatpush1.msra.mxu0 %v1328
        %1331 = vmatprep.subr.mxu0 0.0
        %1332 = vmatpush1.msra.mxu0 %v1327
        %1333 = vmatprep.subr.mxu0 0.0
        %1334 = vmatpush1.msra.mxu0 %v1326
        %1335 = vmatprep.subr.mxu0 0.0
        %1336 = vmatpush1.msra.mxu0 %v1325
        %1337 = vmatprep.subr.mxu0 0.0
        %1338 = vmatpush1.msra.mxu0 %v1324
        %1339 = vmatprep.subr.mxu0 0.0
        %1340 = vmatpush1.msra.mxu0 %v1323
        %1341 = vmatprep.subr.mxu0 0.0
        %1342 = vmatpush1.msra.mxu0 %v1322
        %1343 = vmatprep.subr.mxu0 0.0
        %1344 = vmatpush1.msra.mxu0 %v1321
        %1345 = vmatprep.subr.mxu0 0.0
        %1346 = vmatpush1.msra.mxu0 %v1320
        %1347 = vmatprep.subr.mxu0 0.0
        %1348 = vmatpush1.msra.mxu0 %v1319
        %1349 = vmatprep.subr.mxu0 0.0
        %1350 = vmatpush1.msra.mxu0 %v1318
        %1351 = vmatprep.subr.mxu0 0.0
        %1352 = vmatpush1.msra.mxu0 %v1317
        %1353 = vmatprep.subr.mxu0 0.0
        %1354 = vmatpush1.msra.mxu0 %v1316
        %1355 = vmatprep.subr.mxu0 0.0
        %1356 = vmatpush1.msra.mxu0 %v1315
        %1357 = vmatprep.subr.mxu0 0.0
        %1358 = vmatpush1.msra.mxu0 %v1314
        %1359 = vmatprep.subr.mxu0 0.0
        %1360 = vmatpush1.msra.mxu0 %v1313
        %1361 = vmatprep.subr.mxu0 0.0
        %1362 = vmatpush2.msra.mxu0 0.0
        %1363 = vmatprep.subr.mxu0 0.0
        %1364 = vmatpush2.msra.mxu0 0.0
        %1365 = vmatprep.subr.mxu0 0.0
        %1366 = vmatpush2.msra.mxu0 0.0
        %1367 = vmatprep.subr.mxu0 0.0
        %1368 = vmatpush2.msra.mxu0 0.0
        %1369 = vmatprep.subr.mxu0 0.0
        %1370 = vmatpush2.msra.mxu0 0.0
        %1371 = vmatprep.subr.mxu0 0.0
        %1372 = vmatpush2.msra.mxu0 0.0
        %1373 = vmatprep.subr.mxu0 0.0
        %1374 = vmatpush2.msra.mxu0 0.0
        %1375 = vmatprep.subr.mxu0 0.0
        %1376 = vmatpush2.msra.mxu0 0.0
        %1377 = vmatprep.subr.mxu0 0.0
        %1378 = vmatpush2.msra.mxu0 0.0
        %1379 = vmatprep.subr.mxu0 0.0
        %1380 = vmatpush2.msra.mxu0 0.0
        %1381 = vmatprep.subr.mxu0 0.0
        %1382 = vmatpush2.msra.mxu0 0.0
        %1383 = vmatprep.subr.mxu0 0.0
        %1384 = vmatpush2.msra.mxu0 0.0
        %1385 = vmatprep.subr.mxu0 0.0
        %1386 = vmatpush2.msra.mxu0 0.0
        %1387 = vmatprep.subr.mxu0 0.0
        %1388 = vmatpush2.msra.mxu0 0.0
        %1389 = vmatprep.subr.mxu0 0.0
        %1390 = vmatpush2.msra.mxu0 0.0
        %1391 = vmatprep.subr.mxu0 0.0
        %1392 = vmatpush2.msra.mxu0 0.0
        %1393 = vmatprep.mubr.f32.mxu0 0.0
        %1394 = vmatmul.mubr.f32.gmra.mxu0 1.0
        %v1395 = vpop.f32.mrf.mxu0
        %v1396 = vadd.f32 0.0, %v1395
        %v1397 = vpop.f32.mrf.mxu0
        %1398 = vdwg.mxu0
        %v1399 = vlog2.pop %v1396
        %v1400 = vmul.f32 %v1399, 0.6931472
        %v1401 = vmul.f32 %v1400, 1.442695
        %v1402 = vsub.f32 0.0, %v1401
        %v1403 = vsel %vm304, %v1186, -inf
        %v1404 = vsel %vm305, %v1188, -inf
        %v1405 = vsel %vm306, %v1190, -inf
        %v1406 = vsel %vm307, %v1192, -inf
        %v1407 = vsel %vm308, %v1194, -inf
        %v1408 = vsel %vm309, %v1196, -inf
        %v1409 = vsel %vm310, %v1198, -inf
        %v1410 = vsel %vm311, %v1200, -inf
        %v1411 = vsel %vm312, %v1202, -inf
        %v1412 = vsel %vm313, %v1204, -inf
        %v1413 = vsel %vm314, %v1206, -inf
        %v1414 = vsel %vm315, %v1208, -inf
        %v1415 = vsel %vm316, %v1210, -inf
        %v1416 = vsel %vm317, %v1212, -inf
        %v1417 = vsel %vm318, %v1214, -inf
        %v1418 = vsel %vm319, %v1216, -inf
        %v1419 = vmax.f32 %v1403, %v1407
        %v1420 = vmax.f32 %v1404, %v1408
        %v1421 = vmax.f32 %v1405, %v1409
        %v1422 = vmax.f32 %v1406, %v1410
        %v1423 = vmax.f32 %v1419, %v1411
        %v1424 = vmax.f32 %v1420, %v1412
        %v1425 = vmax.f32 %v1421, %v1413
        %v1426 = vmax.f32 %v1422, %v1414
        %v1427 = vmax.f32 %v1423, %v1415
        %v1428 = vmax.f32 %v1424, %v1416
        %v1429 = vmax.f32 %v1425, %v1417
        %v1430 = vmax.f32 %v1426, %v1418
        %v1431 = vmax.f32 %v1427, %v1428
        %v1432 = vmax.f32 %v1429, %v1430
        %v1433 = vmax.f32 %v1431, %v1432
        %v1434 = vrot.slane %v1433, 4
        %v1435 = vmax.f32 %v1433, %v1434
        %v1436 = vrot.slane %v1435, 2
        %v1437 = vmax.f32 %v1435, %v1436
        %v1438 = vrot.slane %v1437, 1
        %v1439 = vmax.f32 %v1437, %v1438
        %v1440 = vsel %vm304, %v1186, inf
        %v1441 = vsel %vm305, %v1188, inf
        %v1442 = vsel %vm306, %v1190, inf
        %v1443 = vsel %vm307, %v1192, inf
        %v1444 = vsel %vm308, %v1194, inf
        %v1445 = vsel %vm309, %v1196, inf
        %v1446 = vsel %vm310, %v1198, inf
        %v1447 = vsel %vm311, %v1200, inf
        %v1448 = vsel %vm312, %v1202, inf
        %v1449 = vsel %vm313, %v1204, inf
        %v1450 = vsel %vm314, %v1206, inf
        %v1451 = vsel %vm315, %v1208, inf
        %v1452 = vsel %vm316, %v1210, inf
        %v1453 = vsel %vm317, %v1212, inf
        %v1454 = vsel %vm318, %v1214, inf
        %v1455 = vsel %vm319, %v1216, inf
        %v1456 = vmin.f32 %v1440, %v1444
        %v1457 = vmin.f32 %v1441, %v1445
        %v1458 = vmin.f32 %v1442, %v1446
        %v1459 = vmin.f32 %v1443, %v1447
        %v1460 = vmin.f32 %v1456, %v1448
        %v1461 = vmin.f32 %v1457, %v1449
        %v1462 = vmin.f32 %v1458, %v1450
        %v1463 = vmin.f32 %v1459, %v1451
        %v1464 = vmin.f32 %v1460, %v1452
        %v1465 = vmin.f32 %v1461, %v1453
        %v1466 = vmin.f32 %v1462, %v1454
        %v1467 = vmin.f32 %v1463, %v1455
        %v1468 = vmin.f32 %v1464, %v1465
        %v1469 = vmin.f32 %v1466, %v1467
        %v1470 = vmin.f32 %v1468, %v1469
        %v1471 = vrot.slane %v1470, 4
        %v1472 = vmin.f32 %v1470, %v1471
        %v1473 = vrot.slane %v1472, 2
        %v1474 = vmin.f32 %v1472, %v1473
        %v1475 = vrot.slane %v1474, 1
        %v1476 = vmin.f32 %v1474, %v1475
        %1478 = vset.pattern.permute.xlu0 2
        %1479 = vperm.xlu0 %1478, %v205
        %v1480 = vpop.permute.xlu0 %1479
        %1483 = vset.pattern.permute.xlu0 2
        %1484 = vperm.xlu0 %1483, %v206
        %v1485 = vpop.permute.xlu0 %1484
        %1488 = vset.pattern.permute.xlu0 2
        %1489 = vperm.xlu0 %1488, %v207
        %v1490 = vpop.permute.xlu0 %1489
        %1493 = vset.pattern.permute.xlu0 2
        %1494 = vperm.xlu0 %1493, %v208
        %v1495 = vpop.permute.xlu0 %1494
        %1498 = vset.pattern.permute.xlu0 2
        %1499 = vperm.xlu0 %1498, %v209
        %v1500 = vpop.permute.xlu0 %1499
        %1503 = vset.pattern.permute.xlu0 2
        %1504 = vperm.xlu0 %1503, %v210
        %v1505 = vpop.permute.xlu0 %1504
        %1508 = vset.pattern.permute.xlu0 2
        %1509 = vperm.xlu0 %1508, %v211
        %v1510 = vpop.permute.xlu0 %1509
        %1513 = vset.pattern.permute.xlu0 2
        %1514 = vperm.xlu0 %1513, %v212
        %v1515 = vpop.permute.xlu0 %1514
        %1518 = vset.pattern.permute.xlu0 2
        %1519 = vperm.xlu0 %1518, %v213
        %v1520 = vpop.permute.xlu0 %1519
        %1523 = vset.pattern.permute.xlu0 2
        %1524 = vperm.xlu0 %1523, %v214
        %v1525 = vpop.permute.xlu0 %1524
        %1528 = vset.pattern.permute.xlu0 2
        %1529 = vperm.xlu0 %1528, %v215
        %v1530 = vpop.permute.xlu0 %1529
        %1533 = vset.pattern.permute.xlu0 2
        %1534 = vperm.xlu0 %1533, %v216
        %v1535 = vpop.permute.xlu0 %1534
        %1538 = vset.pattern.permute.xlu0 2
        %1539 = vperm.xlu0 %1538, %v217
        %v1540 = vpop.permute.xlu0 %1539
        %1543 = vset.pattern.permute.xlu0 2
        %1544 = vperm.xlu0 %1543, %v218
        %v1545 = vpop.permute.xlu0 %1544
        %1548 = vset.pattern.permute.xlu0 2
        %1549 = vperm.xlu0 %1548, %v219
        %v1550 = vpop.permute.xlu0 %1549
        %1553 = vset.pattern.permute.xlu0 2
        %1554 = vperm.xlu0 %1553, %v220
        %v1555 = vpop.permute.xlu0 %1554
        %v1557 = vlaneseq
        %v1558 = vshrl.u32 %v1557, 7
        %v1559 = vsub.s32 1, %v1558
        %v1560 = vrot.slane %v1221, %v1559
        %vm1561 = vcmp.eq.f32.partialorder %v1480, %v1560
        %vm1562 = vcmp.eq.f32.partialorder %v1485, %v1560
        %vm1563 = vcmp.eq.f32.partialorder %v1490, %v1560
        %vm1564 = vcmp.eq.f32.partialorder %v1495, %v1560
        %vm1565 = vcmp.eq.f32.partialorder %v1500, %v1560
        %vm1566 = vcmp.eq.f32.partialorder %v1505, %v1560
        %vm1567 = vcmp.eq.f32.partialorder %v1510, %v1560
        %vm1568 = vcmp.eq.f32.partialorder %v1515, %v1560
        %vm1569 = vcmp.eq.f32.partialorder %v1520, %v1560
        %vm1570 = vcmp.eq.f32.partialorder %v1525, %v1560
        %vm1571 = vcmp.eq.f32.partialorder %v1530, %v1560
        %vm1572 = vcmp.eq.f32.partialorder %v1535, %v1560
        %vm1573 = vcmp.eq.f32.partialorder %v1540, %v1560
        %vm1574 = vcmp.eq.f32.partialorder %v1545, %v1560
        %vm1575 = vcmp.eq.f32.partialorder %v1550, %v1560
        %vm1576 = vcmp.eq.f32.partialorder %v1555, %v1560
        %vm1577 = vmand %vm1245, %vm1561
        %vm1578 = vmand %vm1246, %vm1562
        %vm1579 = vmand %vm1247, %vm1563
        %vm1580 = vmand %vm1248, %vm1564
        %vm1581 = vmand %vm1249, %vm1565
        %vm1582 = vmand %vm1250, %vm1566
        %vm1583 = vmand %vm1251, %vm1567
        %vm1584 = vmand %vm1252, %vm1568
        %vm1585 = vmand %vm1253, %vm1569
        %vm1586 = vmand %vm1254, %vm1570
        %vm1587 = vmand %vm1255, %vm1571
        %vm1588 = vmand %vm1256, %vm1572
        %vm1589 = vmand %vm1257, %vm1573
        %vm1590 = vmand %vm1258, %vm1574
        %vm1591 = vmand %vm1259, %vm1575
        %vm1592 = vmand %vm1260, %vm1576
        %v1593 = vsel %vm1577, 1, 0
        %v1594 = vsel %vm1578, 1, 0
        %v1595 = vsel %vm1579, 1, 0
        %v1596 = vsel %vm1580, 1, 0
        %v1597 = vsel %vm1581, 1, 0
        %v1598 = vsel %vm1582, 1, 0
        %v1599 = vsel %vm1583, 1, 0
        %v1600 = vsel %vm1584, 1, 0
        %v1601 = vsel %vm1585, 1, 0
        %v1602 = vsel %vm1586, 1, 0
        %v1603 = vsel %vm1587, 1, 0
        %v1604 = vsel %vm1588, 1, 0
        %v1605 = vsel %vm1589, 1, 0
        %v1606 = vsel %vm1590, 1, 0
        %v1607 = vsel %vm1591, 1, 0
        %v1608 = vsel %vm1592, 1, 0
        %v1609 = vcvt.s32.f32 %v1593
        %v1610 = vcvt.s32.f32 %v1594
        %v1611 = vcvt.s32.f32 %v1595
        %v1612 = vcvt.s32.f32 %v1596
        %v1613 = vcvt.s32.f32 %v1597
        %v1614 = vcvt.s32.f32 %v1598
        %v1615 = vcvt.s32.f32 %v1599
        %v1616 = vcvt.s32.f32 %v1600
        %v1617 = vcvt.s32.f32 %v1601
        %v1618 = vcvt.s32.f32 %v1602
        %v1619 = vcvt.s32.f32 %v1603
        %v1620 = vcvt.s32.f32 %v1604
        %v1621 = vcvt.s32.f32 %v1605
        %v1622 = vcvt.s32.f32 %v1606
        %v1623 = vcvt.s32.f32 %v1607
        %v1624 = vcvt.s32.f32 %v1608
        %1625 = vmatprep.subr.mxu0 0.0
        %1626 = vmatpush1.msra.mxu0 %v1624
        %1627 = vmatprep.subr.mxu0 0.0
        %1628 = vmatpush1.msra.mxu0 %v1623
        %1629 = vmatprep.subr.mxu0 0.0
        %1630 = vmatpush1.msra.mxu0 %v1622
        %1631 = vmatprep.subr.mxu0 0.0
        %1632 = vmatpush1.msra.mxu0 %v1621
        %1633 = vmatprep.subr.mxu0 0.0
        %1634 = vmatpush1.msra.mxu0 %v1620
        %1635 = vmatprep.subr.mxu0 0.0
        %1636 = vmatpush1.msra.mxu0 %v1619
        %1637 = vmatprep.subr.mxu0 0.0
        %1638 = vmatpush1.msra.mxu0 %v1618
        %1639 = vmatprep.subr.mxu0 0.0
        %1640 = vmatpush1.msra.mxu0 %v1617
        %1641 = vmatprep.subr.mxu0 0.0
        %1642 = vmatpush1.msra.mxu0 %v1616
        %1643 = vmatprep.subr.mxu0 0.0
        %1644 = vmatpush1.msra.mxu0 %v1615
        %1645 = vmatprep.subr.mxu0 0.0
        %1646 = vmatpush1.msra.mxu0 %v1614
        %1647 = vmatprep.subr.mxu0 0.0
        %1648 = vmatpush1.msra.mxu0 %v1613
        %1649 = vmatprep.subr.mxu0 0.0
        %1650 = vmatpush1.msra.mxu0 %v1612
        %1651 = vmatprep.subr.mxu0 0.0
        %1652 = vmatpush1.msra.mxu0 %v1611
        %1653 = vmatprep.subr.mxu0 0.0
        %1654 = vmatpush1.msra.mxu0 %v1610
        %1655 = vmatprep.subr.mxu0 0.0
        %1656 = vmatpush1.msra.mxu0 %v1609
        %1657 = vmatprep.subr.mxu0 0.0
        %1658 = vmatpush2.msra.mxu0 0.0
        %1659 = vmatprep.subr.mxu0 0.0
        %1660 = vmatpush2.msra.mxu0 0.0
        %1661 = vmatprep.subr.mxu0 0.0
        %1662 = vmatpush2.msra.mxu0 0.0
        %1663 = vmatprep.subr.mxu0 0.0
        %1664 = vmatpush2.msra.mxu0 0.0
        %1665 = vmatprep.subr.mxu0 0.0
        %1666 = vmatpush2.msra.mxu0 0.0
        %1667 = vmatprep.subr.mxu0 0.0
        %1668 = vmatpush2.msra.mxu0 0.0
        %1669 = vmatprep.subr.mxu0 0.0
        %1670 = vmatpush2.msra.mxu0 0.0
        %1671 = vmatprep.subr.mxu0 0.0
        %1672 = vmatpush2.msra.mxu0 0.0
        %1673 = vmatprep.subr.mxu0 0.0
        %1674 = vmatpush2.msra.mxu0 0.0
        %1675 = vmatprep.subr.mxu0 0.0
        %1676 = vmatpush2.msra.mxu0 0.0
        %1677 = vmatprep.subr.mxu0 0.0
        %1678 = vmatpush2.msra.mxu0 0.0
        %1679 = vmatprep.subr.mxu0 0.0
        %1680 = vmatpush2.msra.mxu0 0.0
        %1681 = vmatprep.subr.mxu0 0.0
        %1682 = vmatpush2.msra.mxu0 0.0
        %1683 = vmatprep.subr.mxu0 0.0
        %1684 = vmatpush2.msra.mxu0 0.0
        %1685 = vmatprep.subr.mxu0 0.0
        %1686 = vmatpush2.msra.mxu0 0.0
        %1687 = vmatprep.subr.mxu0 0.0
        %1688 = vmatpush2.msra.mxu0 0.0
        %1689 = vmatprep.mubr.f32.mxu0 0.0
        %1690 = vmatmul.mubr.f32.gmra.mxu0 1.0
        %v1691 = vpop.f32.mrf.mxu0
        %v1692 = vadd.f32 0.0, %v1691
        %v1693 = vpop.f32.mrf.mxu0
        %1694 = vdwg.mxu0
        %v1695 = vlog2.pop %v1692
        %v1696 = vmul.f32 %v1695, 0.6931472
        %v1697 = vmul.f32 %v1696, 1.442695
        %v1698 = vsub.f32 0.0, %v1697
        %v1699 = vsel %vm304, %v1480, -inf
        %v1700 = vsel %vm305, %v1485, -inf
        %v1701 = vsel %vm306, %v1490, -inf
        %v1702 = vsel %vm307, %v1495, -inf
        %v1703 = vsel %vm308, %v1500, -inf
        %v1704 = vsel %vm309, %v1505, -inf
        %v1705 = vsel %vm310, %v1510, -inf
        %v1706 = vsel %vm311, %v1515, -inf
        %v1707 = vsel %vm312, %v1520, -inf
        %v1708 = vsel %vm313, %v1525, -inf
        %v1709 = vsel %vm314, %v1530, -inf
        %v1710 = vsel %vm315, %v1535, -inf
        %v1711 = vsel %vm316, %v1540, -inf
        %v1712 = vsel %vm317, %v1545, -inf
        %v1713 = vsel %vm318, %v1550, -inf
        %v1714 = vsel %vm319, %v1555, -inf
        %v1715 = vmax.f32 %v1699, %v1703
        %v1716 = vmax.f32 %v1700, %v1704
        %v1717 = vmax.f32 %v1701, %v1705
        %v1718 = vmax.f32 %v1702, %v1706
        %v1719 = vmax.f32 %v1715, %v1707
        %v1720 = vmax.f32 %v1716, %v1708
        %v1721 = vmax.f32 %v1717, %v1709
        %v1722 = vmax.f32 %v1718, %v1710
        %v1723 = vmax.f32 %v1719, %v1711
        %v1724 = vmax.f32 %v1720, %v1712
        %v1725 = vmax.f32 %v1721, %v1713
        %v1726 = vmax.f32 %v1722, %v1714
        %v1727 = vmax.f32 %v1723, %v1724
        %v1728 = vmax.f32 %v1725, %v1726
        %v1729 = vmax.f32 %v1727, %v1728
        %v1730 = vrot.slane %v1729, 4
        %v1731 = vmax.f32 %v1729, %v1730
        %v1732 = vrot.slane %v1731, 2
        %v1733 = vmax.f32 %v1731, %v1732
        %v1734 = vrot.slane %v1733, 1
        %v1735 = vmax.f32 %v1733, %v1734
        %v1736 = vsel %vm304, %v1480, inf
        %v1737 = vsel %vm305, %v1485, inf
        %v1738 = vsel %vm306, %v1490, inf
        %v1739 = vsel %vm307, %v1495, inf
        %v1740 = vsel %vm308, %v1500, inf
        %v1741 = vsel %vm309, %v1505, inf
        %v1742 = vsel %vm310, %v1510, inf
        %v1743 = vsel %vm311, %v1515, inf
        %v1744 = vsel %vm312, %v1520, inf
        %v1745 = vsel %vm313, %v1525, inf
        %v1746 = vsel %vm314, %v1530, inf
        %v1747 = vsel %vm315, %v1535, inf
        %v1748 = vsel %vm316, %v1540, inf
        %v1749 = vsel %vm317, %v1545, inf
        %v1750 = vsel %vm318, %v1550, inf
        %v1751 = vsel %vm319, %v1555, inf
        %v1752 = vmin.f32 %v1736, %v1740
        %v1753 = vmin.f32 %v1737, %v1741
        %v1754 = vmin.f32 %v1738, %v1742
        %v1755 = vmin.f32 %v1739, %v1743
        %v1756 = vmin.f32 %v1752, %v1744
        %v1757 = vmin.f32 %v1753, %v1745
        %v1758 = vmin.f32 %v1754, %v1746
        %v1759 = vmin.f32 %v1755, %v1747
        %v1760 = vmin.f32 %v1756, %v1748
        %v1761 = vmin.f32 %v1757, %v1749
        %v1762 = vmin.f32 %v1758, %v1750
        %v1763 = vmin.f32 %v1759, %v1751
        %v1764 = vmin.f32 %v1760, %v1761
        %v1765 = vmin.f32 %v1762, %v1763
        %v1766 = vmin.f32 %v1764, %v1765
        %v1767 = vrot.slane %v1766, 4
        %v1768 = vmin.f32 %v1766, %v1767
        %v1769 = vrot.slane %v1768, 2
        %v1770 = vmin.f32 %v1768, %v1769
        %v1771 = vrot.slane %v1770, 1
        %v1772 = vmin.f32 %v1770, %v1771
        %1773 = vset.pattern.permute.xlu0 3
        %1774 = vperm.xlu0 %1773, %v205
        %v1775 = vpop.permute.xlu0 %1774
        %1777 = vset.pattern.permute.xlu0 3
        %1778 = vperm.xlu0 %1777, %v206
        %v1779 = vpop.permute.xlu0 %1778
        %1781 = vset.pattern.permute.xlu0 3
        %1782 = vperm.xlu0 %1781, %v207
        %v1783 = vpop.permute.xlu0 %1782
        %1785 = vset.pattern.permute.xlu0 3
        %1786 = vperm.xlu0 %1785, %v208
        %v1787 = vpop.permute.xlu0 %1786
        %1789 = vset.pattern.permute.xlu0 3
        %1790 = vperm.xlu0 %1789, %v209
        %v1791 = vpop.permute.xlu0 %1790
        %1793 = vset.pattern.permute.xlu0 3
        %1794 = vperm.xlu0 %1793, %v210
        %v1795 = vpop.permute.xlu0 %1794
        %1797 = vset.pattern.permute.xlu0 3
        %1798 = vperm.xlu0 %1797, %v211
        %v1799 = vpop.permute.xlu0 %1798
        %1801 = vset.pattern.permute.xlu0 3
        %1802 = vperm.xlu0 %1801, %v212
        %v1803 = vpop.permute.xlu0 %1802
        %1805 = vset.pattern.permute.xlu0 3
        %1806 = vperm.xlu0 %1805, %v213
        %v1807 = vpop.permute.xlu0 %1806
        %1809 = vset.pattern.permute.xlu0 3
        %1810 = vperm.xlu0 %1809, %v214
        %v1811 = vpop.permute.xlu0 %1810
        %1813 = vset.pattern.permute.xlu0 3
        %1814 = vperm.xlu0 %1813, %v215
        %v1815 = vpop.permute.xlu0 %1814
        %1817 = vset.pattern.permute.xlu0 3
        %1818 = vperm.xlu0 %1817, %v216
        %v1819 = vpop.permute.xlu0 %1818
        %1821 = vset.pattern.permute.xlu0 3
        %1822 = vperm.xlu0 %1821, %v217
        %v1823 = vpop.permute.xlu0 %1822
        %1825 = vset.pattern.permute.xlu0 3
        %1826 = vperm.xlu0 %1825, %v218
        %v1827 = vpop.permute.xlu0 %1826
        %1829 = vset.pattern.permute.xlu0 3
        %1830 = vperm.xlu0 %1829, %v219
        %v1831 = vpop.permute.xlu0 %1830
        %1833 = vset.pattern.permute.xlu0 3
        %1834 = vperm.xlu0 %1833, %v220
        %v1835 = vpop.permute.xlu0 %1834
        %v1837 = vlaneseq
        %v1838 = vshrl.u32 %v1837, 7
        %v1839 = vsub.s32 2, %v1838
        %v1840 = vrot.slane %v1221, %v1839
        %vm1841 = vcmp.eq.f32.partialorder %v1775, %v1840
        %vm1842 = vcmp.eq.f32.partialorder %v1779, %v1840
        %vm1843 = vcmp.eq.f32.partialorder %v1783, %v1840
        %vm1844 = vcmp.eq.f32.partialorder %v1787, %v1840
        %vm1845 = vcmp.eq.f32.partialorder %v1791, %v1840
        %vm1846 = vcmp.eq.f32.partialorder %v1795, %v1840
        %vm1847 = vcmp.eq.f32.partialorder %v1799, %v1840
        %vm1848 = vcmp.eq.f32.partialorder %v1803, %v1840
        %vm1849 = vcmp.eq.f32.partialorder %v1807, %v1840
        %vm1850 = vcmp.eq.f32.partialorder %v1811, %v1840
        %vm1851 = vcmp.eq.f32.partialorder %v1815, %v1840
        %vm1852 = vcmp.eq.f32.partialorder %v1819, %v1840
        %vm1853 = vcmp.eq.f32.partialorder %v1823, %v1840
        %vm1854 = vcmp.eq.f32.partialorder %v1827, %v1840
        %vm1855 = vcmp.eq.f32.partialorder %v1831, %v1840
        %vm1856 = vcmp.eq.f32.partialorder %v1835, %v1840
        %vm1857 = vmand %vm1245, %vm1841
        %vm1858 = vmand %vm1246, %vm1842
        %vm1859 = vmand %vm1247, %vm1843
        %vm1860 = vmand %vm1248, %vm1844
        %vm1861 = vmand %vm1249, %vm1845
        %vm1862 = vmand %vm1250, %vm1846
        %vm1863 = vmand %vm1251, %vm1847
        %vm1864 = vmand %vm1252, %vm1848
        %vm1865 = vmand %vm1253, %vm1849
        %vm1866 = vmand %vm1254, %vm1850
        %vm1867 = vmand %vm1255, %vm1851
        %vm1868 = vmand %vm1256, %vm1852
        %vm1869 = vmand %vm1257, %vm1853
        %vm1870 = vmand %vm1258, %vm1854
        %vm1871 = vmand %vm1259, %vm1855
        %vm1872 = vmand %vm1260, %vm1856
        %v1873 = vsel %vm1857, 1, 0
        %v1874 = vsel %vm1858, 1, 0
        %v1875 = vsel %vm1859, 1, 0
        %v1876 = vsel %vm1860, 1, 0
        %v1877 = vsel %vm1861, 1, 0
        %v1878 = vsel %vm1862, 1, 0
        %v1879 = vsel %vm1863, 1, 0
        %v1880 = vsel %vm1864, 1, 0
        %v1881 = vsel %vm1865, 1, 0
        %v1882 = vsel %vm1866, 1, 0
        %v1883 = vsel %vm1867, 1, 0
        %v1884 = vsel %vm1868, 1, 0
        %v1885 = vsel %vm1869, 1, 0
        %v1886 = vsel %vm1870, 1, 0
        %v1887 = vsel %vm1871, 1, 0
        %v1888 = vsel %vm1872, 1, 0
        %v1889 = vcvt.s32.f32 %v1873
        %v1890 = vcvt.s32.f32 %v1874
        %v1891 = vcvt.s32.f32 %v1875
        %v1892 = vcvt.s32.f32 %v1876
        %v1893 = vcvt.s32.f32 %v1877
        %v1894 = vcvt.s32.f32 %v1878
        %v1895 = vcvt.s32.f32 %v1879
        %v1896 = vcvt.s32.f32 %v1880
        %v1897 = vcvt.s32.f32 %v1881
        %v1898 = vcvt.s32.f32 %v1882
        %v1899 = vcvt.s32.f32 %v1883
        %v1900 = vcvt.s32.f32 %v1884
        %v1901 = vcvt.s32.f32 %v1885
        %v1902 = vcvt.s32.f32 %v1886
        %v1903 = vcvt.s32.f32 %v1887
        %v1904 = vcvt.s32.f32 %v1888
        %1905 = vmatprep.subr.mxu0 0.0
        %1906 = vmatpush1.msra.mxu0 %v1904
        %1907 = vmatprep.subr.mxu0 0.0
        %1908 = vmatpush1.msra.mxu0 %v1903
        %1909 = vmatprep.subr.mxu0 0.0
        %1910 = vmatpush1.msra.mxu0 %v1902
        %1911 = vmatprep.subr.mxu0 0.0
        %1912 = vmatpush1.msra.mxu0 %v1901
        %1913 = vmatprep.subr.mxu0 0.0
        %1914 = vmatpush1.msra.mxu0 %v1900
        %1915 = vmatprep.subr.mxu0 0.0
        %1916 = vmatpush1.msra.mxu0 %v1899
        %1917 = vmatprep.subr.mxu0 0.0
        %1918 = vmatpush1.msra.mxu0 %v1898
        %1919 = vmatprep.subr.mxu0 0.0
        %1920 = vmatpush1.msra.mxu0 %v1897
        %1921 = vmatprep.subr.mxu0 0.0
        %1922 = vmatpush1.msra.mxu0 %v1896
        %1923 = vmatprep.subr.mxu0 0.0
        %1924 = vmatpush1.msra.mxu0 %v1895
        %1925 = vmatprep.subr.mxu0 0.0
        %1926 = vmatpush1.msra.mxu0 %v1894
        %1927 = vmatprep.subr.mxu0 0.0
        %1928 = vmatpush1.msra.mxu0 %v1893
        %1929 = vmatprep.subr.mxu0 0.0
        %1930 = vmatpush1.msra.mxu0 %v1892
        %1931 = vmatprep.subr.mxu0 0.0
        %1932 = vmatpush1.msra.mxu0 %v1891
        %1933 = vmatprep.subr.mxu0 0.0
        %1934 = vmatpush1.msra.mxu0 %v1890
        %1935 = vmatprep.subr.mxu0 0.0
        %1936 = vmatpush1.msra.mxu0 %v1889
        %1937 = vmatprep.subr.mxu0 0.0
        %1938 = vmatpush2.msra.mxu0 0.0
        %1939 = vmatprep.subr.mxu0 0.0
        %1940 = vmatpush2.msra.mxu0 0.0
        %1941 = vmatprep.subr.mxu0 0.0
        %1942 = vmatpush2.msra.mxu0 0.0
        %1943 = vmatprep.subr.mxu0 0.0
        %1944 = vmatpush2.msra.mxu0 0.0
        %1945 = vmatprep.subr.mxu0 0.0
        %1946 = vmatpush2.msra.mxu0 0.0
        %1947 = vmatprep.subr.mxu0 0.0
        %1948 = vmatpush2.msra.mxu0 0.0
        %1949 = vmatprep.subr.mxu0 0.0
        %1950 = vmatpush2.msra.mxu0 0.0
        %1951 = vmatprep.subr.mxu0 0.0
        %1952 = vmatpush2.msra.mxu0 0.0
        %1953 = vmatprep.subr.mxu0 0.0
        %1954 = vmatpush2.msra.mxu0 0.0
        %1955 = vmatprep.subr.mxu0 0.0
        %1956 = vmatpush2.msra.mxu0 0.0
        %1957 = vmatprep.subr.mxu0 0.0
        %1958 = vmatpush2.msra.mxu0 0.0
        %1959 = vmatprep.subr.mxu0 0.0
        %1960 = vmatpush2.msra.mxu0 0.0
        %1961 = vmatprep.subr.mxu0 0.0
        %1962 = vmatpush2.msra.mxu0 0.0
        %1963 = vmatprep.subr.mxu0 0.0
        %1964 = vmatpush2.msra.mxu0 0.0
        %1965 = vmatprep.subr.mxu0 0.0
        %1966 = vmatpush2.msra.mxu0 0.0
        %1967 = vmatprep.subr.mxu0 0.0
        %1968 = vmatpush2.msra.mxu0 0.0
        %1969 = vmatprep.mubr.f32.mxu0 0.0
        %1970 = vmatmul.mubr.f32.gmra.mxu0 1.0
        %v1971 = vpop.f32.mrf.mxu0
        %v1972 = vadd.f32 0.0, %v1971
        %v1973 = vpop.f32.mrf.mxu0
        %1974 = vdwg.mxu0
        %v1975 = vlog2.pop %v1972
        %v1976 = vmul.f32 %v1975, 0.6931472
        %v1977 = vmul.f32 %v1976, 1.442695
        %v1978 = vsub.f32 0.0, %v1977
        %v1979 = vsel %vm304, %v1775, -inf
        %v1980 = vsel %vm305, %v1779, -inf
        %v1981 = vsel %vm306, %v1783, -inf
        %v1982 = vsel %vm307, %v1787, -inf
        %v1983 = vsel %vm308, %v1791, -inf
        %v1984 = vsel %vm309, %v1795, -inf
        %v1985 = vsel %vm310, %v1799, -inf
        %v1986 = vsel %vm311, %v1803, -inf
        %v1987 = vsel %vm312, %v1807, -inf
        %v1988 = vsel %vm313, %v1811, -inf
        %v1989 = vsel %vm314, %v1815, -inf
        %v1990 = vsel %vm315, %v1819, -inf
        %v1991 = vsel %vm316, %v1823, -inf
        %v1992 = vsel %vm317, %v1827, -inf
        %v1993 = vsel %vm318, %v1831, -inf
        %v1994 = vsel %vm319, %v1835, -inf
        %v1995 = vmax.f32 %v1979, %v1983
        %v1996 = vmax.f32 %v1980, %v1984
        %v1997 = vmax.f32 %v1981, %v1985
        %v1998 = vmax.f32 %v1982, %v1986
        %v1999 = vmax.f32 %v1995, %v1987
        %v2000 = vmax.f32 %v1996, %v1988
        %v2001 = vmax.f32 %v1997, %v1989
        %v2002 = vmax.f32 %v1998, %v1990
        %v2003 = vmax.f32 %v1999, %v1991
        %v2004 = vmax.f32 %v2000, %v1992
        %v2005 = vmax.f32 %v2001, %v1993
        %v2006 = vmax.f32 %v2002, %v1994
        %v2007 = vmax.f32 %v2003, %v2004
        %v2008 = vmax.f32 %v2005, %v2006
        %v2009 = vmax.f32 %v2007, %v2008
        %v2010 = vrot.slane %v2009, 4
        %v2011 = vmax.f32 %v2009, %v2010
        %v2012 = vrot.slane %v2011, 2
        %v2013 = vmax.f32 %v2011, %v2012
        %v2014 = vrot.slane %v2013, 1
        %v2015 = vmax.f32 %v2013, %v2014
        %v2016 = vsel %vm304, %v1775, inf
        %v2017 = vsel %vm305, %v1779, inf
        %v2018 = vsel %vm306, %v1783, inf
        %v2019 = vsel %vm307, %v1787, inf
        %v2020 = vsel %vm308, %v1791, inf
        %v2021 = vsel %vm309, %v1795, inf
        %v2022 = vsel %vm310, %v1799, inf
        %v2023 = vsel %vm311, %v1803, inf
        %v2024 = vsel %vm312, %v1807, inf
        %v2025 = vsel %vm313, %v1811, inf
        %v2026 = vsel %vm314, %v1815, inf
        %v2027 = vsel %vm315, %v1819, inf
        %v2028 = vsel %vm316, %v1823, inf
        %v2029 = vsel %vm317, %v1827, inf
        %v2030 = vsel %vm318, %v1831, inf
        %v2031 = vsel %vm319, %v1835, inf
        %v2032 = vmin.f32 %v2016, %v2020
        %v2033 = vmin.f32 %v2017, %v2021
        %v2034 = vmin.f32 %v2018, %v2022
        %v2035 = vmin.f32 %v2019, %v2023
        %v2036 = vmin.f32 %v2032, %v2024
        %v2037 = vmin.f32 %v2033, %v2025
        %v2038 = vmin.f32 %v2034, %v2026
        %v2039 = vmin.f32 %v2035, %v2027
        %v2040 = vmin.f32 %v2036, %v2028
        %v2041 = vmin.f32 %v2037, %v2029
        %v2042 = vmin.f32 %v2038, %v2030
        %v2043 = vmin.f32 %v2039, %v2031
        %v2044 = vmin.f32 %v2040, %v2041
        %v2045 = vmin.f32 %v2042, %v2043
        %v2046 = vmin.f32 %v2044, %v2045
        %v2047 = vrot.slane %v2046, 4
        %v2048 = vmin.f32 %v2046, %v2047
        %v2049 = vrot.slane %v2048, 2
        %v2050 = vmin.f32 %v2048, %v2049
        %v2051 = vrot.slane %v2050, 1
        %v2052 = vmin.f32 %v2050, %v2051
        %2053 = vset.pattern.permute.xlu0 4
        %2054 = vperm.xlu0 %2053, %v205
        %v2055 = vpop.permute.xlu0 %2054
        %2057 = vset.pattern.permute.xlu0 4
        %2058 = vperm.xlu0 %2057, %v206
        %v2059 = vpop.permute.xlu0 %2058
        %2061 = vset.pattern.permute.xlu0 4
        %2062 = vperm.xlu0 %2061, %v207
        %v2063 = vpop.permute.xlu0 %2062
        %2065 = vset.pattern.permute.xlu0 4
        %2066 = vperm.xlu0 %2065, %v208
        %v2067 = vpop.permute.xlu0 %2066
        %2069 = vset.pattern.permute.xlu0 4
        %2070 = vperm.xlu0 %2069, %v209
        %v2071 = vpop.permute.xlu0 %2070
        %2073 = vset.pattern.permute.xlu0 4
        %2074 = vperm.xlu0 %2073, %v210
        %v2075 = vpop.permute.xlu0 %2074
        %2077 = vset.pattern.permute.xlu0 4
        %2078 = vperm.xlu0 %2077, %v211
        %v2079 = vpop.permute.xlu0 %2078
        %2081 = vset.pattern.permute.xlu0 4
        %2082 = vperm.xlu0 %2081, %v212
        %v2083 = vpop.permute.xlu0 %2082
        %2085 = vset.pattern.permute.xlu0 4
        %2086 = vperm.xlu0 %2085, %v213
        %v2087 = vpop.permute.xlu0 %2086
        %2089 = vset.pattern.permute.xlu0 4
        %2090 = vperm.xlu0 %2089, %v214
        %v2091 = vpop.permute.xlu0 %2090
        %2093 = vset.pattern.permute.xlu0 4
        %2094 = vperm.xlu0 %2093, %v215
        %v2095 = vpop.permute.xlu0 %2094
        %2097 = vset.pattern.permute.xlu0 4
        %2098 = vperm.xlu0 %2097, %v216
        %v2099 = vpop.permute.xlu0 %2098
        %2101 = vset.pattern.permute.xlu0 4
        %2102 = vperm.xlu0 %2101, %v217
        %v2103 = vpop.permute.xlu0 %2102
        %2105 = vset.pattern.permute.xlu0 4
        %2106 = vperm.xlu0 %2105, %v218
        %v2107 = vpop.permute.xlu0 %2106
        %2109 = vset.pattern.permute.xlu0 4
        %2110 = vperm.xlu0 %2109, %v219
        %v2111 = vpop.permute.xlu0 %2110
        %2113 = vset.pattern.permute.xlu0 4
        %2114 = vperm.xlu0 %2113, %v220
        %v2115 = vpop.permute.xlu0 %2114
        %v2117 = vlaneseq
        %v2118 = vshrl.u32 %v2117, 7
        %v2119 = vsub.s32 3, %v2118
        %v2120 = vrot.slane %v1221, %v2119
        %vm2121 = vcmp.eq.f32.partialorder %v2055, %v2120
        %vm2122 = vcmp.eq.f32.partialorder %v2059, %v2120
        %vm2123 = vcmp.eq.f32.partialorder %v2063, %v2120
        %vm2124 = vcmp.eq.f32.partialorder %v2067, %v2120
        %vm2125 = vcmp.eq.f32.partialorder %v2071, %v2120
        %vm2126 = vcmp.eq.f32.partialorder %v2075, %v2120
        %vm2127 = vcmp.eq.f32.partialorder %v2079, %v2120
        %vm2128 = vcmp.eq.f32.partialorder %v2083, %v2120
        %vm2129 = vcmp.eq.f32.partialorder %v2087, %v2120
        %vm2130 = vcmp.eq.f32.partialorder %v2091, %v2120
        %vm2131 = vcmp.eq.f32.partialorder %v2095, %v2120
        %vm2132 = vcmp.eq.f32.partialorder %v2099, %v2120
        %vm2133 = vcmp.eq.f32.partialorder %v2103, %v2120
        %vm2134 = vcmp.eq.f32.partialorder %v2107, %v2120
        %vm2135 = vcmp.eq.f32.partialorder %v2111, %v2120
        %vm2136 = vcmp.eq.f32.partialorder %v2115, %v2120
        %vm2137 = vmand %vm1245, %vm2121
        %vm2138 = vmand %vm1246, %vm2122
        %vm2139 = vmand %vm1247, %vm2123
        %vm2140 = vmand %vm1248, %vm2124
        %vm2141 = vmand %vm1249, %vm2125
        %vm2142 = vmand %vm1250, %vm2126
        %vm2143 = vmand %vm1251, %vm2127
        %vm2144 = vmand %vm1252, %vm2128
        %vm2145 = vmand %vm1253, %vm2129
        %vm2146 = vmand %vm1254, %vm2130
        %vm2147 = vmand %vm1255, %vm2131
        %vm2148 = vmand %vm1256, %vm2132
        %vm2149 = vmand %vm1257, %vm2133
        %vm2150 = vmand %vm1258, %vm2134
        %vm2151 = vmand %vm1259, %vm2135
        %vm2152 = vmand %vm1260, %vm2136
        %v2153 = vsel %vm2137, 1, 0
        %v2154 = vsel %vm2138, 1, 0
        %v2155 = vsel %vm2139, 1, 0
        %v2156 = vsel %vm2140, 1, 0
        %v2157 = vsel %vm2141, 1, 0
        %v2158 = vsel %vm2142, 1, 0
        %v2159 = vsel %vm2143, 1, 0
        %v2160 = vsel %vm2144, 1, 0
        %v2161 = vsel %vm2145, 1, 0
        %v2162 = vsel %vm2146, 1, 0
        %v2163 = vsel %vm2147, 1, 0
        %v2164 = vsel %vm2148, 1, 0
        %v2165 = vsel %vm2149, 1, 0
        %v2166 = vsel %vm2150, 1, 0
        %v2167 = vsel %vm2151, 1, 0
        %v2168 = vsel %vm2152, 1, 0
        %v2169 = vcvt.s32.f32 %v2153
        %v2170 = vcvt.s32.f32 %v2154
        %v2171 = vcvt.s32.f32 %v2155
        %v2172 = vcvt.s32.f32 %v2156
        %v2173 = vcvt.s32.f32 %v2157
        %v2174 = vcvt.s32.f32 %v2158
        %v2175 = vcvt.s32.f32 %v2159
        %v2176 = vcvt.s32.f32 %v2160
        %v2177 = vcvt.s32.f32 %v2161
        %v2178 = vcvt.s32.f32 %v2162
        %v2179 = vcvt.s32.f32 %v2163
        %v2180 = vcvt.s32.f32 %v2164
        %v2181 = vcvt.s32.f32 %v2165
        %v2182 = vcvt.s32.f32 %v2166
        %v2183 = vcvt.s32.f32 %v2167
        %v2184 = vcvt.s32.f32 %v2168
        %2185 = vmatprep.subr.mxu0 0.0
        %2186 = vmatpush1.msra.mxu0 %v2184
        %2187 = vmatprep.subr.mxu0 0.0
        %2188 = vmatpush1.msra.mxu0 %v2183
        %2189 = vmatprep.subr.mxu0 0.0
        %2190 = vmatpush1.msra.mxu0 %v2182
        %2191 = vmatprep.subr.mxu0 0.0
        %2192 = vmatpush1.msra.mxu0 %v2181
        %2193 = vmatprep.subr.mxu0 0.0
        %2194 = vmatpush1.msra.mxu0 %v2180
        %2195 = vmatprep.subr.mxu0 0.0
        %2196 = vmatpush1.msra.mxu0 %v2179
        %2197 = vmatprep.subr.mxu0 0.0
        %2198 = vmatpush1.msra.mxu0 %v2178
        %2199 = vmatprep.subr.mxu0 0.0
        %2200 = vmatpush1.msra.mxu0 %v2177
        %2201 = vmatprep.subr.mxu0 0.0
        %2202 = vmatpush1.msra.mxu0 %v2176
        %2203 = vmatprep.subr.mxu0 0.0
        %2204 = vmatpush1.msra.mxu0 %v2175
        %2205 = vmatprep.subr.mxu0 0.0
        %2206 = vmatpush1.msra.mxu0 %v2174
        %2207 = vmatprep.subr.mxu0 0.0
        %2208 = vmatpush1.msra.mxu0 %v2173
        %2209 = vmatprep.subr.mxu0 0.0
        %2210 = vmatpush1.msra.mxu0 %v2172
        %2211 = vmatprep.subr.mxu0 0.0
        %2212 = vmatpush1.msra.mxu0 %v2171
        %2213 = vmatprep.subr.mxu0 0.0
        %2214 = vmatpush1.msra.mxu0 %v2170
        %2215 = vmatprep.subr.mxu0 0.0
        %2216 = vmatpush1.msra.mxu0 %v2169
        %2217 = vmatprep.subr.mxu0 0.0
        %2218 = vmatpush2.msra.mxu0 0.0
        %2219 = vmatprep.subr.mxu0 0.0
        %2220 = vmatpush2.msra.mxu0 0.0
        %2221 = vmatprep.subr.mxu0 0.0
        %2222 = vmatpush2.msra.mxu0 0.0
        %2223 = vmatprep.subr.mxu0 0.0
        %2224 = vmatpush2.msra.mxu0 0.0
        %2225 = vmatprep.subr.mxu0 0.0
        %2226 = vmatpush2.msra.mxu0 0.0
        %2227 = vmatprep.subr.mxu0 0.0
        %2228 = vmatpush2.msra.mxu0 0.0
        %2229 = vmatprep.subr.mxu0 0.0
        %2230 = vmatpush2.msra.mxu0 0.0
        %2231 = vmatprep.subr.mxu0 0.0
        %2232 = vmatpush2.msra.mxu0 0.0
        %2233 = vmatprep.subr.mxu0 0.0
        %2234 = vmatpush2.msra.mxu0 0.0
        %2235 = vmatprep.subr.mxu0 0.0
        %2236 = vmatpush2.msra.mxu0 0.0
        %2237 = vmatprep.subr.mxu0 0.0
        %2238 = vmatpush2.msra.mxu0 0.0
        %2239 = vmatprep.subr.mxu0 0.0
        %2240 = vmatpush2.msra.mxu0 0.0
        %2241 = vmatprep.subr.mxu0 0.0
        %2242 = vmatpush2.msra.mxu0 0.0
        %2243 = vmatprep.subr.mxu0 0.0
        %2244 = vmatpush2.msra.mxu0 0.0
        %2245 = vmatprep.subr.mxu0 0.0
        %2246 = vmatpush2.msra.mxu0 0.0
        %2247 = vmatprep.subr.mxu0 0.0
        %2248 = vmatpush2.msra.mxu0 0.0
        %2249 = vmatprep.mubr.f32.mxu0 0.0
        %2250 = vmatmul.mubr.f32.gmra.mxu0 1.0
        %v2251 = vpop.f32.mrf.mxu0
        %v2252 = vadd.f32 0.0, %v2251
        %v2253 = vpop.f32.mrf.mxu0
        %2254 = vdwg.mxu0
        %v2255 = vlog2.pop %v2252
        %v2256 = vmul.f32 %v2255, 0.6931472
        %v2257 = vmul.f32 %v2256, 1.442695
        %v2258 = vsub.f32 0.0, %v2257
        %v2259 = vsel %vm304, %v2055, -inf
        %v2260 = vsel %vm305, %v2059, -inf
        %v2261 = vsel %vm306, %v2063, -inf
        %v2262 = vsel %vm307, %v2067, -inf
        %v2263 = vsel %vm308, %v2071, -inf
        %v2264 = vsel %vm309, %v2075, -inf
        %v2265 = vsel %vm310, %v2079, -inf
        %v2266 = vsel %vm311, %v2083, -inf
        %v2267 = vsel %vm312, %v2087, -inf
        %v2268 = vsel %vm313, %v2091, -inf
        %v2269 = vsel %vm314, %v2095, -inf
        %v2270 = vsel %vm315, %v2099, -inf
        %v2271 = vsel %vm316, %v2103, -inf
        %v2272 = vsel %vm317, %v2107, -inf
        %v2273 = vsel %vm318, %v2111, -inf
        %v2274 = vsel %vm319, %v2115, -inf
        %v2275 = vmax.f32 %v2259, %v2263
        %v2276 = vmax.f32 %v2260, %v2264
        %v2277 = vmax.f32 %v2261, %v2265
        %v2278 = vmax.f32 %v2262, %v2266
        %v2279 = vmax.f32 %v2275, %v2267
        %v2280 = vmax.f32 %v2276, %v2268
        %v2281 = vmax.f32 %v2277, %v2269
        %v2282 = vmax.f32 %v2278, %v2270
        %v2283 = vmax.f32 %v2279, %v2271
        %v2284 = vmax.f32 %v2280, %v2272
        %v2285 = vmax.f32 %v2281, %v2273
        %v2286 = vmax.f32 %v2282, %v2274
        %v2287 = vmax.f32 %v2283, %v2284
        %v2288 = vmax.f32 %v2285, %v2286
        %v2289 = vmax.f32 %v2287, %v2288
        %v2290 = vrot.slane %v2289, 4
        %v2291 = vmax.f32 %v2289, %v2290
        %v2292 = vrot.slane %v2291, 2
        %v2293 = vmax.f32 %v2291, %v2292
        %v2294 = vrot.slane %v2293, 1
        %v2295 = vmax.f32 %v2293, %v2294
        %v2296 = vsel %vm304, %v2055, inf
        %v2297 = vsel %vm305, %v2059, inf
        %v2298 = vsel %vm306, %v2063, inf
        %v2299 = vsel %vm307, %v2067, inf
        %v2300 = vsel %vm308, %v2071, inf
        %v2301 = vsel %vm309, %v2075, inf
        %v2302 = vsel %vm310, %v2079, inf
        %v2303 = vsel %vm311, %v2083, inf
        %v2304 = vsel %vm312, %v2087, inf
        %v2305 = vsel %vm313, %v2091, inf
        %v2306 = vsel %vm314, %v2095, inf
        %v2307 = vsel %vm315, %v2099, inf
        %v2308 = vsel %vm316, %v2103, inf
        %v2309 = vsel %vm317, %v2107, inf
        %v2310 = vsel %vm318, %v2111, inf
        %v2311 = vsel %vm319, %v2115, inf
        %v2312 = vmin.f32 %v2296, %v2300
        %v2313 = vmin.f32 %v2297, %v2301
        %v2314 = vmin.f32 %v2298, %v2302
        %v2315 = vmin.f32 %v2299, %v2303
        %v2316 = vmin.f32 %v2312, %v2304
        %v2317 = vmin.f32 %v2313, %v2305
        %v2318 = vmin.f32 %v2314, %v2306
        %v2319 = vmin.f32 %v2315, %v2307
        %v2320 = vmin.f32 %v2316, %v2308
        %v2321 = vmin.f32 %v2317, %v2309
        %v2322 = vmin.f32 %v2318, %v2310
        %v2323 = vmin.f32 %v2319, %v2311
        %v2324 = vmin.f32 %v2320, %v2321
        %v2325 = vmin.f32 %v2322, %v2323
        %v2326 = vmin.f32 %v2324, %v2325
        %v2327 = vrot.slane %v2326, 4
        %v2328 = vmin.f32 %v2326, %v2327
        %v2329 = vrot.slane %v2328, 2
        %v2330 = vmin.f32 %v2328, %v2329
        %v2331 = vrot.slane %v2330, 1
        %v2332 = vmin.f32 %v2330, %v2331
        %v2334 = vrot.slane %v1240, 4
        %v2337 = vrot.slane %v1698, 7
        %v2340 = vrot.slane %v1978, 6
        %v2343 = vrot.slane %v2258, 5
        %v2345 = vsel %vm1229, %v1221, %v2334
        %v2346 = vsel %vm1220, %v1402, %v2337
        %vm2347 = vcmask 1041408
        %v2348 = vsel %vm2347, %v2346, %v2340
        %vm2349 = vcmask 1042432
        %v2350 = vsel %vm2349, %v2348, %v2343
        %2351 = vmatprep.subr.mxu0 0.0
        %v2352 = vand.u32 %v351, 4294901760
        %2353 = vmatpush1.msra.mxu0 %v2352
        %2354 = vmatprep.subr.mxu0 0.0
        %v2355 = vand.u32 %v350, 4294901760
        %2356 = vmatpush1.msra.mxu0 %v2355
        %2357 = vmatprep.subr.mxu0 0.0
        %v2358 = vand.u32 %v349, 4294901760
        %2359 = vmatpush1.msra.mxu0 %v2358
        %2360 = vmatprep.subr.mxu0 0.0
        %v2361 = vand.u32 %v348, 4294901760
        %2362 = vmatpush1.msra.mxu0 %v2361
        %2363 = vmatprep.subr.mxu0 0.0
        %v2364 = vand.u32 %v347, 4294901760
        %2365 = vmatpush1.msra.mxu0 %v2364
        %2366 = vmatprep.subr.mxu0 0.0
        %v2367 = vand.u32 %v346, 4294901760
        %2368 = vmatpush1.msra.mxu0 %v2367
        %2369 = vmatprep.subr.mxu0 0.0
        %v2370 = vand.u32 %v345, 4294901760
        %2371 = vmatpush1.msra.mxu0 %v2370
        %2372 = vmatprep.subr.mxu0 0.0
        %v2373 = vand.u32 %v344, 4294901760
        %2374 = vmatpush1.msra.mxu0 %v2373
        %2375 = vmatprep.subr.mxu0 0.0
        %v2376 = vand.u32 %v343, 4294901760
        %2377 = vmatpush1.msra.mxu0 %v2376
        %2378 = vmatprep.subr.mxu0 0.0
        %v2379 = vand.u32 %v342, 4294901760
        %2380 = vmatpush1.msra.mxu0 %v2379
        %2381 = vmatprep.subr.mxu0 0.0
        %v2382 = vand.u32 %v341, 4294901760
        %2383 = vmatpush1.msra.mxu0 %v2382
        %2384 = vmatprep.subr.mxu0 0.0
        %v2385 = vand.u32 %v340, 4294901760
        %2386 = vmatpush1.msra.mxu0 %v2385
        %2387 = vmatprep.subr.mxu0 0.0
        %v2388 = vand.u32 %v339, 4294901760
        %2389 = vmatpush1.msra.mxu0 %v2388
        %2390 = vmatprep.subr.mxu0 0.0
        %v2391 = vand.u32 %v338, 4294901760
        %2392 = vmatpush1.msra.mxu0 %v2391
        %2393 = vmatprep.subr.mxu0 0.0
        %v2394 = vand.u32 %v337, 4294901760
        %2395 = vmatpush1.msra.mxu0 %v2394
        %2396 = vmatprep.subr.mxu0 0.0
        %v2397 = vand.u32 %v336, 4294901760
        %2398 = vmatpush1.msra.mxu0 %v2397
        %2399 = vmatprep.subr.mxu0 0.0
        %2400 = vmatpush2.msra.mxu0 0.0
        %2401 = vmatprep.subr.mxu0 0.0
        %2402 = vmatpush2.msra.mxu0 0.0
        %2403 = vmatprep.subr.mxu0 0.0
        %2404 = vmatpush2.msra.mxu0 0.0
        %2405 = vmatprep.subr.mxu0 0.0
        %2406 = vmatpush2.msra.mxu0 0.0
        %2407 = vmatprep.subr.mxu0 0.0
        %2408 = vmatpush2.msra.mxu0 0.0
        %2409 = vmatprep.subr.mxu0 0.0
        %2410 = vmatpush2.msra.mxu0 0.0
        %2411 = vmatprep.subr.mxu0 0.0
        %2412 = vmatpush2.msra.mxu0 0.0
        %2413 = vmatprep.subr.mxu0 0.0
        %2414 = vmatpush2.msra.mxu0 0.0
        %2415 = vmatprep.subr.mxu0 0.0
        %2416 = vmatpush2.msra.mxu0 0.0
        %2417 = vmatprep.subr.mxu0 0.0
        %2418 = vmatpush2.msra.mxu0 0.0
        %2419 = vmatprep.subr.mxu0 0.0
        %2420 = vmatpush2.msra.mxu0 0.0
        %2421 = vmatprep.subr.mxu0 0.0
        %2422 = vmatpush2.msra.mxu0 0.0
        %2423 = vmatprep.subr.mxu0 0.0
        %2424 = vmatpush2.msra.mxu0 0.0
        %2425 = vmatprep.subr.mxu0 0.0
        %2426 = vmatpush2.msra.mxu0 0.0
        %2427 = vmatprep.subr.mxu0 0.0
        %2428 = vmatpush2.msra.mxu0 0.0
        %2429 = vmatprep.subr.mxu0 0.0
        %2430 = vmatpush2.msra.mxu0 0.0
        %2431 = vmatprep.mubr.f32.mxu0 0.0
        %v2432 = vand.u32 %v2345, 4294901760
        %v2433 = vsub.f32 %v2345, %v2432
        %v2434 = vand.u32 %v2433, 4294901760
        %v2435 = vsub.f32 %v2433, %v2434
        %v2436 = vand.u32 %v2435, 4294901760
        %2437 = vmatmul.mubr.f32.gmra.mxu0 %v2436
        %v2438 = vpop.f32.mrf.mxu0
        %v2439 = vadd.f32 0.0, %v2438
        %v2440 = vpop.f32.mrf.mxu0
        %2441 = vmatprep.mubr.f32.mxu0 0.0
        %v2442 = vand.u32 %v2350, 4294901760
        %v2443 = vsub.f32 %v2350, %v2442
        %v2444 = vand.u32 %v2443, 4294901760
        %v2445 = vsub.f32 %v2443, %v2444
        %v2446 = vand.u32 %v2445, 4294901760
        %2447 = vmatmul.mubr.f32.gmra.mxu0 %v2446
        %v2448 = vpop.f32.mrf.mxu0
        %v2449 = vadd.f32 0.0, %v2448
        %v2450 = vpop.f32.mrf.mxu0
        %2451 = vdwg.mxu0
        %2452 = vmatprep.subr.mxu0 0.0
        %v2453 = vand.u32 %v351, 4294901760
        %v2454 = vsub.f32 %v351, %v2453
        %v2455 = vand.u32 %v2454, 4294901760
        %v2456 = vsub.f32 %v2454, %v2455
        %v2457 = vand.u32 %v2456, 4294901760
        %2458 = vmatpush1.msra.mxu0 %v2457
        %2459 = vmatprep.subr.mxu0 0.0
        %v2460 = vand.u32 %v350, 4294901760
        %v2461 = vsub.f32 %v350, %v2460
        %v2462 = vand.u32 %v2461, 4294901760
        %v2463 = vsub.f32 %v2461, %v2462
        %v2464 = vand.u32 %v2463, 4294901760
        %2465 = vmatpush1.msra.mxu0 %v2464
        %2466 = vmatprep.subr.mxu0 0.0
        %v2467 = vand.u32 %v349, 4294901760
        %v2468 = vsub.f32 %v349, %v2467
        %v2469 = vand.u32 %v2468, 4294901760
        %v2470 = vsub.f32 %v2468, %v2469
        %v2471 = vand.u32 %v2470, 4294901760
        %2472 = vmatpush1.msra.mxu0 %v2471
        %2473 = vmatprep.subr.mxu0 0.0
        %v2474 = vand.u32 %v348, 4294901760
        %v2475 = vsub.f32 %v348, %v2474
        %v2476 = vand.u32 %v2475, 4294901760
        %v2477 = vsub.f32 %v2475, %v2476
        %v2478 = vand.u32 %v2477, 4294901760
        %2479 = vmatpush1.msra.mxu0 %v2478
        %2480 = vmatprep.subr.mxu0 0.0
        %v2481 = vand.u32 %v347, 4294901760
        %v2482 = vsub.f32 %v347, %v2481
        %v2483 = vand.u32 %v2482, 4294901760
        %v2484 = vsub.f32 %v2482, %v2483
        %v2485 = vand.u32 %v2484, 4294901760
        %2486 = vmatpush1.msra.mxu0 %v2485
        %2487 = vmatprep.subr.mxu0 0.0
        %v2488 = vand.u32 %v346, 4294901760
        %v2489 = vsub.f32 %v346, %v2488
        %v2490 = vand.u32 %v2489, 4294901760
        %v2491 = vsub.f32 %v2489, %v2490
        %v2492 = vand.u32 %v2491, 4294901760
        %2493 = vmatpush1.msra.mxu0 %v2492
        %2494 = vmatprep.subr.mxu0 0.0
        %v2495 = vand.u32 %v345, 4294901760
        %v2496 = vsub.f32 %v345, %v2495
        %v2497 = vand.u32 %v2496, 4294901760
        %v2498 = vsub.f32 %v2496, %v2497
        %v2499 = vand.u32 %v2498, 4294901760
        %2500 = vmatpush1.msra.mxu0 %v2499
        %2501 = vmatprep.subr.mxu0 0.0
        %v2502 = vand.u32 %v344, 4294901760
        %v2503 = vsub.f32 %v344, %v2502
        %v2504 = vand.u32 %v2503, 4294901760
        %v2505 = vsub.f32 %v2503, %v2504
        %v2506 = vand.u32 %v2505, 4294901760
        %2507 = vmatpush1.msra.mxu0 %v2506
        %2508 = vmatprep.subr.mxu0 0.0
        %v2509 = vand.u32 %v343, 4294901760
        %v2510 = vsub.f32 %v343, %v2509
        %v2511 = vand.u32 %v2510, 4294901760
        %v2512 = vsub.f32 %v2510, %v2511
        %v2513 = vand.u32 %v2512, 4294901760
        %2514 = vmatpush1.msra.mxu0 %v2513
        %2515 = vmatprep.subr.mxu0 0.0
        %v2516 = vand.u32 %v342, 4294901760
        %v2517 = vsub.f32 %v342, %v2516
        %v2518 = vand.u32 %v2517, 4294901760
        %v2519 = vsub.f32 %v2517, %v2518
        %v2520 = vand.u32 %v2519, 4294901760
        %2521 = vmatpush1.msra.mxu0 %v2520
        %2522 = vmatprep.subr.mxu0 0.0
        %v2523 = vand.u32 %v341, 4294901760
        %v2524 = vsub.f32 %v341, %v2523
        %v2525 = vand.u32 %v2524, 4294901760
        %v2526 = vsub.f32 %v2524, %v2525
        %v2527 = vand.u32 %v2526, 4294901760
        %2528 = vmatpush1.msra.mxu0 %v2527
        %2529 = vmatprep.subr.mxu0 0.0
        %v2530 = vand.u32 %v340, 4294901760
        %v2531 = vsub.f32 %v340, %v2530
        %v2532 = vand.u32 %v2531, 4294901760
        %v2533 = vsub.f32 %v2531, %v2532
        %v2534 = vand.u32 %v2533, 4294901760
        %2535 = vmatpush1.msra.mxu0 %v2534
        %2536 = vmatprep.subr.mxu0 0.0
        %v2537 = vand.u32 %v339, 4294901760
        %v2538 = vsub.f32 %v339, %v2537
        %v2539 = vand.u32 %v2538, 4294901760
        %v2540 = vsub.f32 %v2538, %v2539
        %v2541 = vand.u32 %v2540, 4294901760
        %2542 = vmatpush1.msra.mxu0 %v2541
        %2543 = vmatprep.subr.mxu0 0.0
        %v2544 = vand.u32 %v338, 4294901760
        %v2545 = vsub.f32 %v338, %v2544
        %v2546 = vand.u32 %v2545, 4294901760
        %v2547 = vsub.f32 %v2545, %v2546
        %v2548 = vand.u32 %v2547, 4294901760
        %2549 = vmatpush1.msra.mxu0 %v2548
        %2550 = vmatprep.subr.mxu0 0.0
        %v2551 = vand.u32 %v337, 4294901760
        %v2552 = vsub.f32 %v337, %v2551
        %v2553 = vand.u32 %v2552, 4294901760
        %v2554 = vsub.f32 %v2552, %v2553
        %v2555 = vand.u32 %v2554, 4294901760
        %2556 = vmatpush1.msra.mxu0 %v2555
        %2557 = vmatprep.subr.mxu0 0.0
        %v2558 = vand.u32 %v336, 4294901760
        %v2559 = vsub.f32 %v336, %v2558
        %v2560 = vand.u32 %v2559, 4294901760
        %v2561 = vsub.f32 %v2559, %v2560
        %v2562 = vand.u32 %v2561, 4294901760
        %2563 = vmatpush1.msra.mxu0 %v2562
        %2564 = vmatprep.subr.mxu0 0.0
        %2565 = vmatpush2.msra.mxu0 0.0
        %2566 = vmatprep.subr.mxu0 0.0
        %2567 = vmatpush2.msra.mxu0 0.0
        %2568 = vmatprep.subr.mxu0 0.0
        %2569 = vmatpush2.msra.mxu0 0.0
        %2570 = vmatprep.subr.mxu0 0.0
        %2571 = vmatpush2.msra.mxu0 0.0
        %2572 = vmatprep.subr.mxu0 0.0
        %2573 = vmatpush2.msra.mxu0 0.0
        %2574 = vmatprep.subr.mxu0 0.0
        %2575 = vmatpush2.msra.mxu0 0.0
        %2576 = vmatprep.subr.mxu0 0.0
        %2577 = vmatpush2.msra.mxu0 0.0
        %2578 = vmatprep.subr.mxu0 0.0
        %2579 = vmatpush2.msra.mxu0 0.0
        %2580 = vmatprep.subr.mxu0 0.0
        %2581 = vmatpush2.msra.mxu0 0.0
        %2582 = vmatprep.subr.mxu0 0.0
        %2583 = vmatpush2.msra.mxu0 0.0
        %2584 = vmatprep.subr.mxu0 0.0
        %2585 = vmatpush2.msra.mxu0 0.0
        %2586 = vmatprep.subr.mxu0 0.0
        %2587 = vmatpush2.msra.mxu0 0.0
        %2588 = vmatprep.subr.mxu0 0.0
        %2589 = vmatpush2.msra.mxu0 0.0
        %2590 = vmatprep.subr.mxu0 0.0
        %2591 = vmatpush2.msra.mxu0 0.0
        %2592 = vmatprep.subr.mxu0 0.0
        %2593 = vmatpush2.msra.mxu0 0.0
        %2594 = vmatprep.subr.mxu0 0.0
        %2595 = vmatpush2.msra.mxu0 0.0
        %2596 = vmatprep.mubr.f32.mxu0 0.0
        %v2597 = vand.u32 %v2345, 4294901760
        %2598 = vmatmul.mubr.f32.gmra.mxu0 %v2597
        %v2599 = vpop.f32.mrf.mxu0
        %v2600 = vadd.f32 %v2439, %v2599
        %v2601 = vpop.f32.mrf.mxu0
        %2602 = vmatprep.mubr.f32.mxu0 0.0
        %v2603 = vand.u32 %v2350, 4294901760
        %2604 = vmatmul.mubr.f32.gmra.mxu0 %v2603
        %v2605 = vpop.f32.mrf.mxu0
        %v2606 = vadd.f32 %v2449, %v2605
        %v2607 = vpop.f32.mrf.mxu0
        %2608 = vdwg.mxu0
        %2609 = vmatprep.subr.mxu0 0.0
        %v2610 = vand.u32 %v351, 4294901760
        %v2611 = vsub.f32 %v351, %v2610
        %2612 = vmatpush1.msra.mxu0 %v2611
        %2613 = vmatprep.subr.mxu0 0.0
        %v2614 = vand.u32 %v350, 4294901760
        %v2615 = vsub.f32 %v350, %v2614
        %2616 = vmatpush1.msra.mxu0 %v2615
        %2617 = vmatprep.subr.mxu0 0.0
        %v2618 = vand.u32 %v349, 4294901760
        %v2619 = vsub.f32 %v349, %v2618
        %2620 = vmatpush1.msra.mxu0 %v2619
        %2621 = vmatprep.subr.mxu0 0.0
        %v2622 = vand.u32 %v348, 4294901760
        %v2623 = vsub.f32 %v348, %v2622
        %2624 = vmatpush1.msra.mxu0 %v2623
        %2625 = vmatprep.subr.mxu0 0.0
        %v2626 = vand.u32 %v347, 4294901760
        %v2627 = vsub.f32 %v347, %v2626
        %2628 = vmatpush1.msra.mxu0 %v2627
        %2629 = vmatprep.subr.mxu0 0.0
        %v2630 = vand.u32 %v346, 4294901760
        %v2631 = vsub.f32 %v346, %v2630
        %2632 = vmatpush1.msra.mxu0 %v2631
        %2633 = vmatprep.subr.mxu0 0.0
        %v2634 = vand.u32 %v345, 4294901760
        %v2635 = vsub.f32 %v345, %v2634
        %2636 = vmatpush1.msra.mxu0 %v2635
        %2637 = vmatprep.subr.mxu0 0.0
        %v2638 = vand.u32 %v344, 4294901760
        %v2639 = vsub.f32 %v344, %v2638
        %2640 = vmatpush1.msra.mxu0 %v2639
        %2641 = vmatprep.subr.mxu0 0.0
        %v2642 = vand.u32 %v343, 4294901760
        %v2643 = vsub.f32 %v343, %v2642
        %2644 = vmatpush1.msra.mxu0 %v2643
        %2645 = vmatprep.subr.mxu0 0.0
        %v2646 = vand.u32 %v342, 4294901760
        %v2647 = vsub.f32 %v342, %v2646
        %2648 = vmatpush1.msra.mxu0 %v2647
        %2649 = vmatprep.subr.mxu0 0.0
        %v2650 = vand.u32 %v341, 4294901760
        %v2651 = vsub.f32 %v341, %v2650
        %2652 = vmatpush1.msra.mxu0 %v2651
        %2653 = vmatprep.subr.mxu0 0.0
        %v2654 = vand.u32 %v340, 4294901760
        %v2655 = vsub.f32 %v340, %v2654
        %2656 = vmatpush1.msra.mxu0 %v2655
        %2657 = vmatprep.subr.mxu0 0.0
        %v2658 = vand.u32 %v339, 4294901760
        %v2659 = vsub.f32 %v339, %v2658
        %2660 = vmatpush1.msra.mxu0 %v2659
        %2661 = vmatprep.subr.mxu0 0.0
        %v2662 = vand.u32 %v338, 4294901760
        %v2663 = vsub.f32 %v338, %v2662
        %2664 = vmatpush1.msra.mxu0 %v2663
        %2665 = vmatprep.subr.mxu0 0.0
        %v2666 = vand.u32 %v337, 4294901760
        %v2667 = vsub.f32 %v337, %v2666
        %2668 = vmatpush1.msra.mxu0 %v2667
        %2669 = vmatprep.subr.mxu0 0.0
        %v2670 = vand.u32 %v336, 4294901760
        %v2671 = vsub.f32 %v336, %v2670
        %2672 = vmatpush1.msra.mxu0 %v2671
        %2673 = vmatprep.subr.mxu0 0.0
        %2674 = vmatpush2.msra.mxu0 0.0
        %2675 = vmatprep.subr.mxu0 0.0
        %2676 = vmatpush2.msra.mxu0 0.0
        %2677 = vmatprep.subr.mxu0 0.0
        %2678 = vmatpush2.msra.mxu0 0.0
        %2679 = vmatprep.subr.mxu0 0.0
        %2680 = vmatpush2.msra.mxu0 0.0
        %2681 = vmatprep.subr.mxu0 0.0
        %2682 = vmatpush2.msra.mxu0 0.0
        %2683 = vmatprep.subr.mxu0 0.0
        %2684 = vmatpush2.msra.mxu0 0.0
        %2685 = vmatprep.subr.mxu0 0.0
        %2686 = vmatpush2.msra.mxu0 0.0
        %2687 = vmatprep.subr.mxu0 0.0
        %2688 = vmatpush2.msra.mxu0 0.0
        %2689 = vmatprep.subr.mxu0 0.0
        %2690 = vmatpush2.msra.mxu0 0.0
        %2691 = vmatprep.subr.mxu0 0.0
        %2692 = vmatpush2.msra.mxu0 0.0
        %2693 = vmatprep.subr.mxu0 0.0
        %2694 = vmatpush2.msra.mxu0 0.0
        %2695 = vmatprep.subr.mxu0 0.0
        %2696 = vmatpush2.msra.mxu0 0.0
        %2697 = vmatprep.subr.mxu0 0.0
        %2698 = vmatpush2.msra.mxu0 0.0
        %2699 = vmatprep.subr.mxu0 0.0
        %2700 = vmatpush2.msra.mxu0 0.0
        %2701 = vmatprep.subr.mxu0 0.0
        %2702 = vmatpush2.msra.mxu0 0.0
        %2703 = vmatprep.subr.mxu0 0.0
        %2704 = vmatpush2.msra.mxu0 0.0
        %2705 = vmatprep.mubr.f32.mxu0 0.0
        %v2706 = vand.u32 %v2345, 4294901760
        %v2707 = vsub.f32 %v2345, %v2706
        %2708 = vmatmul.mubr.f32.gmra.mxu0 %v2707
        %v2709 = vpop.f32.mrf.mxu0
        %v2710 = vadd.f32 %v2600, %v2709
        %v2711 = vpop.f32.mrf.mxu0
        %2712 = vmatprep.mubr.f32.mxu0 0.0
        %v2713 = vand.u32 %v2350, 4294901760
        %v2714 = vsub.f32 %v2350, %v2713
        %2715 = vmatmul.mubr.f32.gmra.mxu0 %v2714
        %v2716 = vpop.f32.mrf.mxu0
        %v2717 = vadd.f32 %v2606, %v2716
        %v2718 = vpop.f32.mrf.mxu0
        %2719 = vdwg.mxu0
        %2720 = vmatprep.subr.mxu0 0.0
        %v2721 = vand.u32 %v351, 4294901760
        %2722 = vmatpush1.msra.mxu0 %v2721
        %2723 = vmatprep.subr.mxu0 0.0
        %v2724 = vand.u32 %v350, 4294901760
        %2725 = vmatpush1.msra.mxu0 %v2724
        %2726 = vmatprep.subr.mxu0 0.0
        %v2727 = vand.u32 %v349, 4294901760
        %2728 = vmatpush1.msra.mxu0 %v2727
        %2729 = vmatprep.subr.mxu0 0.0
        %v2730 = vand.u32 %v348, 4294901760
        %2731 = vmatpush1.msra.mxu0 %v2730
        %2732 = vmatprep.subr.mxu0 0.0
        %v2733 = vand.u32 %v347, 4294901760
        %2734 = vmatpush1.msra.mxu0 %v2733
        %2735 = vmatprep.subr.mxu0 0.0
        %v2736 = vand.u32 %v346, 4294901760
        %2737 = vmatpush1.msra.mxu0 %v2736
        %2738 = vmatprep.subr.mxu0 0.0
        %v2739 = vand.u32 %v345, 4294901760
        %2740 = vmatpush1.msra.mxu0 %v2739
        %2741 = vmatprep.subr.mxu0 0.0
        %v2742 = vand.u32 %v344, 4294901760
        %2743 = vmatpush1.msra.mxu0 %v2742
        %2744 = vmatprep.subr.mxu0 0.0
        %v2745 = vand.u32 %v343, 4294901760
        %2746 = vmatpush1.msra.mxu0 %v2745
        %2747 = vmatprep.subr.mxu0 0.0
        %v2748 = vand.u32 %v342, 4294901760
        %2749 = vmatpush1.msra.mxu0 %v2748
        %2750 = vmatprep.subr.mxu0 0.0
        %v2751 = vand.u32 %v341, 4294901760
        %2752 = vmatpush1.msra.mxu0 %v2751
        %2753 = vmatprep.subr.mxu0 0.0
        %v2754 = vand.u32 %v340, 4294901760
        %2755 = vmatpush1.msra.mxu0 %v2754
        %2756 = vmatprep.subr.mxu0 0.0
        %v2757 = vand.u32 %v339, 4294901760
        %2758 = vmatpush1.msra.mxu0 %v2757
        %2759 = vmatprep.subr.mxu0 0.0
        %v2760 = vand.u32 %v338, 4294901760
        %2761 = vmatpush1.msra.mxu0 %v2760
        %2762 = vmatprep.subr.mxu0 0.0
        %v2763 = vand.u32 %v337, 4294901760
        %2764 = vmatpush1.msra.mxu0 %v2763
        %2765 = vmatprep.subr.mxu0 0.0
        %v2766 = vand.u32 %v336, 4294901760
        %2767 = vmatpush1.msra.mxu0 %v2766
        %2768 = vmatprep.subr.mxu0 0.0
        %2769 = vmatpush2.msra.mxu0 0.0
        %2770 = vmatprep.subr.mxu0 0.0
        %2771 = vmatpush2.msra.mxu0 0.0
        %2772 = vmatprep.subr.mxu0 0.0
        %2773 = vmatpush2.msra.mxu0 0.0
        %2774 = vmatprep.subr.mxu0 0.0
        %2775 = vmatpush2.msra.mxu0 0.0
        %2776 = vmatprep.subr.mxu0 0.0
        %2777 = vmatpush2.msra.mxu0 0.0
        %2778 = vmatprep.subr.mxu0 0.0
        %2779 = vmatpush2.msra.mxu0 0.0
        %2780 = vmatprep.subr.mxu0 0.0
        %2781 = vmatpush2.msra.mxu0 0.0
        %2782 = vmatprep.subr.mxu0 0.0
        %2783 = vmatpush2.msra.mxu0 0.0
        %2784 = vmatprep.subr.mxu0 0.0
        %2785 = vmatpush2.msra.mxu0 0.0
        %2786 = vmatprep.subr.mxu0 0.0
        %2787 = vmatpush2.msra.mxu0 0.0
        %2788 = vmatprep.subr.mxu0 0.0
        %2789 = vmatpush2.msra.mxu0 0.0
        %2790 = vmatprep.subr.mxu0 0.0
        %2791 = vmatpush2.msra.mxu0 0.0
        %2792 = vmatprep.subr.mxu0 0.0
        %2793 = vmatpush2.msra.mxu0 0.0
        %2794 = vmatprep.subr.mxu0 0.0
        %2795 = vmatpush2.msra.mxu0 0.0
        %2796 = vmatprep.subr.mxu0 0.0
        %2797 = vmatpush2.msra.mxu0 0.0
        %2798 = vmatprep.subr.mxu0 0.0
        %2799 = vmatpush2.msra.mxu0 0.0
        %2800 = vmatprep.mubr.f32.mxu0 0.0
        %v2801 = vand.u32 %v2345, 4294901760
        %v2802 = vsub.f32 %v2345, %v2801
        %v2803 = vand.u32 %v2802, 4294901760
        %2804 = vmatmul.mubr.f32.gmra.mxu0 %v2803
        %v2805 = vpop.f32.mrf.mxu0
        %v2806 = vadd.f32 %v2710, %v2805
        %v2807 = vpop.f32.mrf.mxu0
        %2808 = vmatprep.mubr.f32.mxu0 0.0
        %v2809 = vand.u32 %v2350, 4294901760
        %v2810 = vsub.f32 %v2350, %v2809
        %v2811 = vand.u32 %v2810, 4294901760
        %2812 = vmatmul.mubr.f32.gmra.mxu0 %v2811
        %v2813 = vpop.f32.mrf.mxu0
        %v2814 = vadd.f32 %v2717, %v2813
        %v2815 = vpop.f32.mrf.mxu0
        %2816 = vdwg.mxu0
        %2817 = vmatprep.subr.mxu0 0.0
        %v2818 = vand.u32 %v351, 4294901760
        %v2819 = vsub.f32 %v351, %v2818
        %v2820 = vand.u32 %v2819, 4294901760
        %2821 = vmatpush1.msra.mxu0 %v2820
        %2822 = vmatprep.subr.mxu0 0.0
        %v2823 = vand.u32 %v350, 4294901760
        %v2824 = vsub.f32 %v350, %v2823
        %v2825 = vand.u32 %v2824, 4294901760
        %2826 = vmatpush1.msra.mxu0 %v2825
        %2827 = vmatprep.subr.mxu0 0.0
        %v2828 = vand.u32 %v349, 4294901760
        %v2829 = vsub.f32 %v349, %v2828
        %v2830 = vand.u32 %v2829, 4294901760
        %2831 = vmatpush1.msra.mxu0 %v2830
        %2832 = vmatprep.subr.mxu0 0.0
        %v2833 = vand.u32 %v348, 4294901760
        %v2834 = vsub.f32 %v348, %v2833
        %v2835 = vand.u32 %v2834, 4294901760
        %2836 = vmatpush1.msra.mxu0 %v2835
        %2837 = vmatprep.subr.mxu0 0.0
        %v2838 = vand.u32 %v347, 4294901760
        %v2839 = vsub.f32 %v347, %v2838
        %v2840 = vand.u32 %v2839, 4294901760
        %2841 = vmatpush1.msra.mxu0 %v2840
        %2842 = vmatprep.subr.mxu0 0.0
        %v2843 = vand.u32 %v346, 4294901760
        %v2844 = vsub.f32 %v346, %v2843
        %v2845 = vand.u32 %v2844, 4294901760
        %2846 = vmatpush1.msra.mxu0 %v2845
        %2847 = vmatprep.subr.mxu0 0.0
        %v2848 = vand.u32 %v345, 4294901760
        %v2849 = vsub.f32 %v345, %v2848
        %v2850 = vand.u32 %v2849, 4294901760
        %2851 = vmatpush1.msra.mxu0 %v2850
        %2852 = vmatprep.subr.mxu0 0.0
        %v2853 = vand.u32 %v344, 4294901760
        %v2854 = vsub.f32 %v344, %v2853
        %v2855 = vand.u32 %v2854, 4294901760
        %2856 = vmatpush1.msra.mxu0 %v2855
        %2857 = vmatprep.subr.mxu0 0.0
        %v2858 = vand.u32 %v343, 4294901760
        %v2859 = vsub.f32 %v343, %v2858
        %v2860 = vand.u32 %v2859, 4294901760
        %2861 = vmatpush1.msra.mxu0 %v2860
        %2862 = vmatprep.subr.mxu0 0.0
        %v2863 = vand.u32 %v342, 4294901760
        %v2864 = vsub.f32 %v342, %v2863
        %v2865 = vand.u32 %v2864, 4294901760
        %2866 = vmatpush1.msra.mxu0 %v2865
        %2867 = vmatprep.subr.mxu0 0.0
        %v2868 = vand.u32 %v341, 4294901760
        %v2869 = vsub.f32 %v341, %v2868
        %v2870 = vand.u32 %v2869, 4294901760
        %2871 = vmatpush1.msra.mxu0 %v2870
        %2872 = vmatprep.subr.mxu0 0.0
        %v2873 = vand.u32 %v340, 4294901760
        %v2874 = vsub.f32 %v340, %v2873
        %v2875 = vand.u32 %v2874, 4294901760
        %2876 = vmatpush1.msra.mxu0 %v2875
        %2877 = vmatprep.subr.mxu0 0.0
        %v2878 = vand.u32 %v339, 4294901760
        %v2879 = vsub.f32 %v339, %v2878
        %v2880 = vand.u32 %v2879, 4294901760
        %2881 = vmatpush1.msra.mxu0 %v2880
        %2882 = vmatprep.subr.mxu0 0.0
        %v2883 = vand.u32 %v338, 4294901760
        %v2884 = vsub.f32 %v338, %v2883
        %v2885 = vand.u32 %v2884, 4294901760
        %2886 = vmatpush1.msra.mxu0 %v2885
        %2887 = vmatprep.subr.mxu0 0.0
        %v2888 = vand.u32 %v337, 4294901760
        %v2889 = vsub.f32 %v337, %v2888
        %v2890 = vand.u32 %v2889, 4294901760
        %2891 = vmatpush1.msra.mxu0 %v2890
        %2892 = vmatprep.subr.mxu0 0.0
        %v2893 = vand.u32 %v336, 4294901760
        %v2894 = vsub.f32 %v336, %v2893
        %v2895 = vand.u32 %v2894, 4294901760
        %2896 = vmatpush1.msra.mxu0 %v2895
        %2897 = vmatprep.subr.mxu0 0.0
        %2898 = vmatpush2.msra.mxu0 0.0
        %2899 = vmatprep.subr.mxu0 0.0
        %2900 = vmatpush2.msra.mxu0 0.0
        %2901 = vmatprep.subr.mxu0 0.0
        %2902 = vmatpush2.msra.mxu0 0.0
        %2903 = vmatprep.subr.mxu0 0.0
        %2904 = vmatpush2.msra.mxu0 0.0
        %2905 = vmatprep.subr.mxu0 0.0
        %2906 = vmatpush2.msra.mxu0 0.0
        %2907 = vmatprep.subr.mxu0 0.0
        %2908 = vmatpush2.msra.mxu0 0.0
        %2909 = vmatprep.subr.mxu0 0.0
        %2910 = vmatpush2.msra.mxu0 0.0
        %2911 = vmatprep.subr.mxu0 0.0
        %2912 = vmatpush2.msra.mxu0 0.0
        %2913 = vmatprep.subr.mxu0 0.0
        %2914 = vmatpush2.msra.mxu0 0.0
        %2915 = vmatprep.subr.mxu0 0.0
        %2916 = vmatpush2.msra.mxu0 0.0
        %2917 = vmatprep.subr.mxu0 0.0
        %2918 = vmatpush2.msra.mxu0 0.0
        %2919 = vmatprep.subr.mxu0 0.0
        %2920 = vmatpush2.msra.mxu0 0.0
        %2921 = vmatprep.subr.mxu0 0.0
        %2922 = vmatpush2.msra.mxu0 0.0
        %2923 = vmatprep.subr.mxu0 0.0
        %2924 = vmatpush2.msra.mxu0 0.0
        %2925 = vmatprep.subr.mxu0 0.0
        %2926 = vmatpush2.msra.mxu0 0.0
        %2927 = vmatprep.subr.mxu0 0.0
        %2928 = vmatpush2.msra.mxu0 0.0
        %2929 = vmatprep.mubr.f32.mxu0 0.0
        %v2930 = vand.u32 %v2345, 4294901760
        %2931 = vmatmul.mubr.f32.gmra.mxu0 %v2930
        %v2932 = vpop.f32.mrf.mxu0
        %v2933 = vadd.f32 %v2806, %v2932
        %v2934 = vpop.f32.mrf.mxu0
        %2935 = vmatprep.mubr.f32.mxu0 0.0
        %v2936 = vand.u32 %v2350, 4294901760
        %2937 = vmatmul.mubr.f32.gmra.mxu0 %v2936
        %v2938 = vpop.f32.mrf.mxu0
        %v2939 = vadd.f32 %v2814, %v2938
        %v2940 = vpop.f32.mrf.mxu0
        %2941 = vdwg.mxu0
        %2942 = vmatprep.subr.mxu0 0.0
        %v2943 = vand.u32 %v351, 4294901760
        %2944 = vmatpush1.msra.mxu0 %v2943
        %2945 = vmatprep.subr.mxu0 0.0
        %v2946 = vand.u32 %v350, 4294901760
        %2947 = vmatpush1.msra.mxu0 %v2946
        %2948 = vmatprep.subr.mxu0 0.0
        %v2949 = vand.u32 %v349, 4294901760
        %2950 = vmatpush1.msra.mxu0 %v2949
        %2951 = vmatprep.subr.mxu0 0.0
        %v2952 = vand.u32 %v348, 4294901760
        %2953 = vmatpush1.msra.mxu0 %v2952
        %2954 = vmatprep.subr.mxu0 0.0
        %v2955 = vand.u32 %v347, 4294901760
        %2956 = vmatpush1.msra.mxu0 %v2955
        %2957 = vmatprep.subr.mxu0 0.0
        %v2958 = vand.u32 %v346, 4294901760
        %2959 = vmatpush1.msra.mxu0 %v2958
        %2960 = vmatprep.subr.mxu0 0.0
        %v2961 = vand.u32 %v345, 4294901760
        %2962 = vmatpush1.msra.mxu0 %v2961
        %2963 = vmatprep.subr.mxu0 0.0
        %v2964 = vand.u32 %v344, 4294901760
        %2965 = vmatpush1.msra.mxu0 %v2964
        %2966 = vmatprep.subr.mxu0 0.0
        %v2967 = vand.u32 %v343, 4294901760
        %2968 = vmatpush1.msra.mxu0 %v2967
        %2969 = vmatprep.subr.mxu0 0.0
        %v2970 = vand.u32 %v342, 4294901760
        %2971 = vmatpush1.msra.mxu0 %v2970
        %2972 = vmatprep.subr.mxu0 0.0
        %v2973 = vand.u32 %v341, 4294901760
        %2974 = vmatpush1.msra.mxu0 %v2973
        %2975 = vmatprep.subr.mxu0 0.0
        %v2976 = vand.u32 %v340, 4294901760
        %2977 = vmatpush1.msra.mxu0 %v2976
        %2978 = vmatprep.subr.mxu0 0.0
        %v2979 = vand.u32 %v339, 4294901760
        %2980 = vmatpush1.msra.mxu0 %v2979
        %2981 = vmatprep.subr.mxu0 0.0
        %v2982 = vand.u32 %v338, 4294901760
        %2983 = vmatpush1.msra.mxu0 %v2982
        %2984 = vmatprep.subr.mxu0 0.0
        %v2985 = vand.u32 %v337, 4294901760
        %2986 = vmatpush1.msra.mxu0 %v2985
        %2987 = vmatprep.subr.mxu0 0.0
        %v2988 = vand.u32 %v336, 4294901760
        %2989 = vmatpush1.msra.mxu0 %v2988
        %2990 = vmatprep.subr.mxu0 0.0
        %2991 = vmatpush2.msra.mxu0 0.0
        %2992 = vmatprep.subr.mxu0 0.0
        %2993 = vmatpush2.msra.mxu0 0.0
        %2994 = vmatprep.subr.mxu0 0.0
        %2995 = vmatpush2.msra.mxu0 0.0
        %2996 = vmatprep.subr.mxu0 0.0
        %2997 = vmatpush2.msra.mxu0 0.0
        %2998 = vmatprep.subr.mxu0 0.0
        %2999 = vmatpush2.msra.mxu0 0.0
        %3000 = vmatprep.subr.mxu0 0.0
        %3001 = vmatpush2.msra.mxu0 0.0
        %3002 = vmatprep.subr.mxu0 0.0
        %3003 = vmatpush2.msra.mxu0 0.0
        %3004 = vmatprep.subr.mxu0 0.0
        %3005 = vmatpush2.msra.mxu0 0.0
        %3006 = vmatprep.subr.mxu0 0.0
        %3007 = vmatpush2.msra.mxu0 0.0
        %3008 = vmatprep.subr.mxu0 0.0
        %3009 = vmatpush2.msra.mxu0 0.0
        %3010 = vmatprep.subr.mxu0 0.0
        %3011 = vmatpush2.msra.mxu0 0.0
        %3012 = vmatprep.subr.mxu0 0.0
        %3013 = vmatpush2.msra.mxu0 0.0
        %3014 = vmatprep.subr.mxu0 0.0
        %3015 = vmatpush2.msra.mxu0 0.0
        %3016 = vmatprep.subr.mxu0 0.0
        %3017 = vmatpush2.msra.mxu0 0.0
        %3018 = vmatprep.subr.mxu0 0.0
        %3019 = vmatpush2.msra.mxu0 0.0
        %3020 = vmatprep.subr.mxu0 0.0
        %3021 = vmatpush2.msra.mxu0 0.0
        %3022 = vmatprep.mubr.f32.mxu0 0.0
        %v3023 = vand.u32 %v2345, 4294901760
        %3024 = vmatmul.mubr.f32.gmra.mxu0 %v3023
        %v3025 = vpop.f32.mrf.mxu0
        %v3026 = vadd.f32 %v2933, %v3025
        %v3027 = vpop.f32.mrf.mxu0
        %3028 = vmatprep.mubr.f32.mxu0 0.0
        %v3029 = vand.u32 %v2350, 4294901760
        %3030 = vmatmul.mubr.f32.gmra.mxu0 %v3029
        %v3031 = vpop.f32.mrf.mxu0
        %v3032 = vadd.f32 %v2939, %v3031
        %v3033 = vpop.f32.mrf.mxu0
        %3034 = vdwg.mxu0
        %v3035 = vrcp.pop %v522
        %v3036 = vmul.f32 %v3026, %v3035
        %v3037 = vsub.f32 %v3036, %v1238
        %v3038 = vmul.f32 %v3037, %v3037
        %v3039 = vmul.f32 %v522, %v3038
        %v3041 = vrot.slane %v3039, 4
        %v3043 = vsub.f32 %v3026, %v3041
        %v3044 = vmax.f32 %v3043, 0.0
        %v3045 = vmul.f32 %v3044, %v527
        %v3046 = vrsqrt.pop %v3045
        %v3047 = vmul.f32 %v3045, %v3046
        %vm3048 = vcmp.eq.f32.partialorder %v3045, inf
        %v3049 = vsel %vm3048, %v3045, %v3047
        %vm3050 = vcmp.eq.f32.partialorder %v3045, 0.0
        %v3051 = vand.u32 %v3045, 2147483648
        %v3052 = vsel %vm3050, %v3051, %v3049
        %v3053 = vsel %vm1220, %v1439, %v1735
        %v3054 = vsel %vm2347, %v3053, %v2015
        %v3055 = vsel %vm2349, %v3054, %v2295
        %v3056 = vsel %vm521, 1, 0
        %vm3057 = vcmp.eq.s32.totalorder %v3056, 1
        %v3058 = vsel %vm3057, %v3055, 0.0
        %v3059 = vsel %vm1220, %v1476, %v1772
        %v3060 = vsel %vm2347, %v3059, %v2052
        %v3061 = vsel %vm2349, %v3060, %v2332
        %v3062 = vsel %vm3057, %v3061, 0.0
        %v3063 = vmul.f32 %v3032, %v3035
        %v3064 = vlog2.pop %v522
        %v3065 = vmul.f32 %v3064, 0.6931472
        %v3066 = vmul.f32 %v3065, 1.442695
        %v3067 = vadd.f32 %v3063, %v3066
        %v3068 = vsel %vm3057, %v3067, 0.0
        %3069 = vst [vmem:[%s189] sm:$0x1] %v520
        %3070 = vst [vmem:[%s189 + $0x1] sm:$0xf] %v3026
        %3071 = vst [vmem:[%s189 + $0x5] sm:$0xf] %v3036
        %3072 = vst [vmem:[%s189 + $0x9] sm:$0xf] %v3058
        %3073 = vst [vmem:[%s189 + $0xd] sm:$0xf] %v3062
        %3074 = vst [vmem:[%s189 + $0xd] sm:$0xf0] %v3052
        %3075 = vst [vmem:[%s189 + $0x15] sm:$0xf] %v3068
        %3076 = vst [vmem:[%s189 + $0x19] sm:$0x7f] 0.0
        %s3077 = sand.u32 %s103, 1
        %s3078 = scalar_lea.sflag [#allocation3], %s3077
        %s3079 = sand.u32 %s103, 1
        %s3080 = smul.addr %s3079, 32
        %s3081 = scalar_lea.vmem [#allocation2], %s3080
        // Predicated region
        $region33: #{tpu_custom_call.1} parent=31 // pred_check
          %p3082 = pneg %p113
        $region34: #{tpu_custom_call.1} parent=31 // pred_check_branch
          %3084 = sbr.rel (%p3082) target = $region36
        $region35: #{tpu_custom_call.1} parent=31 // pred_region
          %s3086 = ssub.s32 512, 512
          %3087 = vsyncadd %s3078, %s3086
          %s3088 = smul.addr %s17, 4
          %s3089 = smul.addr %s3088, 128
          %s3090 = scalar_lea.hbm %s3, %s3089
          %s3091 = sshll.u32 %s3081, 4
          %s3092 = int_to_ptr.vmem [resolvable:$true] %s3091
          %3097 = dma.vmem_to_hbm [thread:$0]  %s3092, 512, %s3090, %s3078, 128, 128, 8
        $region36: #{tpu_custom_call.1} parent=31 // pred_fallthru
          _
      $region32: #{tpu_custom_call.1} parent=5 // pred_fallthru
        _
      %p3098 = scmp.le.s32.totalorder 2, %s12
      // Predicated region
      $region37: #{tpu_custom_call.1} parent=5 // pred_check
        %p3099 = pneg %p3098
      $region38: #{tpu_custom_call.1} parent=5 // pred_check_branch
        %3101 = sbr.rel (%p3099) target = $region40
      $region39: #{tpu_custom_call.1} parent=5 // pred_region
        %s3102 = ssub.s32 %s12, 2
        // Predicated region
        $region41: #{tpu_custom_call.1} parent=39 // pred_check
          %p3103 = pneg %p119
        $region42: #{tpu_custom_call.1} parent=39 // pred_check_branch
          %3105 = sbr.rel (%p3103) target = $region44
        $region43: #{tpu_custom_call.1} parent=39 // pred_region
          %s3106 = sand.u32 %s104, 1
          %s3107 = scalar_lea.sflag [#allocation3], %s3106
          %s3108 = sand.u32 %s104, 1
          %s3109 = smul.addr %s3108, 32
          %s3110 = scalar_lea.vmem [#allocation2], %s3109
          %3111 = dma.done %s3107, 512
        $region44: #{tpu_custom_call.1} parent=39 // pred_fallthru
          _
      $region40: #{tpu_custom_call.1} parent=5 // pred_fallthru
        _
    $region6: #{tpu_custom_call.1} parent=1 // loop_footer
      %s16 = sadd.s32 1, %s12
    $region7: #{tpu_custom_call.1} parent=1 // loop_footer_branch
      %11 = sbr.rel target = $region3
    $region8: #{tpu_custom_call.1} parent=1 // loop_exit
      _
    %3112 = vsyncpa [#allocation3], 1
    %s3113 = scalar_lea.sflag [#allocation3], 1
    %3114 = vsyncpa %s3113, 1

</llo_original>
